<compile_context>
chip_gen: v6e
topology: v6e:2x2x1
jax: 0.10.0
libtpu: 0.0.40
codegen_flags: <defaults>
</compile_context>

<pallas_src>
import functools

import jax
import jax.numpy as jnp
from jax.experimental import pallas as pl
from jax.experimental.pallas import tpu as pltpu


# Lane-dense padded widths (all multiples of 128).
TXT_PAD = 128     # bert logits: 3    -> 128
RES_PAD = 1024    # resnet out : 1000 -> 1024
OUT_PAD = 128     # num_labels : 4    -> 128


def _round_up(x, m):
    return ((x + m - 1) // m) * m


# ----------------------------------------------------------------------------
# Fused Pallas kernel: backbone stand-ins + fusion head, one batch tile per
# grid step.
#   tl = texts @ Wbert + bbert                     # stand-in "bert"
#   im = img   @ Wres  + bres                      # stand-in "resnet"
#   t  = relu(tl @ Wt + bt)                        # fc_txt
#   i  = relu(im @ Wi + bi)                        # fc_img
#   h  = relu((t + i) @ W1 + b1)                   # fc1
#   o  = h @ W2 + b2                               # fc2
# ----------------------------------------------------------------------------
def fused_forward_kernel(txt_ref, img_ref,
                         wbert_ref, bbert_ref,
                         wres_ref, bres_ref,
                         wtxt_ref, btxt_ref,
                         wimg_ref, bimg_ref,
                         w1_ref, b1_ref,
                         w2_ref, b2_ref,
                         o_ref):
    f32 = jnp.float32
    bf = jnp.bfloat16

    def mm(x, w_ref):
        # bf16 MXU inputs, f32 accumulation.  astype is a no-op for the
        # already-bf16 streamed inputs.
        return jnp.dot(x.astype(bf), w_ref[...], preferred_element_type=f32)

    # Backbone stand-ins, fused in-kernel (largest GEMM of the forward).
    tl = mm(txt_ref[...], wbert_ref) + bbert_ref[...]
    im = mm(img_ref[...], wres_ref) + bres_ref[...]

    # Fusion head; elementwise math kept in f32.
    t = jnp.maximum(mm(tl, wtxt_ref) + btxt_ref[...], 0.0)
    i = jnp.maximum(mm(im, wimg_ref) + bimg_ref[...], 0.0)
    c = t + i
    h = jnp.maximum(mm(c, w1_ref) + b1_ref[...], 0.0)
    o = mm(h, w2_ref) + b2_ref[...]
    o_ref[...] = o.astype(o_ref.dtype)


def fused_forward(texts, images, params, *, num_labels, batch_tile=256):
    """Run the fused forward.  Lane-padding of weights is done at
    construction time (make_params); here we only flatten the image, cast the
    streamed activations to bf16 and (if needed) pad the batch."""
    B, seq_len = texts.shape
    chw = images.shape[1] * images.shape[2] * images.shape[3]

    # Streamed activations in bf16: halves HBM->VMEM input DMA and feeds the
    # MXU its native dtype directly.
    img = images.reshape(B, chw).astype(jnp.bfloat16)
    txt = texts.astype(jnp.bfloat16)

    # Clamp the batch tile for small batches; keep it a multiple of 8
    # (sublane rule).  Only pad when B is not already a multiple of the tile.
    batch_tile = max(8, min(batch_tile, _round_up(B, 8)))
    batch_tile = _round_up(batch_tile, 8)
    b_pad = _round_up(B, batch_tile)
    if b_pad != B:
        txt = jnp.pad(txt, ((0, b_pad - B), (0, 0)))
        img = jnp.pad(img, ((0, b_pad - B), (0, 0)))

    h2 = params["w_txt"].shape[1]
    hidden_dim = params["w1"].shape[1]

    weight_args = (
        params["w_bert"], params["b_bert"],
        params["w_res"], params["b_res"],
        params["w_txt"], params["b_txt"],
        params["w_img"], params["b_img"],
        params["w1"], params["b1"],
        params["w2"], params["b2"],
    )

    grid = (b_pad // batch_tile,)

    in_specs = [
        pl.BlockSpec((batch_tile, seq_len), lambda b: (b, 0)),
        pl.BlockSpec((batch_tile, chw), lambda b: (b, 0)),
    ]
    # Weights / biases: full block, constant block index, SINGLE-buffered so
    # they stay VMEM-resident across the batch loop without doubling their
    # footprint (frees budget for larger batch tiles on v7x/v5e).
    in_specs += [
        pl.BlockSpec(w.shape, lambda b: (0, 0), pipeline_mode=pl.Buffered(1))
        for w in weight_args
    ]

    out_specs = pl.BlockSpec((batch_tile, OUT_PAD), lambda b: (b, 0))

    # Advisory cost estimate for XLA's scheduler.
    flops = 2 * b_pad * (seq_len * TXT_PAD + chw * RES_PAD
                         + TXT_PAD * h2 + RES_PAD * h2
                         + h2 * hidden_dim + hidden_dim * OUT_PAD)
    bytes_accessed = (
        int(txt.size) * 2 + int(img.size) * 2 + b_pad * OUT_PAD * 4
        + sum(int(w.size) * w.dtype.itemsize for w in weight_args)
    )
    cost = pl.CostEstimate(flops=flops, transcendentals=0,
                           bytes_accessed=bytes_accessed)

    out = pl.pallas_call(
        fused_forward_kernel,
        out_shape=jax.ShapeDtypeStruct((b_pad, OUT_PAD), jnp.float32),
        grid=grid,
        in_specs=in_specs,
        out_specs=out_specs,
        compiler_params=pltpu.CompilerParams(
            dimension_semantics=("parallel",),
            # Above v5e's 16 MiB scoped default, below v7x's 64 MiB physical.
            vmem_limit_bytes=48 << 20,
        ),
        cost_estimate=cost,
    )(txt, img, *weight_args)

    return out[:B, :num_labels]


# ----------------------------------------------------------------------------
# Deterministic synthetic parameters, pre-padded to lane-dense widths
# (including h2 / hidden_dim rounded up to multiples of 128).
# Weights: bf16 (MXU inputs).  Biases: f32 (elementwise stays f32).
# Padded rows/cols/lanes are zero-filled so the padded lanes contribute
# nothing and the sliced output matches the unpadded math exactly.
# ----------------------------------------------------------------------------
def make_params(key, *, seq_len, img_flat, hidden_dim, num_labels):
    h2 = hidden_dim // 2
    h2_pad = _round_up(h2, 128)
    hid_pad = _round_up(hidden_dim, 128)
    ks = jax.random.split(key, 10)
    scale = 0.02

    def wgt(k, fi, fo, fi_pad, fo_pad):
        m = scale * jax.random.normal(k, (fi, fo), jnp.float32)
        m = jnp.pad(m, ((0, fi_pad - fi), (0, fo_pad - fo)))
        return m.astype(jnp.bfloat16)

    def bias(k, fo, fo_pad):
        v = scale * jax.random.normal(k, (1, fo), jnp.float32)
        return jnp.pad(v, ((0, 0), (0, fo_pad - fo)))

    return {
        # backbone stand-ins (fused into the kernel)
        "w_bert": wgt(ks[0], seq_len, 3, seq_len, TXT_PAD),
        "b_bert": jnp.zeros((1, TXT_PAD), jnp.float32),
        "w_res":  wgt(ks[1], img_flat, 1000, img_flat, RES_PAD),
        "b_res":  jnp.zeros((1, RES_PAD), jnp.float32),
        # fusion head
        "w_txt":  wgt(ks[2], 3, h2, TXT_PAD, h2_pad),
        "b_txt":  bias(ks[3], h2, h2_pad),
        "w_img":  wgt(ks[4], 1000, h2, RES_PAD, h2_pad),
        "b_img":  bias(ks[5], h2, h2_pad),
        "w1":     wgt(ks[6], h2, hidden_dim, h2_pad, hid_pad),
        "b1":     bias(ks[7], hidden_dim, hid_pad),
        "w2":     wgt(ks[8], hidden_dim, num_labels, hid_pad, OUT_PAD),
        "b2":     bias(ks[9], num_labels, OUT_PAD),
    }


# Pure-JAX reference mirroring the kernel's numerics (bf16 matmul inputs,
# f32 accumulation, f32 elementwise).
def reference_forward(texts, images, p, num_labels):
    bf, f32 = jnp.bfloat16, jnp.float32
    B = texts.shape[0]
    img = images.reshape(B, -1)

    def mm(x, w):
        return jnp.dot(x.astype(bf), w, preferred_element_type=f32)

    tl = mm(texts, p["w_bert"]) + p["b_bert"]
    im = mm(img, p["w_res"]) + p["b_res"]
    t = jnp.maximum(mm(tl, p["w_txt"]) + p["b_txt"], 0.0)
    i = jnp.maximum(mm(im, p["w_img"]) + p["b_img"], 0.0)
    h = jnp.maximum(mm(t + i, p["w1"]) + p["b1"], 0.0)
    o = mm(h, p["w2"]) + p["b2"]
    return o[:, :num_labels]


if __name__ == "__main__":
    # Small shapes consistent with the module's forward:
    #   texts  : [B, seq]           (fed to the fused bert stand-in)
    #   images : [B, C, H, W] NCHW  (flattened, fed to the fused resnet stand-in)
    B, SEQ = 2, 8
    C, H, W = 3, 16, 16           # C*H*W = 768 (lane multiple)
    HIDDEN_DIM = 256              # small stand-in for the default 2048
    NUM_LABELS = 4

    key = jax.random.PRNGKey(0)
    k_txt, k_img, k_par = jax.random.split(key, 3)

    texts = jax.random.normal(k_txt, (B, SEQ), jnp.float32)
    images = jax.random.normal(k_img, (B, C, H, W), jnp.float32)

    params = make_params(k_par, seq_len=SEQ, img_flat=C * H * W,
                         hidden_dim=HIDDEN_DIM, num_labels=NUM_LABELS)

    fwd = jax.jit(functools.partial(fused_forward, num_labels=NUM_LABELS))
    logits = jax.block_until_ready(fwd(texts, images, params))

    ref = reference_forward(texts, images, params, NUM_LABELS)

    assert logits.shape == (B, NUM_LABELS)
    assert jnp.allclose(logits, ref, atol=2e-3, rtol=2e-3), (
        f"max abs err {jnp.max(jnp.abs(logits - ref))}")

    print("KERNEL_OK")
</pallas_src>

<mosaic_0001>
module attributes {stable_mosaic.version = 11 : i64} {
  func.func @fused_forward_kernel(%arg0: i32, %arg1: memref<8x8xbf16, #tpu.memory_space<vmem>>, %arg2: memref<8x768xbf16, #tpu.memory_space<vmem>>, %arg3: memref<8x128xbf16, #tpu.memory_space<vmem>>, %arg4: memref<1x128xf32, #tpu.memory_space<vmem>>, %arg5: memref<768x1024xbf16, #tpu.memory_space<vmem>>, %arg6: memref<1x1024xf32, #tpu.memory_space<vmem>>, %arg7: memref<128x128xbf16, #tpu.memory_space<vmem>>, %arg8: memref<1x128xf32, #tpu.memory_space<vmem>>, %arg9: memref<1024x128xbf16, #tpu.memory_space<vmem>>, %arg10: memref<1x128xf32, #tpu.memory_space<vmem>>, %arg11: memref<128x256xbf16, #tpu.memory_space<vmem>>, %arg12: memref<1x256xf32, #tpu.memory_space<vmem>>, %arg13: memref<256x128xbf16, #tpu.memory_space<vmem>>, %arg14: memref<1x128xf32, #tpu.memory_space<vmem>>, %arg15: memref<8x128xf32, #tpu.memory_space<vmem>>) attributes {dimension_semantics = [#tpu.dimension_semantics<parallel>], iteration_bounds = array<i64: 1>, scalar_prefetch = 0 : i64, scratch_operands = 0 : i64, tpu.core_type = #tpu.core_type<tc>, window_params = [{transform_indices = @transform_0, window_bounds = array<i64: 8, 8>}, {transform_indices = @transform_1, window_bounds = array<i64: 8, 768>}, {pipeline_mode = #tpu.pipeline_mode<synchronous>, transform_indices = @transform_2, window_bounds = array<i64: 8, 128>}, {pipeline_mode = #tpu.pipeline_mode<synchronous>, transform_indices = @transform_3, window_bounds = array<i64: 1, 128>}, {pipeline_mode = #tpu.pipeline_mode<synchronous>, transform_indices = @transform_4, window_bounds = array<i64: 768, 1024>}, {pipeline_mode = #tpu.pipeline_mode<synchronous>, transform_indices = @transform_5, window_bounds = array<i64: 1, 1024>}, {pipeline_mode = #tpu.pipeline_mode<synchronous>, transform_indices = @transform_6, window_bounds = array<i64: 128, 128>}, {pipeline_mode = #tpu.pipeline_mode<synchronous>, transform_indices = @transform_7, window_bounds = array<i64: 1, 128>}, {pipeline_mode = #tpu.pipeline_mode<synchronous>, transform_indices = @transform_8, window_bounds = array<i64: 1024, 128>}, {pipeline_mode = #tpu.pipeline_mode<synchronous>, transform_indices = @transform_9, window_bounds = array<i64: 1, 128>}, {pipeline_mode = #tpu.pipeline_mode<synchronous>, transform_indices = @transform_10, window_bounds = array<i64: 128, 256>}, {pipeline_mode = #tpu.pipeline_mode<synchronous>, transform_indices = @transform_11, window_bounds = array<i64: 1, 256>}, {pipeline_mode = #tpu.pipeline_mode<synchronous>, transform_indices = @transform_12, window_bounds = array<i64: 256, 128>}, {pipeline_mode = #tpu.pipeline_mode<synchronous>, transform_indices = @transform_13, window_bounds = array<i64: 1, 128>}, {transform_indices = @transform_14, window_bounds = array<i64: 8, 128>}]} {
    %c0 = arith.constant 0 : index
    %c0_0 = arith.constant 0 : index
    %0 = vector.load %arg1[%c0, %c0_0] : memref<8x8xbf16, #tpu.memory_space<vmem>>, vector<8x8xbf16>
    %c0_1 = arith.constant 0 : index
    %c0_2 = arith.constant 0 : index
    %1 = vector.load %arg3[%c0_1, %c0_2] : memref<8x128xbf16, #tpu.memory_space<vmem>>, vector<8x128xbf16>
    %cst = arith.constant dense<0.000000e+00> : vector<8x128xf32>
    %2 = tpu.matmul %0, %1, %cst {dimension_numbers = #tpu.dot_dimension_numbers<[1], [0], [0], [1], [0, 0, 1, 1], [], []>} : vector<8x8xbf16>, vector<8x128xbf16>, vector<8x128xf32> -> vector<8x128xf32>
    %c0_3 = arith.constant 0 : index
    %c0_4 = arith.constant 0 : index
    %3 = vector.load %arg4[%c0_3, %c0_4] : memref<1x128xf32, #tpu.memory_space<vmem>>, vector<1x128xf32>
    %4 = vector.broadcast %3 : vector<1x128xf32> to vector<8x128xf32>
    %5 = arith.addf %2, %4 : vector<8x128xf32>
    %c0_5 = arith.constant 0 : index
    %c0_6 = arith.constant 0 : index
    %6 = vector.load %arg2[%c0_5, %c0_6] : memref<8x768xbf16, #tpu.memory_space<vmem>>, vector<8x768xbf16>
    %c0_7 = arith.constant 0 : index
    %c0_8 = arith.constant 0 : index
    %7 = vector.load %arg5[%c0_7, %c0_8] : memref<768x1024xbf16, #tpu.memory_space<vmem>>, vector<768x1024xbf16>
    %cst_9 = arith.constant dense<0.000000e+00> : vector<8x1024xf32>
    %8 = tpu.matmul %6, %7, %cst_9 {dimension_numbers = #tpu.dot_dimension_numbers<[1], [0], [0], [1], [0, 0, 1, 1], [], []>} : vector<8x768xbf16>, vector<768x1024xbf16>, vector<8x1024xf32> -> vector<8x1024xf32>
    %c0_10 = arith.constant 0 : index
    %c0_11 = arith.constant 0 : index
    %9 = vector.load %arg6[%c0_10, %c0_11] : memref<1x1024xf32, #tpu.memory_space<vmem>>, vector<1x1024xf32>
    %10 = vector.broadcast %9 : vector<1x1024xf32> to vector<8x1024xf32>
    %11 = arith.addf %8, %10 : vector<8x1024xf32>
    %12 = arith.truncf %5 : vector<8x128xf32> to vector<8x128xbf16>
    %c0_12 = arith.constant 0 : index
    %c0_13 = arith.constant 0 : index
    %13 = vector.load %arg7[%c0_12, %c0_13] : memref<128x128xbf16, #tpu.memory_space<vmem>>, vector<128x128xbf16>
    %cst_14 = arith.constant dense<0.000000e+00> : vector<8x128xf32>
    %14 = tpu.matmul %12, %13, %cst_14 {dimension_numbers = #tpu.dot_dimension_numbers<[1], [0], [0], [1], [0, 0, 1, 1], [], []>} : vector<8x128xbf16>, vector<128x128xbf16>, vector<8x128xf32> -> vector<8x128xf32>
    %c0_15 = arith.constant 0 : index
    %c0_16 = arith.constant 0 : index
    %15 = vector.load %arg8[%c0_15, %c0_16] : memref<1x128xf32, #tpu.memory_space<vmem>>, vector<1x128xf32>
    %16 = vector.broadcast %15 : vector<1x128xf32> to vector<8x128xf32>
    %17 = arith.addf %14, %16 : vector<8x128xf32>
    %cst_17 = arith.constant 0.000000e+00 : f32
    %18 = vector.broadcast %cst_17 : f32 to vector<8x128xf32>
    %19 = arith.maximumf %17, %18 : vector<8x128xf32>
    %20 = arith.truncf %11 : vector<8x1024xf32> to vector<8x1024xbf16>
    %c0_18 = arith.constant 0 : index
    %c0_19 = arith.constant 0 : index
    %21 = vector.load %arg9[%c0_18, %c0_19] : memref<1024x128xbf16, #tpu.memory_space<vmem>>, vector<1024x128xbf16>
    %cst_20 = arith.constant dense<0.000000e+00> : vector<8x128xf32>
    %22 = tpu.matmul %20, %21, %cst_20 {dimension_numbers = #tpu.dot_dimension_numbers<[1], [0], [0], [1], [0, 0, 1, 1], [], []>} : vector<8x1024xbf16>, vector<1024x128xbf16>, vector<8x128xf32> -> vector<8x128xf32>
    %c0_21 = arith.constant 0 : index
    %c0_22 = arith.constant 0 : index
    %23 = vector.load %arg10[%c0_21, %c0_22] : memref<1x128xf32, #tpu.memory_space<vmem>>, vector<1x128xf32>
    %24 = vector.broadcast %23 : vector<1x128xf32> to vector<8x128xf32>
    %25 = arith.addf %22, %24 : vector<8x128xf32>
    %cst_23 = arith.constant 0.000000e+00 : f32
    %26 = vector.broadcast %cst_23 : f32 to vector<8x128xf32>
    %27 = arith.maximumf %25, %26 : vector<8x128xf32>
    %28 = arith.addf %19, %27 : vector<8x128xf32>
    %29 = arith.truncf %28 : vector<8x128xf32> to vector<8x128xbf16>
    %c0_24 = arith.constant 0 : index
    %c0_25 = arith.constant 0 : index
    %30 = vector.load %arg11[%c0_24, %c0_25] : memref<128x256xbf16, #tpu.memory_space<vmem>>, vector<128x256xbf16>
    %cst_26 = arith.constant dense<0.000000e+00> : vector<8x256xf32>
    %31 = tpu.matmul %29, %30, %cst_26 {dimension_numbers = #tpu.dot_dimension_numbers<[1], [0], [0], [1], [0, 0, 1, 1], [], []>} : vector<8x128xbf16>, vector<128x256xbf16>, vector<8x256xf32> -> vector<8x256xf32>
    %c0_27 = arith.constant 0 : index
    %c0_28 = arith.constant 0 : index
    %32 = vector.load %arg12[%c0_27, %c0_28] : memref<1x256xf32, #tpu.memory_space<vmem>>, vector<1x256xf32>
    %33 = vector.broadcast %32 : vector<1x256xf32> to vector<8x256xf32>
    %34 = arith.addf %31, %33 : vector<8x256xf32>
    %cst_29 = arith.constant 0.000000e+00 : f32
    %35 = vector.broadcast %cst_29 : f32 to vector<8x256xf32>
    %36 = arith.maximumf %34, %35 : vector<8x256xf32>
    %37 = arith.truncf %36 : vector<8x256xf32> to vector<8x256xbf16>
    %c0_30 = arith.constant 0 : index
    %c0_31 = arith.constant 0 : index
    %38 = vector.load %arg13[%c0_30, %c0_31] : memref<256x128xbf16, #tpu.memory_space<vmem>>, vector<256x128xbf16>
    %cst_32 = arith.constant dense<0.000000e+00> : vector<8x128xf32>
    %39 = tpu.matmul %37, %38, %cst_32 {dimension_numbers = #tpu.dot_dimension_numbers<[1], [0], [0], [1], [0, 0, 1, 1], [], []>} : vector<8x256xbf16>, vector<256x128xbf16>, vector<8x128xf32> -> vector<8x128xf32>
    %c0_33 = arith.constant 0 : index
    %c0_34 = arith.constant 0 : index
    %40 = vector.load %arg14[%c0_33, %c0_34] : memref<1x128xf32, #tpu.memory_space<vmem>>, vector<1x128xf32>
    %41 = vector.broadcast %40 : vector<1x128xf32> to vector<8x128xf32>
    %42 = arith.addf %39, %41 : vector<8x128xf32>
    %c0_35 = arith.constant 0 : index
    %c0_36 = arith.constant 0 : index
    %43 = vector.load %arg15[%c0_35, %c0_36] : memref<8x128xf32, #tpu.memory_space<vmem>>, vector<8x128xf32>
    tpu.vector_store %arg15[%c0_35, %c0_36], %42 {strides = array<i32>} : memref<8x128xf32, #tpu.memory_space<vmem>>, vector<8x128xf32>,
    return
  }
  func.func @transform_0(%arg0: i32) -> (i32, i32) {
    %c0_i32 = arith.constant 0 : i32
    %c0_i32_0 = arith.constant 0 : i32
    return %arg0, %c0_i32 : i32, i32
  }
  func.func @transform_1(%arg0: i32) -> (i32, i32) {
    %c0_i32 = arith.constant 0 : i32
    %c0_i32_0 = arith.constant 0 : i32
    return %arg0, %c0_i32 : i32, i32
  }
  func.func @transform_2(%arg0: i32) -> (i32, i32) {
    %c0_i32 = arith.constant 0 : i32
    %c0_i32_0 = arith.constant 0 : i32
    %c0_i32_1 = arith.constant 0 : i32
    return %c0_i32, %c0_i32_0 : i32, i32
  }
  func.func @transform_3(%arg0: i32) -> (i32, i32) {
    %c0_i32 = arith.constant 0 : i32
    %c0_i32_0 = arith.constant 0 : i32
    %c0_i32_1 = arith.constant 0 : i32
    return %c0_i32, %c0_i32_0 : i32, i32
  }
  func.func @transform_4(%arg0: i32) -> (i32, i32) {
    %c0_i32 = arith.constant 0 : i32
    %c0_i32_0 = arith.constant 0 : i32
    %c0_i32_1 = arith.constant 0 : i32
    return %c0_i32, %c0_i32_0 : i32, i32
  }
  func.func @transform_5(%arg0: i32) -> (i32, i32) {
    %c0_i32 = arith.constant 0 : i32
    %c0_i32_0 = arith.constant 0 : i32
    %c0_i32_1 = arith.constant 0 : i32
    return %c0_i32, %c0_i32_0 : i32, i32
  }
  func.func @transform_6(%arg0: i32) -> (i32, i32) {
    %c0_i32 = arith.constant 0 : i32
    %c0_i32_0 = arith.constant 0 : i32
    %c0_i32_1 = arith.constant 0 : i32
    return %c0_i32, %c0_i32_0 : i32, i32
  }
  func.func @transform_7(%arg0: i32) -> (i32, i32) {
    %c0_i32 = arith.constant 0 : i32
    %c0_i32_0 = arith.constant 0 : i32
    %c0_i32_1 = arith.constant 0 : i32
    return %c0_i32, %c0_i32_0 : i32, i32
  }
  func.func @transform_8(%arg0: i32) -> (i32, i32) {
    %c0_i32 = arith.constant 0 : i32
    %c0_i32_0 = arith.constant 0 : i32
    %c0_i32_1 = arith.constant 0 : i32
    return %c0_i32, %c0_i32_0 : i32, i32
  }
  func.func @transform_9(%arg0: i32) -> (i32, i32) {
    %c0_i32 = arith.constant 0 : i32
    %c0_i32_0 = arith.constant 0 : i32
    %c0_i32_1 = arith.constant 0 : i32
    return %c0_i32, %c0_i32_0 : i32, i32
  }
  func.func @transform_10(%arg0: i32) -> (i32, i32) {
    %c0_i32 = arith.constant 0 : i32
    %c0_i32_0 = arith.constant 0 : i32
    %c0_i32_1 = arith.constant 0 : i32
    return %c0_i32, %c0_i32_0 : i32, i32
  }
  func.func @transform_11(%arg0: i32) -> (i32, i32) {
    %c0_i32 = arith.constant 0 : i32
    %c0_i32_0 = arith.constant 0 : i32
    %c0_i32_1 = arith.constant 0 : i32
    return %c0_i32, %c0_i32_0 : i32, i32
  }
  func.func @transform_12(%arg0: i32) -> (i32, i32) {
    %c0_i32 = arith.constant 0 : i32
    %c0_i32_0 = arith.constant 0 : i32
    %c0_i32_1 = arith.constant 0 : i32
    return %c0_i32, %c0_i32_0 : i32, i32
  }
  func.func @transform_13(%arg0: i32) -> (i32, i32) {
    %c0_i32 = arith.constant 0 : i32
    %c0_i32_0 = arith.constant 0 : i32
    %c0_i32_1 = arith.constant 0 : i32
    return %c0_i32, %c0_i32_0 : i32, i32
  }
  func.func @transform_14(%arg0: i32) -> (i32, i32) {
    %c0_i32 = arith.constant 0 : i32
    %c0_i32_0 = arith.constant 0 : i32
    return %arg0, %c0_i32 : i32, i32
  }
}

</mosaic_0001>

<llo_original>
// kernel: fused_forward.1
$region0: #{fused_forward.1}
  #allocation0 [shape = 'u32[]', space=smem, size = 0x4, offset = 0x4, fixed_abs, tag = 'smem constant byte address 0x4 - core index']
  #allocation1 [shape = 'u32[144,128]{1,0:T(1,128)}', space=vmem, size = 0x12000, scoped, tag = 'internal scratch']
  %s0 = inlined_call_operand.vmem [shape: bf16[8,8], index: 0, kind: input, shape index: {}]
  %s1 = inlined_call_operand.vmem [shape: bf16[8,768], index: 1, kind: input, shape index: {}]
  %s2 = inlined_call_operand.hbm [shape: bf16[8,128], index: 2, kind: input, shape index: {}]
  %s3 = inlined_call_operand.hbm [shape: f32[1,128], index: 3, kind: input, shape index: {}]
  %s4 = inlined_call_operand.hbm [shape: bf16[768,1024], index: 4, kind: input, shape index: {}]
  %s5 = inlined_call_operand.hbm [shape: f32[1,1024], index: 5, kind: input, shape index: {}]
  %s6 = inlined_call_operand.hbm [shape: bf16[128,128], index: 6, kind: input, shape index: {}]
  %s7 = inlined_call_operand.hbm [shape: f32[1,128], index: 7, kind: input, shape index: {}]
  %s8 = inlined_call_operand.hbm [shape: bf16[1024,128], index: 8, kind: input, shape index: {}]
  %s9 = inlined_call_operand.hbm [shape: f32[1,128], index: 9, kind: input, shape index: {}]
  %s10 = inlined_call_operand.hbm [shape: bf16[128,256], index: 10, kind: input, shape index: {}]
  %s11 = inlined_call_operand.hbm [shape: f32[1,256], index: 11, kind: input, shape index: {}]
  %s12 = inlined_call_operand.hbm [shape: bf16[256,128], index: 12, kind: input, shape index: {}]
  %s13 = inlined_call_operand.hbm [shape: f32[1,128], index: 13, kind: input, shape index: {}]
  %s14 = inlined_call_operand.vmem [shape: f32[8,128], index: 14, kind: output, shape index: {}]
  %s15 = sld [smem:[#allocation0]]
  $region114: #{fused_forward.1} parent=0
    _
  %s17 = ssub.s32 1, %s15
  %s18 = scalar_select 0, %s17, %s15
  $region1: #{fused_forward.1} parent=0
    #allocation2 [shape = 'u8[2048]{0}', space=vmem, size = 0x800, scoped, tag = 'input window, operand 2, single buffered']
    #allocation3 [shape = 's32[1]{0}', space=sflag, size = 0x4, scoped, tag = 'scoped memory for fused_forward.1']
    #allocation4 [shape = 'u8[512]{0}', space=vmem, size = 0x400, scoped, tag = 'input window, operand 3, single buffered']
    #allocation5 [shape = 's32[1]{0}', space=sflag, size = 0x4, scoped, tag = 'scoped memory for fused_forward.1']
    #allocation6 [shape = 'u8[1572864]{0}', space=vmem, size = 0x180000, scoped, tag = 'input window, operand 4, single buffered']
    #allocation7 [shape = 'u8[4096]{0}', space=vmem, size = 0x1000, scoped, tag = 'input window, operand 5, single buffered']
    #allocation8 [shape = 's32[1]{0}', space=sflag, size = 0x4, scoped, tag = 'scoped memory for fused_forward.1']
    #allocation9 [shape = 'u8[32768]{0}', space=vmem, size = 0x8000, scoped, tag = 'input window, operand 6, single buffered']
    #allocation10 [shape = 'u8[512]{0}', space=vmem, size = 0x400, scoped, tag = 'input window, operand 7, single buffered']
    #allocation11 [shape = 's32[1]{0}', space=sflag, size = 0x4, scoped, tag = 'scoped memory for fused_forward.1']
    #allocation12 [shape = 'u8[262144]{0}', space=vmem, size = 0x40000, scoped, tag = 'input window, operand 8, single buffered']
    #allocation13 [shape = 'u8[512]{0}', space=vmem, size = 0x400, scoped, tag = 'input window, operand 9, single buffered']
    #allocation14 [shape = 's32[1]{0}', space=sflag, size = 0x4, scoped, tag = 'scoped memory for fused_forward.1']
    #allocation15 [shape = 'u8[65536]{0}', space=vmem, size = 0x10000, scoped, tag = 'input window, operand 10, single buffered']
    #allocation16 [shape = 'u8[1024]{0}', space=vmem, size = 0x400, scoped, tag = 'input window, operand 11, single buffered']
    #allocation17 [shape = 's32[1]{0}', space=sflag, size = 0x4, scoped, tag = 'scoped memory for fused_forward.1']
    #allocation18 [shape = 'u8[65536]{0}', space=vmem, size = 0x10000, scoped, tag = 'input window, operand 12, single buffered']
    #allocation19 [shape = 'u8[512]{0}', space=vmem, size = 0x400, scoped, tag = 'input window, operand 13, single buffered']
    #allocation20 [shape = 's32[1]{0}', space=sflag, size = 0x4, scoped, tag = 'scoped memory for fused_forward.1']
    %19 = vsyncpa [#allocation3], 0
    %20 = vsyncpa [#allocation5], 0
    %21 = vsyncpa [#allocation8], 0
    %22 = vsyncpa [#allocation11], 0
    %23 = vsyncpa [#allocation14], 0
    %24 = vsyncpa [#allocation17], 0
    %25 = vsyncpa [#allocation20], 0
    // Predicated region
    $region2: #{fused_forward.1} parent=1 // pred_check
      _
    $region3: #{fused_forward.1} parent=1 // pred_check_branch
      %27 = sbr.rel (0) target = $region5
    $region4: #{fused_forward.1} parent=1 // pred_region
      _
    $region5: #{fused_forward.1} parent=1 // pred_fallthru
      _
    // Predicated region
    $region6: #{fused_forward.1} parent=1 // pred_check
      _
    $region7: #{fused_forward.1} parent=1 // pred_check_branch
      %29 = sbr.rel (0) target = $region9
    $region8: #{fused_forward.1} parent=1 // pred_region
      _
    $region9: #{fused_forward.1} parent=1 // pred_fallthru
      _
    // Predicated region
    $region10: #{fused_forward.1} parent=1 // pred_check
      _
    $region11: #{fused_forward.1} parent=1 // pred_check_branch
      %31 = sbr.rel (0) target = $region13
    $region12: #{fused_forward.1} parent=1 // pred_region
      %s33 = ssub.s32 64, 64
      %34 = vsyncadd [#allocation3], %s33
      %s36 = sshll.u32 [#allocation2], 4
      %s37 = int_to_ptr.vmem [resolvable:$true] %s36
      %39 = dma.hbm_to_vmem [thread:$0]  %s2, 64, %s37, [#allocation3]
    $region13: #{fused_forward.1} parent=1 // pred_fallthru
      _
    // Predicated region
    $region14: #{fused_forward.1} parent=1 // pred_check
      _
    $region15: #{fused_forward.1} parent=1 // pred_check_branch
      %41 = sbr.rel (0) target = $region17
    $region16: #{fused_forward.1} parent=1 // pred_region
      %s43 = ssub.s32 16, 16
      %44 = vsyncadd [#allocation5], %s43
      %s46 = sshll.u32 [#allocation4], 4
      %s47 = int_to_ptr.vmem [resolvable:$true] %s46
      %49 = dma.hbm_to_vmem [thread:$0]  %s3, 16, %s47, [#allocation5]
    $region17: #{fused_forward.1} parent=1 // pred_fallthru
      _
    // Predicated region
    $region18: #{fused_forward.1} parent=1 // pred_check
      _
    $region19: #{fused_forward.1} parent=1 // pred_check_branch
      %51 = sbr.rel (0) target = $region21
    $region20: #{fused_forward.1} parent=1 // pred_region
      %s53 = ssub.s32 49152, 49152
      %54 = vsyncadd [#allocation5], %s53
      %s55 = sshll.u32 [#allocation6], 4
      %s56 = int_to_ptr.vmem [resolvable:$true] %s55
      %61 = dma.hbm_to_vmem [thread:$0]  %s4, 49152, %s56, [#allocation5], 512, 512, 32
    $region21: #{fused_forward.1} parent=1 // pred_fallthru
      _
    // Predicated region
    $region22: #{fused_forward.1} parent=1 // pred_check
      _
    $region23: #{fused_forward.1} parent=1 // pred_check_branch
      %63 = sbr.rel (0) target = $region25
    $region24: #{fused_forward.1} parent=1 // pred_region
      %s65 = ssub.s32 128, 128
      %66 = vsyncadd [#allocation8], %s65
      %s68 = sshll.u32 [#allocation7], 4
      %s69 = int_to_ptr.vmem [resolvable:$true] %s68
      %71 = dma.hbm_to_vmem [thread:$0]  %s5, 128, %s69, [#allocation8]
    $region25: #{fused_forward.1} parent=1 // pred_fallthru
      _
    // Predicated region
    $region26: #{fused_forward.1} parent=1 // pred_check
      _
    $region27: #{fused_forward.1} parent=1 // pred_check_branch
      %73 = sbr.rel (0) target = $region29
    $region28: #{fused_forward.1} parent=1 // pred_region
      %s75 = ssub.s32 1024, 1024
      %76 = vsyncadd [#allocation8], %s75
      %s77 = sshll.u32 [#allocation9], 4
      %s78 = int_to_ptr.vmem [resolvable:$true] %s77
      %83 = dma.hbm_to_vmem [thread:$0]  %s6, 1024, %s78, [#allocation8], 64, 64, 4
    $region29: #{fused_forward.1} parent=1 // pred_fallthru
      _
    // Predicated region
    $region30: #{fused_forward.1} parent=1 // pred_check
      _
    $region31: #{fused_forward.1} parent=1 // pred_check_branch
      %85 = sbr.rel (0) target = $region33
    $region32: #{fused_forward.1} parent=1 // pred_region
      %s87 = ssub.s32 16, 16
      %88 = vsyncadd [#allocation11], %s87
      %s90 = sshll.u32 [#allocation10], 4
      %s91 = int_to_ptr.vmem [resolvable:$true] %s90
      %93 = dma.hbm_to_vmem [thread:$0]  %s7, 16, %s91, [#allocation11]
    $region33: #{fused_forward.1} parent=1 // pred_fallthru
      _
    // Predicated region
    $region34: #{fused_forward.1} parent=1 // pred_check
      _
    $region35: #{fused_forward.1} parent=1 // pred_check_branch
      %95 = sbr.rel (0) target = $region37
    $region36: #{fused_forward.1} parent=1 // pred_region
      %s97 = ssub.s32 8192, 8192
      %98 = vsyncadd [#allocation11], %s97
      %s99 = sshll.u32 [#allocation12], 4
      %s100 = int_to_ptr.vmem [resolvable:$true] %s99
      %105 = dma.hbm_to_vmem [thread:$0]  %s8, 8192, %s100, [#allocation11], 64, 64, 4
    $region37: #{fused_forward.1} parent=1 // pred_fallthru
      _
    // Predicated region
    $region38: #{fused_forward.1} parent=1 // pred_check
      _
    $region39: #{fused_forward.1} parent=1 // pred_check_branch
      %107 = sbr.rel (0) target = $region41
    $region40: #{fused_forward.1} parent=1 // pred_region
      %s109 = ssub.s32 16, 16
      %110 = vsyncadd [#allocation14], %s109
      %s112 = sshll.u32 [#allocation13], 4
      %s113 = int_to_ptr.vmem [resolvable:$true] %s112
      %115 = dma.hbm_to_vmem [thread:$0]  %s9, 16, %s113, [#allocation14]
    $region41: #{fused_forward.1} parent=1 // pred_fallthru
      _
    // Predicated region
    $region42: #{fused_forward.1} parent=1 // pred_check
      _
    $region43: #{fused_forward.1} parent=1 // pred_check_branch
      %117 = sbr.rel (0) target = $region45
    $region44: #{fused_forward.1} parent=1 // pred_region
      %s119 = ssub.s32 2048, 2048
      %120 = vsyncadd [#allocation14], %s119
      %s121 = sshll.u32 [#allocation15], 4
      %s122 = int_to_ptr.vmem [resolvable:$true] %s121
      %127 = dma.hbm_to_vmem [thread:$0]  %s10, 2048, %s122, [#allocation14], 128, 128, 8
    $region45: #{fused_forward.1} parent=1 // pred_fallthru
      _
    // Predicated region
    $region46: #{fused_forward.1} parent=1 // pred_check
      _
    $region47: #{fused_forward.1} parent=1 // pred_check_branch
      %129 = sbr.rel (0) target = $region49
    $region48: #{fused_forward.1} parent=1 // pred_region
      %s131 = ssub.s32 32, 32
      %132 = vsyncadd [#allocation17], %s131
      %s134 = sshll.u32 [#allocation16], 4
      %s135 = int_to_ptr.vmem [resolvable:$true] %s134
      %137 = dma.hbm_to_vmem [thread:$0]  %s11, 32, %s135, [#allocation17]
    $region49: #{fused_forward.1} parent=1 // pred_fallthru
      _
    // Predicated region
    $region50: #{fused_forward.1} parent=1 // pred_check
      _
    $region51: #{fused_forward.1} parent=1 // pred_check_branch
      %139 = sbr.rel (0) target = $region53
    $region52: #{fused_forward.1} parent=1 // pred_region
      %s141 = ssub.s32 2048, 2048
      %142 = vsyncadd [#allocation17], %s141
      %s143 = sshll.u32 [#allocation18], 4
      %s144 = int_to_ptr.vmem [resolvable:$true] %s143
      %149 = dma.hbm_to_vmem [thread:$0]  %s12, 2048, %s144, [#allocation17], 64, 64, 4
    $region53: #{fused_forward.1} parent=1 // pred_fallthru
      _
    // Predicated region
    $region54: #{fused_forward.1} parent=1 // pred_check
      _
    $region55: #{fused_forward.1} parent=1 // pred_check_branch
      %151 = sbr.rel (0) target = $region57
    $region56: #{fused_forward.1} parent=1 // pred_region
      %s153 = ssub.s32 16, 16
      %154 = vsyncadd [#allocation20], %s153
      %s156 = sshll.u32 [#allocation19], 4
      %s157 = int_to_ptr.vmem [resolvable:$true] %s156
      %159 = dma.hbm_to_vmem [thread:$0]  %s13, 16, %s157, [#allocation20]
    $region57: #{fused_forward.1} parent=1 // pred_fallthru
      _
    // Predicated region
    $region58: #{fused_forward.1} parent=1 // pred_check
      _
    $region59: #{fused_forward.1} parent=1 // pred_check_branch
      %161 = sbr.rel (0) target = $region61
    $region60: #{fused_forward.1} parent=1 // pred_region
      %162 = dma.done [#allocation3], 64
    $region61: #{fused_forward.1} parent=1 // pred_fallthru
      _
    // Predicated region
    $region62: #{fused_forward.1} parent=1 // pred_check
      _
    $region63: #{fused_forward.1} parent=1 // pred_check_branch
      %164 = sbr.rel (0) target = $region65
    $region64: #{fused_forward.1} parent=1 // pred_region
      %165 = dma.done [#allocation5], 16
    $region65: #{fused_forward.1} parent=1 // pred_fallthru
      _
    // Predicated region
    $region66: #{fused_forward.1} parent=1 // pred_check
      _
    $region67: #{fused_forward.1} parent=1 // pred_check_branch
      %167 = sbr.rel (0) target = $region69
    $region68: #{fused_forward.1} parent=1 // pred_region
      %168 = dma.done [#allocation5], 49152
    $region69: #{fused_forward.1} parent=1 // pred_fallthru
      _
    // Predicated region
    $region70: #{fused_forward.1} parent=1 // pred_check
      _
    $region71: #{fused_forward.1} parent=1 // pred_check_branch
      %170 = sbr.rel (0) target = $region73
    $region72: #{fused_forward.1} parent=1 // pred_region
      %171 = dma.done [#allocation8], 128
    $region73: #{fused_forward.1} parent=1 // pred_fallthru
      _
    // Predicated region
    $region74: #{fused_forward.1} parent=1 // pred_check
      _
    $region75: #{fused_forward.1} parent=1 // pred_check_branch
      %173 = sbr.rel (0) target = $region77
    $region76: #{fused_forward.1} parent=1 // pred_region
      %174 = dma.done [#allocation8], 1024
    $region77: #{fused_forward.1} parent=1 // pred_fallthru
      _
    // Predicated region
    $region78: #{fused_forward.1} parent=1 // pred_check
      _
    $region79: #{fused_forward.1} parent=1 // pred_check_branch
      %176 = sbr.rel (0) target = $region81
    $region80: #{fused_forward.1} parent=1 // pred_region
      %177 = dma.done [#allocation11], 16
    $region81: #{fused_forward.1} parent=1 // pred_fallthru
      _
    // Predicated region
    $region82: #{fused_forward.1} parent=1 // pred_check
      _
    $region83: #{fused_forward.1} parent=1 // pred_check_branch
      %179 = sbr.rel (0) target = $region85
    $region84: #{fused_forward.1} parent=1 // pred_region
      %180 = dma.done [#allocation11], 8192
    $region85: #{fused_forward.1} parent=1 // pred_fallthru
      _
    // Predicated region
    $region86: #{fused_forward.1} parent=1 // pred_check
      _
    $region87: #{fused_forward.1} parent=1 // pred_check_branch
      %182 = sbr.rel (0) target = $region89
    $region88: #{fused_forward.1} parent=1 // pred_region
      %183 = dma.done [#allocation14], 16
    $region89: #{fused_forward.1} parent=1 // pred_fallthru
      _
    // Predicated region
    $region90: #{fused_forward.1} parent=1 // pred_check
      _
    $region91: #{fused_forward.1} parent=1 // pred_check_branch
      %185 = sbr.rel (0) target = $region93
    $region92: #{fused_forward.1} parent=1 // pred_region
      %186 = dma.done [#allocation14], 2048
    $region93: #{fused_forward.1} parent=1 // pred_fallthru
      _
    // Predicated region
    $region94: #{fused_forward.1} parent=1 // pred_check
      _
    $region95: #{fused_forward.1} parent=1 // pred_check_branch
      %188 = sbr.rel (0) target = $region97
    $region96: #{fused_forward.1} parent=1 // pred_region
      %189 = dma.done [#allocation17], 32
    $region97: #{fused_forward.1} parent=1 // pred_fallthru
      _
    // Predicated region
    $region98: #{fused_forward.1} parent=1 // pred_check
      _
    $region99: #{fused_forward.1} parent=1 // pred_check_branch
      %191 = sbr.rel (0) target = $region101
    $region100: #{fused_forward.1} parent=1 // pred_region
      %192 = dma.done [#allocation17], 2048
    $region101: #{fused_forward.1} parent=1 // pred_fallthru
      _
    // Predicated region
    $region102: #{fused_forward.1} parent=1 // pred_check
      _
    $region103: #{fused_forward.1} parent=1 // pred_check_branch
      %194 = sbr.rel (0) target = $region105
    $region104: #{fused_forward.1} parent=1 // pred_region
      %195 = dma.done [#allocation20], 16
    $region105: #{fused_forward.1} parent=1 // pred_fallthru
      _
    %v197 = vld [vmem:[%s0] sm:$0xf]
    %v198 = vld [vmem:[#allocation2] sm:$0xf]
    %v199 = vld [vmem:[#allocation4] sm:$0x1]
    %v201 = vlaneseq
    %v202 = vshrl.u32 %v201, 7
    %v203 = vsub.s32 0, %v202
    %v204 = vrot.slane %v199, %v203
    %vm206 = vcmask 64512
    %v208 = vsel %vm206, %v197, 0
    %vm210 = vcmask 1043456
    %v212 = vsel %vm210, %v198, 0
    %214 = vmatprep.subr.bf16.mxu0 0
    %215 = vmatpush1.bf16.msra.mxu0 0
    %216 = vmatprep.subr.bf16.mxu0 0
    %217 = vmatpush1.bf16.msra.mxu0 0
    %218 = vmatprep.subr.bf16.mxu0 0
    %219 = vmatpush1.bf16.msra.mxu0 0
    %220 = vmatprep.subr.bf16.mxu0 0
    %221 = vmatpush1.bf16.msra.mxu0 0
    %222 = vmatprep.subr.bf16.mxu0 0
    %223 = vmatpush1.bf16.msra.mxu0 0
    %224 = vmatprep.subr.bf16.mxu0 0
    %225 = vmatpush1.bf16.msra.mxu0 0
    %226 = vmatprep.subr.bf16.mxu0 0
    %227 = vmatpush1.bf16.msra.mxu0 0
    %228 = vmatprep.subr.bf16.mxu0 0
    %229 = vmatpush1.bf16.msra.mxu0 %v212
    %230 = vmatprep.subr.bf16.mxu0 0
    %231 = vmatpush2.bf16.msra.mxu0 0
    %232 = vmatprep.subr.bf16.mxu0 0
    %233 = vmatpush2.bf16.msra.mxu0 0
    %234 = vmatprep.subr.bf16.mxu0 0
    %235 = vmatpush2.bf16.msra.mxu0 0
    %236 = vmatprep.subr.bf16.mxu0 0
    %237 = vmatpush2.bf16.msra.mxu0 0
    %238 = vmatprep.subr.bf16.mxu0 0
    %239 = vmatpush2.bf16.msra.mxu0 0
    %240 = vmatprep.subr.bf16.mxu0 0
    %241 = vmatpush2.bf16.msra.mxu0 0
    %242 = vmatprep.subr.bf16.mxu0 0
    %243 = vmatpush2.bf16.msra.mxu0 0
    %244 = vmatprep.subr.bf16.mxu0 0
    %245 = vmatpush2.bf16.msra.mxu0 0
    %246 = vmatprep.mubr.bf16.mxu0 0
    %247 = vmatmul.mubr.bf16.gmra.mxu0 %v208
    %v248 = vpop.f32.mrf.mxu0
    %v249 = vadd.f32 %v204, %v248
    %v250 = vpop.f32.mrf.mxu0
    %v251 = vpop.f32.mrf.mxu0
    %v252 = vpop.f32.mrf.mxu0
    %253 = vdwg.mxu0
    %v254 = vld [vmem:[%s1] sm:$0xff]
    %v255 = vld [vmem:[%s1 + $0x8] sm:$0xff]
    %v256 = vld [vmem:[%s1 + $0x10] sm:$0xff]
    %v257 = vld [vmem:[#allocation6] sm:$0xff]
    %v258 = vld [vmem:[#allocation6 + $0x8] sm:$0xff]
    %v259 = vld [vmem:[#allocation6 + $0x10] sm:$0xff]
    %v260 = vld [vmem:[#allocation6 + $0x18] sm:$0xff]
    %v261 = vld [vmem:[#allocation6 + $0x20] sm:$0xff]
    %v262 = vld [vmem:[#allocation6 + $0x28] sm:$0xff]
    %v263 = vld [vmem:[#allocation6 + $0x30] sm:$0xff]
    %v264 = vld [vmem:[#allocation6 + $0x38] sm:$0xff]
    %v265 = vld [vmem:[#allocation6 + $0x40] sm:$0xff]
    %v266 = vld [vmem:[#allocation6 + $0x48] sm:$0xff]
    %v267 = vld [vmem:[#allocation6 + $0x50] sm:$0xff]
    %v268 = vld [vmem:[#allocation6 + $0x58] sm:$0xff]
    %v269 = vld [vmem:[#allocation6 + $0x60] sm:$0xff]
    %v270 = vld [vmem:[#allocation6 + $0x68] sm:$0xff]
    %v271 = vld [vmem:[#allocation6 + $0x70] sm:$0xff]
    %v272 = vld [vmem:[#allocation6 + $0x78] sm:$0xff]
    %v273 = vld [vmem:[#allocation6 + $0x80] sm:$0xff]
    %v274 = vld [vmem:[#allocation6 + $0x88] sm:$0xff]
    %v275 = vld [vmem:[#allocation6 + $0x90] sm:$0xff]
    %v276 = vld [vmem:[#allocation6 + $0x98] sm:$0xff]
    %v277 = vld [vmem:[#allocation6 + $0xa0] sm:$0xff]
    %v278 = vld [vmem:[#allocation6 + $0xa8] sm:$0xff]
    %v279 = vld [vmem:[#allocation6 + $0xb0] sm:$0xff]
    %v280 = vld [vmem:[#allocation6 + $0xb8] sm:$0xff]
    %v281 = vld [vmem:[#allocation6 + $0xc0] sm:$0xff]
    %v282 = vld [vmem:[#allocation6 + $0xc8] sm:$0xff]
    %v283 = vld [vmem:[#allocation6 + $0xd0] sm:$0xff]
    %v284 = vld [vmem:[#allocation6 + $0xd8] sm:$0xff]
    %v285 = vld [vmem:[#allocation6 + $0xe0] sm:$0xff]
    %v286 = vld [vmem:[#allocation6 + $0xe8] sm:$0xff]
    %v287 = vld [vmem:[#allocation6 + $0xf0] sm:$0xff]
    %v288 = vld [vmem:[#allocation6 + $0xf8] sm:$0xff]
    %v289 = vld [vmem:[#allocation6 + $0x100] sm:$0xff]
    %v290 = vld [vmem:[#allocation6 + $0x108] sm:$0xff]
    %v291 = vld [vmem:[#allocation6 + $0x110] sm:$0xff]
    %v292 = vld [vmem:[#allocation6 + $0x118] sm:$0xff]
    %v293 = vld [vmem:[#allocation6 + $0x120] sm:$0xff]
    %v294 = vld [vmem:[#allocation6 + $0x128] sm:$0xff]
    %v295 = vld [vmem:[#allocation6 + $0x130] sm:$0xff]
    %v296 = vld [vmem:[#allocation6 + $0x138] sm:$0xff]
    %v297 = vld [vmem:[#allocation6 + $0x140] sm:$0xff]
    %v298 = vld [vmem:[#allocation6 + $0x148] sm:$0xff]
    %v299 = vld [vmem:[#allocation6 + $0x150] sm:$0xff]
    %v300 = vld [vmem:[#allocation6 + $0x158] sm:$0xff]
    %v301 = vld [vmem:[#allocation6 + $0x160] sm:$0xff]
    %v302 = vld [vmem:[#allocation6 + $0x168] sm:$0xff]
    %v303 = vld [vmem:[#allocation6 + $0x170] sm:$0xff]
    %v304 = vld [vmem:[#allocation6 + $0x178] sm:$0xff]
    %v305 = vld [vmem:[#allocation6 + $0x180] sm:$0xff]
    %v306 = vld [vmem:[#allocation6 + $0x188] sm:$0xff]
    %v307 = vld [vmem:[#allocation6 + $0x190] sm:$0xff]
    %v308 = vld [vmem:[#allocation6 + $0x198] sm:$0xff]
    %v309 = vld [vmem:[#allocation6 + $0x1a0] sm:$0xff]
    %v310 = vld [vmem:[#allocation6 + $0x1a8] sm:$0xff]
    %v311 = vld [vmem:[#allocation6 + $0x1b0] sm:$0xff]
    %v312 = vld [vmem:[#allocation6 + $0x1b8] sm:$0xff]
    %v313 = vld [vmem:[#allocation6 + $0x1c0] sm:$0xff]
    %v314 = vld [vmem:[#allocation6 + $0x1c8] sm:$0xff]
    %v315 = vld [vmem:[#allocation6 + $0x1d0] sm:$0xff]
    %v316 = vld [vmem:[#allocation6 + $0x1d8] sm:$0xff]
    %v317 = vld [vmem:[#allocation6 + $0x1e0] sm:$0xff]
    %v318 = vld [vmem:[#allocation6 + $0x1e8] sm:$0xff]
    %v319 = vld [vmem:[#allocation6 + $0x1f0] sm:$0xff]
    %v320 = vld [vmem:[#allocation6 + $0x1f8] sm:$0xff]
    %v321 = vld [vmem:[#allocation6 + $0x200] sm:$0xff]
    %v322 = vld [vmem:[#allocation6 + $0x208] sm:$0xff]
    %v323 = vld [vmem:[#allocation6 + $0x210] sm:$0xff]
    %v324 = vld [vmem:[#allocation6 + $0x218] sm:$0xff]
    %v325 = vld [vmem:[#allocation6 + $0x220] sm:$0xff]
    %v326 = vld [vmem:[#allocation6 + $0x228] sm:$0xff]
    %v327 = vld [vmem:[#allocation6 + $0x230] sm:$0xff]
    %v328 = vld [vmem:[#allocation6 + $0x238] sm:$0xff]
    %v329 = vld [vmem:[#allocation6 + $0x240] sm:$0xff]
    %v330 = vld [vmem:[#allocation6 + $0x248] sm:$0xff]
    %v331 = vld [vmem:[#allocation6 + $0x250] sm:$0xff]
    %v332 = vld [vmem:[#allocation6 + $0x258] sm:$0xff]
    %v333 = vld [vmem:[#allocation6 + $0x260] sm:$0xff]
    %v334 = vld [vmem:[#allocation6 + $0x268] sm:$0xff]
    %v335 = vld [vmem:[#allocation6 + $0x270] sm:$0xff]
    %v336 = vld [vmem:[#allocation6 + $0x278] sm:$0xff]
    %v337 = vld [vmem:[#allocation6 + $0x280] sm:$0xff]
    %v338 = vld [vmem:[#allocation6 + $0x288] sm:$0xff]
    %v339 = vld [vmem:[#allocation6 + $0x290] sm:$0xff]
    %v340 = vld [vmem:[#allocation6 + $0x298] sm:$0xff]
    %v341 = vld [vmem:[#allocation6 + $0x2a0] sm:$0xff]
    %v342 = vld [vmem:[#allocation6 + $0x2a8] sm:$0xff]
    %v343 = vld [vmem:[#allocation6 + $0x2b0] sm:$0xff]
    %v344 = vld [vmem:[#allocation6 + $0x2b8] sm:$0xff]
    %v345 = vld [vmem:[#allocation6 + $0x2c0] sm:$0xff]
    %v346 = vld [vmem:[#allocation6 + $0x2c8] sm:$0xff]
    %v347 = vld [vmem:[#allocation6 + $0x2d0] sm:$0xff]
    %v348 = vld [vmem:[#allocation6 + $0x2d8] sm:$0xff]
    %v349 = vld [vmem:[#allocation6 + $0x2e0] sm:$0xff]
    %v350 = vld [vmem:[#allocation6 + $0x2e8] sm:$0xff]
    %v351 = vld [vmem:[#allocation6 + $0x2f0] sm:$0xff]
    %v352 = vld [vmem:[#allocation6 + $0x2f8] sm:$0xff]
    %v353 = vld [vmem:[#allocation6 + $0x300] sm:$0xff]
    %v354 = vld [vmem:[#allocation6 + $0x308] sm:$0xff]
    %v355 = vld [vmem:[#allocation6 + $0x310] sm:$0xff]
    %v356 = vld [vmem:[#allocation6 + $0x318] sm:$0xff]
    %v357 = vld [vmem:[#allocation6 + $0x320] sm:$0xff]
    %v358 = vld [vmem:[#allocation6 + $0x328] sm:$0xff]
    %v359 = vld [vmem:[#allocation6 + $0x330] sm:$0xff]
    %v360 = vld [vmem:[#allocation6 + $0x338] sm:$0xff]
    %v361 = vld [vmem:[#allocation6 + $0x340] sm:$0xff]
    %v362 = vld [vmem:[#allocation6 + $0x348] sm:$0xff]
    %v363 = vld [vmem:[#allocation6 + $0x350] sm:$0xff]
    %v364 = vld [vmem:[#allocation6 + $0x358] sm:$0xff]
    %v365 = vld [vmem:[#allocation6 + $0x360] sm:$0xff]
    %v366 = vld [vmem:[#allocation6 + $0x368] sm:$0xff]
    %v367 = vld [vmem:[#allocation6 + $0x370] sm:$0xff]
    %v368 = vld [vmem:[#allocation6 + $0x378] sm:$0xff]
    %v369 = vld [vmem:[#allocation6 + $0x380] sm:$0xff]
    %v370 = vld [vmem:[#allocation6 + $0x388] sm:$0xff]
    %v371 = vld [vmem:[#allocation6 + $0x390] sm:$0xff]
    %v372 = vld [vmem:[#allocation6 + $0x398] sm:$0xff]
    %v373 = vld [vmem:[#allocation6 + $0x3a0] sm:$0xff]
    %v374 = vld [vmem:[#allocation6 + $0x3a8] sm:$0xff]
    %v375 = vld [vmem:[#allocation6 + $0x3b0] sm:$0xff]
    %v376 = vld [vmem:[#allocation6 + $0x3b8] sm:$0xff]
    %v377 = vld [vmem:[#allocation6 + $0x3c0] sm:$0xff]
    %v378 = vld [vmem:[#allocation6 + $0x3c8] sm:$0xff]
    %v379 = vld [vmem:[#allocation6 + $0x3d0] sm:$0xff]
    %v380 = vld [vmem:[#allocation6 + $0x3d8] sm:$0xff]
    %v381 = vld [vmem:[#allocation6 + $0x3e0] sm:$0xff]
    %v382 = vld [vmem:[#allocation6 + $0x3e8] sm:$0xff]
    %v383 = vld [vmem:[#allocation6 + $0x3f0] sm:$0xff]
    %v384 = vld [vmem:[#allocation6 + $0x3f8] sm:$0xff]
    %v385 = vld [vmem:[#allocation6 + $0x400] sm:$0xff]
    %v386 = vld [vmem:[#allocation6 + $0x408] sm:$0xff]
    %v387 = vld [vmem:[#allocation6 + $0x410] sm:$0xff]
    %v388 = vld [vmem:[#allocation6 + $0x418] sm:$0xff]
    %v389 = vld [vmem:[#allocation6 + $0x420] sm:$0xff]
    %v390 = vld [vmem:[#allocation6 + $0x428] sm:$0xff]
    %v391 = vld [vmem:[#allocation6 + $0x430] sm:$0xff]
    %v392 = vld [vmem:[#allocation6 + $0x438] sm:$0xff]
    %v393 = vld [vmem:[#allocation6 + $0x440] sm:$0xff]
    %v394 = vld [vmem:[#allocation6 + $0x448] sm:$0xff]
    %v395 = vld [vmem:[#allocation6 + $0x450] sm:$0xff]
    %v396 = vld [vmem:[#allocation6 + $0x458] sm:$0xff]
    %v397 = vld [vmem:[#allocation6 + $0x460] sm:$0xff]
    %v398 = vld [vmem:[#allocation6 + $0x468] sm:$0xff]
    %v399 = vld [vmem:[#allocation6 + $0x470] sm:$0xff]
    %v400 = vld [vmem:[#allocation6 + $0x478] sm:$0xff]
    %v401 = vld [vmem:[#allocation6 + $0x480] sm:$0xff]
    %v402 = vld [vmem:[#allocation6 + $0x488] sm:$0xff]
    %v403 = vld [vmem:[#allocation6 + $0x490] sm:$0xff]
    %v404 = vld [vmem:[#allocation6 + $0x498] sm:$0xff]
    %v405 = vld [vmem:[#allocation6 + $0x4a0] sm:$0xff]
    %v406 = vld [vmem:[#allocation6 + $0x4a8] sm:$0xff]
    %v407 = vld [vmem:[#allocation6 + $0x4b0] sm:$0xff]
    %v408 = vld [vmem:[#allocation6 + $0x4b8] sm:$0xff]
    %v409 = vld [vmem:[#allocation6 + $0x4c0] sm:$0xff]
    %v410 = vld [vmem:[#allocation6 + $0x4c8] sm:$0xff]
    %v411 = vld [vmem:[#allocation6 + $0x4d0] sm:$0xff]
    %v412 = vld [vmem:[#allocation6 + $0x4d8] sm:$0xff]
    %v413 = vld [vmem:[#allocation6 + $0x4e0] sm:$0xff]
    %v414 = vld [vmem:[#allocation6 + $0x4e8] sm:$0xff]
    %v415 = vld [vmem:[#allocation6 + $0x4f0] sm:$0xff]
    %v416 = vld [vmem:[#allocation6 + $0x4f8] sm:$0xff]
    %v417 = vld [vmem:[#allocation6 + $0x500] sm:$0xff]
    %v418 = vld [vmem:[#allocation6 + $0x508] sm:$0xff]
    %v419 = vld [vmem:[#allocation6 + $0x510] sm:$0xff]
    %v420 = vld [vmem:[#allocation6 + $0x518] sm:$0xff]
    %v421 = vld [vmem:[#allocation6 + $0x520] sm:$0xff]
    %v422 = vld [vmem:[#allocation6 + $0x528] sm:$0xff]
    %v423 = vld [vmem:[#allocation6 + $0x530] sm:$0xff]
    %v424 = vld [vmem:[#allocation6 + $0x538] sm:$0xff]
    %v425 = vld [vmem:[#allocation6 + $0x540] sm:$0xff]
    %v426 = vld [vmem:[#allocation6 + $0x548] sm:$0xff]
    %v427 = vld [vmem:[#allocation6 + $0x550] sm:$0xff]
    %v428 = vld [vmem:[#allocation6 + $0x558] sm:$0xff]
    %v429 = vld [vmem:[#allocation6 + $0x560] sm:$0xff]
    %v430 = vld [vmem:[#allocation6 + $0x568] sm:$0xff]
    %v431 = vld [vmem:[#allocation6 + $0x570] sm:$0xff]
    %v432 = vld [vmem:[#allocation6 + $0x578] sm:$0xff]
    %v433 = vld [vmem:[#allocation6 + $0x580] sm:$0xff]
    %v434 = vld [vmem:[#allocation6 + $0x588] sm:$0xff]
    %v435 = vld [vmem:[#allocation6 + $0x590] sm:$0xff]
    %v436 = vld [vmem:[#allocation6 + $0x598] sm:$0xff]
    %v437 = vld [vmem:[#allocation6 + $0x5a0] sm:$0xff]
    %v438 = vld [vmem:[#allocation6 + $0x5a8] sm:$0xff]
    %v439 = vld [vmem:[#allocation6 + $0x5b0] sm:$0xff]
    %v440 = vld [vmem:[#allocation6 + $0x5b8] sm:$0xff]
    %v441 = vld [vmem:[#allocation6 + $0x5c0] sm:$0xff]
    %v442 = vld [vmem:[#allocation6 + $0x5c8] sm:$0xff]
    %v443 = vld [vmem:[#allocation6 + $0x5d0] sm:$0xff]
    %v444 = vld [vmem:[#allocation6 + $0x5d8] sm:$0xff]
    %v445 = vld [vmem:[#allocation6 + $0x5e0] sm:$0xff]
    %v446 = vld [vmem:[#allocation6 + $0x5e8] sm:$0xff]
    %v447 = vld [vmem:[#allocation6 + $0x5f0] sm:$0xff]
    %v448 = vld [vmem:[#allocation6 + $0x5f8] sm:$0xff]
    %v449 = vld [vmem:[#allocation6 + $0x600] sm:$0xff]
    %v450 = vld [vmem:[#allocation6 + $0x608] sm:$0xff]
    %v451 = vld [vmem:[#allocation6 + $0x610] sm:$0xff]
    %v452 = vld [vmem:[#allocation6 + $0x618] sm:$0xff]
    %v453 = vld [vmem:[#allocation6 + $0x620] sm:$0xff]
    %v454 = vld [vmem:[#allocation6 + $0x628] sm:$0xff]
    %v455 = vld [vmem:[#allocation6 + $0x630] sm:$0xff]
    %v456 = vld [vmem:[#allocation6 + $0x638] sm:$0xff]
    %v457 = vld [vmem:[#allocation6 + $0x640] sm:$0xff]
    %v458 = vld [vmem:[#allocation6 + $0x648] sm:$0xff]
    %v459 = vld [vmem:[#allocation6 + $0x650] sm:$0xff]
    %v460 = vld [vmem:[#allocation6 + $0x658] sm:$0xff]
    %v461 = vld [vmem:[#allocation6 + $0x660] sm:$0xff]
    %v462 = vld [vmem:[#allocation6 + $0x668] sm:$0xff]
    %v463 = vld [vmem:[#allocation6 + $0x670] sm:$0xff]
    %v464 = vld [vmem:[#allocation6 + $0x678] sm:$0xff]
    %v465 = vld [vmem:[#allocation6 + $0x680] sm:$0xff]
    %v466 = vld [vmem:[#allocation6 + $0x688] sm:$0xff]
    %v467 = vld [vmem:[#allocation6 + $0x690] sm:$0xff]
    %v468 = vld [vmem:[#allocation6 + $0x698] sm:$0xff]
    %v469 = vld [vmem:[#allocation6 + $0x6a0] sm:$0xff]
    %v470 = vld [vmem:[#allocation6 + $0x6a8] sm:$0xff]
    %v471 = vld [vmem:[#allocation6 + $0x6b0] sm:$0xff]
    %v472 = vld [vmem:[#allocation6 + $0x6b8] sm:$0xff]
    %v473 = vld [vmem:[#allocation6 + $0x6c0] sm:$0xff]
    %v474 = vld [vmem:[#allocation6 + $0x6c8] sm:$0xff]
    %v475 = vld [vmem:[#allocation6 + $0x6d0] sm:$0xff]
    %v476 = vld [vmem:[#allocation6 + $0x6d8] sm:$0xff]
    %v477 = vld [vmem:[#allocation6 + $0x6e0] sm:$0xff]
    %v478 = vld [vmem:[#allocation6 + $0x6e8] sm:$0xff]
    %v479 = vld [vmem:[#allocation6 + $0x6f0] sm:$0xff]
    %v480 = vld [vmem:[#allocation6 + $0x6f8] sm:$0xff]
    %v481 = vld [vmem:[#allocation6 + $0x700] sm:$0xff]
    %v482 = vld [vmem:[#allocation6 + $0x708] sm:$0xff]
    %v483 = vld [vmem:[#allocation6 + $0x710] sm:$0xff]
    %v484 = vld [vmem:[#allocation6 + $0x718] sm:$0xff]
    %v485 = vld [vmem:[#allocation6 + $0x720] sm:$0xff]
    %v486 = vld [vmem:[#allocation6 + $0x728] sm:$0xff]
    %v487 = vld [vmem:[#allocation6 + $0x730] sm:$0xff]
    %v488 = vld [vmem:[#allocation6 + $0x738] sm:$0xff]
    %v489 = vld [vmem:[#allocation6 + $0x740] sm:$0xff]
    %v490 = vld [vmem:[#allocation6 + $0x748] sm:$0xff]
    %v491 = vld [vmem:[#allocation6 + $0x750] sm:$0xff]
    %v492 = vld [vmem:[#allocation6 + $0x758] sm:$0xff]
    %v493 = vld [vmem:[#allocation6 + $0x760] sm:$0xff]
    %v494 = vld [vmem:[#allocation6 + $0x768] sm:$0xff]
    %v495 = vld [vmem:[#allocation6 + $0x770] sm:$0xff]
    %v496 = vld [vmem:[#allocation6 + $0x778] sm:$0xff]
    %v497 = vld [vmem:[#allocation6 + $0x780] sm:$0xff]
    %v498 = vld [vmem:[#allocation6 + $0x788] sm:$0xff]
    %v499 = vld [vmem:[#allocation6 + $0x790] sm:$0xff]
    %v500 = vld [vmem:[#allocation6 + $0x798] sm:$0xff]
    %v501 = vld [vmem:[#allocation6 + $0x7a0] sm:$0xff]
    %v502 = vld [vmem:[#allocation6 + $0x7a8] sm:$0xff]
    %v503 = vld [vmem:[#allocation6 + $0x7b0] sm:$0xff]
    %v504 = vld [vmem:[#allocation6 + $0x7b8] sm:$0xff]
    %v505 = vld [vmem:[#allocation6 + $0x7c0] sm:$0xff]
    %v506 = vld [vmem:[#allocation6 + $0x7c8] sm:$0xff]
    %v507 = vld [vmem:[#allocation6 + $0x7d0] sm:$0xff]
    %v508 = vld [vmem:[#allocation6 + $0x7d8] sm:$0xff]
    %v509 = vld [vmem:[#allocation6 + $0x7e0] sm:$0xff]
    %v510 = vld [vmem:[#allocation6 + $0x7e8] sm:$0xff]
    %v511 = vld [vmem:[#allocation6 + $0x7f0] sm:$0xff]
    %v512 = vld [vmem:[#allocation6 + $0x7f8] sm:$0xff]
    %v513 = vld [vmem:[#allocation6 + $0x800] sm:$0xff]
    %v514 = vld [vmem:[#allocation6 + $0x808] sm:$0xff]
    %v515 = vld [vmem:[#allocation6 + $0x810] sm:$0xff]
    %v516 = vld [vmem:[#allocation6 + $0x818] sm:$0xff]
    %v517 = vld [vmem:[#allocation6 + $0x820] sm:$0xff]
    %v518 = vld [vmem:[#allocation6 + $0x828] sm:$0xff]
    %v519 = vld [vmem:[#allocation6 + $0x830] sm:$0xff]
    %v520 = vld [vmem:[#allocation6 + $0x838] sm:$0xff]
    %v521 = vld [vmem:[#allocation6 + $0x840] sm:$0xff]
    %v522 = vld [vmem:[#allocation6 + $0x848] sm:$0xff]
    %v523 = vld [vmem:[#allocation6 + $0x850] sm:$0xff]
    %v524 = vld [vmem:[#allocation6 + $0x858] sm:$0xff]
    %v525 = vld [vmem:[#allocation6 + $0x860] sm:$0xff]
    %v526 = vld [vmem:[#allocation6 + $0x868] sm:$0xff]
    %v527 = vld [vmem:[#allocation6 + $0x870] sm:$0xff]
    %v528 = vld [vmem:[#allocation6 + $0x878] sm:$0xff]
    %v529 = vld [vmem:[#allocation6 + $0x880] sm:$0xff]
    %v530 = vld [vmem:[#allocation6 + $0x888] sm:$0xff]
    %v531 = vld [vmem:[#allocation6 + $0x890] sm:$0xff]
    %v532 = vld [vmem:[#allocation6 + $0x898] sm:$0xff]
    %v533 = vld [vmem:[#allocation6 + $0x8a0] sm:$0xff]
    %v534 = vld [vmem:[#allocation6 + $0x8a8] sm:$0xff]
    %v535 = vld [vmem:[#allocation6 + $0x8b0] sm:$0xff]
    %v536 = vld [vmem:[#allocation6 + $0x8b8] sm:$0xff]
    %v537 = vld [vmem:[#allocation6 + $0x8c0] sm:$0xff]
    %v538 = vld [vmem:[#allocation6 + $0x8c8] sm:$0xff]
    %v539 = vld [vmem:[#allocation6 + $0x8d0] sm:$0xff]
    %v540 = vld [vmem:[#allocation6 + $0x8d8] sm:$0xff]
    %v541 = vld [vmem:[#allocation6 + $0x8e0] sm:$0xff]
    %v542 = vld [vmem:[#allocation6 + $0x8e8] sm:$0xff]
    %v543 = vld [vmem:[#allocation6 + $0x8f0] sm:$0xff]
    %v544 = vld [vmem:[#allocation6 + $0x8f8] sm:$0xff]
    %v545 = vld [vmem:[#allocation6 + $0x900] sm:$0xff]
    %v546 = vld [vmem:[#allocation6 + $0x908] sm:$0xff]
    %v547 = vld [vmem:[#allocation6 + $0x910] sm:$0xff]
    %v548 = vld [vmem:[#allocation6 + $0x918] sm:$0xff]
    %v549 = vld [vmem:[#allocation6 + $0x920] sm:$0xff]
    %v550 = vld [vmem:[#allocation6 + $0x928] sm:$0xff]
    %v551 = vld [vmem:[#allocation6 + $0x930] sm:$0xff]
    %v552 = vld [vmem:[#allocation6 + $0x938] sm:$0xff]
    %v553 = vld [vmem:[#allocation6 + $0x940] sm:$0xff]
    %v554 = vld [vmem:[#allocation6 + $0x948] sm:$0xff]
    %v555 = vld [vmem:[#allocation6 + $0x950] sm:$0xff]
    %v556 = vld [vmem:[#allocation6 + $0x958] sm:$0xff]
    %v557 = vld [vmem:[#allocation6 + $0x960] sm:$0xff]
    %v558 = vld [vmem:[#allocation6 + $0x968] sm:$0xff]
    %v559 = vld [vmem:[#allocation6 + $0x970] sm:$0xff]
    %v560 = vld [vmem:[#allocation6 + $0x978] sm:$0xff]
    %v561 = vld [vmem:[#allocation6 + $0x980] sm:$0xff]
    %v562 = vld [vmem:[#allocation6 + $0x988] sm:$0xff]
    %v563 = vld [vmem:[#allocation6 + $0x990] sm:$0xff]
    %v564 = vld [vmem:[#allocation6 + $0x998] sm:$0xff]
    %v565 = vld [vmem:[#allocation6 + $0x9a0] sm:$0xff]
    %v566 = vld [vmem:[#allocation6 + $0x9a8] sm:$0xff]
    %v567 = vld [vmem:[#allocation6 + $0x9b0] sm:$0xff]
    %v568 = vld [vmem:[#allocation6 + $0x9b8] sm:$0xff]
    %v569 = vld [vmem:[#allocation6 + $0x9c0] sm:$0xff]
    %v570 = vld [vmem:[#allocation6 + $0x9c8] sm:$0xff]
    %v571 = vld [vmem:[#allocation6 + $0x9d0] sm:$0xff]
    %v572 = vld [vmem:[#allocation6 + $0x9d8] sm:$0xff]
    %v573 = vld [vmem:[#allocation6 + $0x9e0] sm:$0xff]
    %v574 = vld [vmem:[#allocation6 + $0x9e8] sm:$0xff]
    %v575 = vld [vmem:[#allocation6 + $0x9f0] sm:$0xff]
    %v576 = vld [vmem:[#allocation6 + $0x9f8] sm:$0xff]
    %v577 = vld [vmem:[#allocation6 + $0xa00] sm:$0xff]
    %v578 = vld [vmem:[#allocation6 + $0xa08] sm:$0xff]
    %v579 = vld [vmem:[#allocation6 + $0xa10] sm:$0xff]
    %v580 = vld [vmem:[#allocation6 + $0xa18] sm:$0xff]
    %v581 = vld [vmem:[#allocation6 + $0xa20] sm:$0xff]
    %v582 = vld [vmem:[#allocation6 + $0xa28] sm:$0xff]
    %v583 = vld [vmem:[#allocation6 + $0xa30] sm:$0xff]
    %v584 = vld [vmem:[#allocation6 + $0xa38] sm:$0xff]
    %v585 = vld [vmem:[#allocation6 + $0xa40] sm:$0xff]
    %v586 = vld [vmem:[#allocation6 + $0xa48] sm:$0xff]
    %v587 = vld [vmem:[#allocation6 + $0xa50] sm:$0xff]
    %v588 = vld [vmem:[#allocation6 + $0xa58] sm:$0xff]
    %v589 = vld [vmem:[#allocation6 + $0xa60] sm:$0xff]
    %v590 = vld [vmem:[#allocation6 + $0xa68] sm:$0xff]
    %v591 = vld [vmem:[#allocation6 + $0xa70] sm:$0xff]
    %v592 = vld [vmem:[#allocation6 + $0xa78] sm:$0xff]
    %v593 = vld [vmem:[#allocation6 + $0xa80] sm:$0xff]
    %v594 = vld [vmem:[#allocation6 + $0xa88] sm:$0xff]
    %v595 = vld [vmem:[#allocation6 + $0xa90] sm:$0xff]
    %v596 = vld [vmem:[#allocation6 + $0xa98] sm:$0xff]
    %v597 = vld [vmem:[#allocation6 + $0xaa0] sm:$0xff]
    %v598 = vld [vmem:[#allocation6 + $0xaa8] sm:$0xff]
    %v599 = vld [vmem:[#allocation6 + $0xab0] sm:$0xff]
    %v600 = vld [vmem:[#allocation6 + $0xab8] sm:$0xff]
    %v601 = vld [vmem:[#allocation6 + $0xac0] sm:$0xff]
    %v602 = vld [vmem:[#allocation6 + $0xac8] sm:$0xff]
    %v603 = vld [vmem:[#allocation6 + $0xad0] sm:$0xff]
    %v604 = vld [vmem:[#allocation6 + $0xad8] sm:$0xff]
    %v605 = vld [vmem:[#allocation6 + $0xae0] sm:$0xff]
    %v606 = vld [vmem:[#allocation6 + $0xae8] sm:$0xff]
    %v607 = vld [vmem:[#allocation6 + $0xaf0] sm:$0xff]
    %v608 = vld [vmem:[#allocation6 + $0xaf8] sm:$0xff]
    %v609 = vld [vmem:[#allocation6 + $0xb00] sm:$0xff]
    %v610 = vld [vmem:[#allocation6 + $0xb08] sm:$0xff]
    %v611 = vld [vmem:[#allocation6 + $0xb10] sm:$0xff]
    %v612 = vld [vmem:[#allocation6 + $0xb18] sm:$0xff]
    %v613 = vld [vmem:[#allocation6 + $0xb20] sm:$0xff]
    %v614 = vld [vmem:[#allocation6 + $0xb28] sm:$0xff]
    %v615 = vld [vmem:[#allocation6 + $0xb30] sm:$0xff]
    %v616 = vld [vmem:[#allocation6 + $0xb38] sm:$0xff]
    %v617 = vld [vmem:[#allocation6 + $0xb40] sm:$0xff]
    %v618 = vld [vmem:[#allocation6 + $0xb48] sm:$0xff]
    %v619 = vld [vmem:[#allocation6 + $0xb50] sm:$0xff]
    %v620 = vld [vmem:[#allocation6 + $0xb58] sm:$0xff]
    %v621 = vld [vmem:[#allocation6 + $0xb60] sm:$0xff]
    %v622 = vld [vmem:[#allocation6 + $0xb68] sm:$0xff]
    %v623 = vld [vmem:[#allocation6 + $0xb70] sm:$0xff]
    %v624 = vld [vmem:[#allocation6 + $0xb78] sm:$0xff]
    %v625 = vld [vmem:[#allocation6 + $0xb80] sm:$0xff]
    %v626 = vld [vmem:[#allocation6 + $0xb88] sm:$0xff]
    %v627 = vld [vmem:[#allocation6 + $0xb90] sm:$0xff]
    %v628 = vld [vmem:[#allocation6 + $0xb98] sm:$0xff]
    %v629 = vld [vmem:[#allocation6 + $0xba0] sm:$0xff]
    %v630 = vld [vmem:[#allocation6 + $0xba8] sm:$0xff]
    %v631 = vld [vmem:[#allocation6 + $0xbb0] sm:$0xff]
    %v632 = vld [vmem:[#allocation6 + $0xbb8] sm:$0xff]
    %v633 = vld [vmem:[#allocation6 + $0xbc0] sm:$0xff]
    %v634 = vld [vmem:[#allocation6 + $0xbc8] sm:$0xff]
    %v635 = vld [vmem:[#allocation6 + $0xbd0] sm:$0xff]
    %v636 = vld [vmem:[#allocation6 + $0xbd8] sm:$0xff]
    %v637 = vld [vmem:[#allocation6 + $0xbe0] sm:$0xff]
    %v638 = vld [vmem:[#allocation6 + $0xbe8] sm:$0xff]
    %v639 = vld [vmem:[#allocation6 + $0xbf0] sm:$0xff]
    %v640 = vld [vmem:[#allocation6 + $0xbf8] sm:$0xff]
    %v641 = vld [vmem:[#allocation7] sm:$0xff]
    %v643 = vlaneseq
    %v644 = vshrl.u32 %v643, 7
    %v645 = vsub.s32 0, %v644
    %v646 = vrot.slane %v641, %v645
    %v647 = vlaneseq
    %v648 = vshrl.u32 %v647, 7
    %v649 = vsub.s32 1, %v648
    %v650 = vrot.slane %v641, %v649
    %v651 = vlaneseq
    %v652 = vshrl.u32 %v651, 7
    %v653 = vsub.s32 2, %v652
    %v654 = vrot.slane %v641, %v653
    %v655 = vlaneseq
    %v656 = vshrl.u32 %v655, 7
    %v657 = vsub.s32 3, %v656
    %v658 = vrot.slane %v641, %v657
    %v659 = vlaneseq
    %v660 = vshrl.u32 %v659, 7
    %v661 = vsub.s32 4, %v660
    %v662 = vrot.slane %v641, %v661
    %v663 = vlaneseq
    %v664 = vshrl.u32 %v663, 7
    %v665 = vsub.s32 5, %v664
    %v666 = vrot.slane %v641, %v665
    %v667 = vlaneseq
    %v668 = vshrl.u32 %v667, 7
    %v669 = vsub.s32 6, %v668
    %v670 = vrot.slane %v641, %v669
    %v671 = vlaneseq
    %v672 = vshrl.u32 %v671, 7
    %v673 = vsub.s32 7, %v672
    %v674 = vrot.slane %v641, %v673
    %v686 = vunpack.c.l.b16 %v254
    %v687 = vunpack.c.h.b16 %v254
    %v688 = vunpack.c.l.b16 %v255
    %v689 = vunpack.c.h.b16 %v255
    %v690 = vunpack.c.l.b16 %v256
    %v691 = vunpack.c.h.b16 %v256
    %v692 = vpack.c.b16 %v686, %v686
    %v693 = vpack.c.b16 %v687, %v687
    %v694 = vpack.c.b16 %v688, %v688
    %v695 = vpack.c.b16 %v689, %v689
    %v696 = vpack.c.b16 %v690, %v690
    %v697 = vpack.c.b16 %v691, %v691
    %v1088 = vunpack.c.l.b16 %v257
    %v1089 = vunpack.c.h.b16 %v257
    %v1090 = vunpack.c.l.b16 %v258
    %v1091 = vunpack.c.h.b16 %v258
    %v1092 = vunpack.c.l.b16 %v259
    %v1093 = vunpack.c.h.b16 %v259
    %v1094 = vunpack.c.l.b16 %v260
    %v1095 = vunpack.c.h.b16 %v260
    %v1096 = vunpack.c.l.b16 %v261
    %v1097 = vunpack.c.h.b16 %v261
    %v1098 = vunpack.c.l.b16 %v262
    %v1099 = vunpack.c.h.b16 %v262
    %v1100 = vunpack.c.l.b16 %v263
    %v1101 = vunpack.c.h.b16 %v263
    %v1102 = vunpack.c.l.b16 %v264
    %v1103 = vunpack.c.h.b16 %v264
    %v1104 = vunpack.c.l.b16 %v265
    %v1105 = vunpack.c.h.b16 %v265
    %v1106 = vunpack.c.l.b16 %v266
    %v1107 = vunpack.c.h.b16 %v266
    %v1108 = vunpack.c.l.b16 %v267
    %v1109 = vunpack.c.h.b16 %v267
    %v1110 = vunpack.c.l.b16 %v268
    %v1111 = vunpack.c.h.b16 %v268
    %v1112 = vunpack.c.l.b16 %v269
    %v1113 = vunpack.c.h.b16 %v269
    %v1114 = vunpack.c.l.b16 %v270
    %v1115 = vunpack.c.h.b16 %v270
    %v1116 = vunpack.c.l.b16 %v271
    %v1117 = vunpack.c.h.b16 %v271
    %v1118 = vunpack.c.l.b16 %v272
    %v1119 = vunpack.c.h.b16 %v272
    %v1120 = vunpack.c.l.b16 %v273
    %v1121 = vunpack.c.h.b16 %v273
    %v1122 = vunpack.c.l.b16 %v274
    %v1123 = vunpack.c.h.b16 %v274
    %v1124 = vunpack.c.l.b16 %v275
    %v1125 = vunpack.c.h.b16 %v275
    %v1126 = vunpack.c.l.b16 %v276
    %v1127 = vunpack.c.h.b16 %v276
    %v1128 = vunpack.c.l.b16 %v277
    %v1129 = vunpack.c.h.b16 %v277
    %v1130 = vunpack.c.l.b16 %v278
    %v1131 = vunpack.c.h.b16 %v278
    %v1132 = vunpack.c.l.b16 %v279
    %v1133 = vunpack.c.h.b16 %v279
    %v1134 = vunpack.c.l.b16 %v280
    %v1135 = vunpack.c.h.b16 %v280
    %v1136 = vunpack.c.l.b16 %v281
    %v1137 = vunpack.c.h.b16 %v281
    %v1138 = vunpack.c.l.b16 %v282
    %v1139 = vunpack.c.h.b16 %v282
    %v1140 = vunpack.c.l.b16 %v283
    %v1141 = vunpack.c.h.b16 %v283
    %v1142 = vunpack.c.l.b16 %v284
    %v1143 = vunpack.c.h.b16 %v284
    %v1144 = vunpack.c.l.b16 %v285
    %v1145 = vunpack.c.h.b16 %v285
    %v1146 = vunpack.c.l.b16 %v286
    %v1147 = vunpack.c.h.b16 %v286
    %v1148 = vunpack.c.l.b16 %v287
    %v1149 = vunpack.c.h.b16 %v287
    %v1150 = vunpack.c.l.b16 %v288
    %v1151 = vunpack.c.h.b16 %v288
    %v1152 = vunpack.c.l.b16 %v289
    %v1153 = vunpack.c.h.b16 %v289
    %v1154 = vunpack.c.l.b16 %v290
    %v1155 = vunpack.c.h.b16 %v290
    %v1156 = vunpack.c.l.b16 %v291
    %v1157 = vunpack.c.h.b16 %v291
    %v1158 = vunpack.c.l.b16 %v292
    %v1159 = vunpack.c.h.b16 %v292
    %v1160 = vunpack.c.l.b16 %v293
    %v1161 = vunpack.c.h.b16 %v293
    %v1162 = vunpack.c.l.b16 %v294
    %v1163 = vunpack.c.h.b16 %v294
    %v1164 = vunpack.c.l.b16 %v295
    %v1165 = vunpack.c.h.b16 %v295
    %v1166 = vunpack.c.l.b16 %v296
    %v1167 = vunpack.c.h.b16 %v296
    %v1168 = vunpack.c.l.b16 %v297
    %v1169 = vunpack.c.h.b16 %v297
    %v1170 = vunpack.c.l.b16 %v298
    %v1171 = vunpack.c.h.b16 %v298
    %v1172 = vunpack.c.l.b16 %v299
    %v1173 = vunpack.c.h.b16 %v299
    %v1174 = vunpack.c.l.b16 %v300
    %v1175 = vunpack.c.h.b16 %v300
    %v1176 = vunpack.c.l.b16 %v301
    %v1177 = vunpack.c.h.b16 %v301
    %v1178 = vunpack.c.l.b16 %v302
    %v1179 = vunpack.c.h.b16 %v302
    %v1180 = vunpack.c.l.b16 %v303
    %v1181 = vunpack.c.h.b16 %v303
    %v1182 = vunpack.c.l.b16 %v304
    %v1183 = vunpack.c.h.b16 %v304
    %v1184 = vunpack.c.l.b16 %v305
    %v1185 = vunpack.c.h.b16 %v305
    %v1186 = vunpack.c.l.b16 %v306
    %v1187 = vunpack.c.h.b16 %v306
    %v1188 = vunpack.c.l.b16 %v307
    %v1189 = vunpack.c.h.b16 %v307
    %v1190 = vunpack.c.l.b16 %v308
    %v1191 = vunpack.c.h.b16 %v308
    %v1192 = vunpack.c.l.b16 %v309
    %v1193 = vunpack.c.h.b16 %v309
    %v1194 = vunpack.c.l.b16 %v310
    %v1195 = vunpack.c.h.b16 %v310
    %v1196 = vunpack.c.l.b16 %v311
    %v1197 = vunpack.c.h.b16 %v311
    %v1198 = vunpack.c.l.b16 %v312
    %v1199 = vunpack.c.h.b16 %v312
    %v1200 = vunpack.c.l.b16 %v313
    %v1201 = vunpack.c.h.b16 %v313
    %v1202 = vunpack.c.l.b16 %v314
    %v1203 = vunpack.c.h.b16 %v314
    %v1204 = vunpack.c.l.b16 %v315
    %v1205 = vunpack.c.h.b16 %v315
    %v1206 = vunpack.c.l.b16 %v316
    %v1207 = vunpack.c.h.b16 %v316
    %v1208 = vunpack.c.l.b16 %v317
    %v1209 = vunpack.c.h.b16 %v317
    %v1210 = vunpack.c.l.b16 %v318
    %v1211 = vunpack.c.h.b16 %v318
    %v1212 = vunpack.c.l.b16 %v319
    %v1213 = vunpack.c.h.b16 %v319
    %v1214 = vunpack.c.l.b16 %v320
    %v1215 = vunpack.c.h.b16 %v320
    %v1216 = vunpack.c.l.b16 %v321
    %v1217 = vunpack.c.h.b16 %v321
    %v1218 = vunpack.c.l.b16 %v322
    %v1219 = vunpack.c.h.b16 %v322
    %v1220 = vunpack.c.l.b16 %v323
    %v1221 = vunpack.c.h.b16 %v323
    %v1222 = vunpack.c.l.b16 %v324
    %v1223 = vunpack.c.h.b16 %v324
    %v1224 = vunpack.c.l.b16 %v325
    %v1225 = vunpack.c.h.b16 %v325
    %v1226 = vunpack.c.l.b16 %v326
    %v1227 = vunpack.c.h.b16 %v326
    %v1228 = vunpack.c.l.b16 %v327
    %v1229 = vunpack.c.h.b16 %v327
    %v1230 = vunpack.c.l.b16 %v328
    %v1231 = vunpack.c.h.b16 %v328
    %v1232 = vunpack.c.l.b16 %v329
    %v1233 = vunpack.c.h.b16 %v329
    %v1234 = vunpack.c.l.b16 %v330
    %v1235 = vunpack.c.h.b16 %v330
    %v1236 = vunpack.c.l.b16 %v331
    %v1237 = vunpack.c.h.b16 %v331
    %v1238 = vunpack.c.l.b16 %v332
    %v1239 = vunpack.c.h.b16 %v332
    %v1240 = vunpack.c.l.b16 %v333
    %v1241 = vunpack.c.h.b16 %v333
    %v1242 = vunpack.c.l.b16 %v334
    %v1243 = vunpack.c.h.b16 %v334
    %v1244 = vunpack.c.l.b16 %v335
    %v1245 = vunpack.c.h.b16 %v335
    %v1246 = vunpack.c.l.b16 %v336
    %v1247 = vunpack.c.h.b16 %v336
    %v1248 = vunpack.c.l.b16 %v337
    %v1249 = vunpack.c.h.b16 %v337
    %v1250 = vunpack.c.l.b16 %v338
    %v1251 = vunpack.c.h.b16 %v338
    %v1252 = vunpack.c.l.b16 %v339
    %v1253 = vunpack.c.h.b16 %v339
    %v1254 = vunpack.c.l.b16 %v340
    %v1255 = vunpack.c.h.b16 %v340
    %v1256 = vunpack.c.l.b16 %v341
    %v1257 = vunpack.c.h.b16 %v341
    %v1258 = vunpack.c.l.b16 %v342
    %v1259 = vunpack.c.h.b16 %v342
    %v1260 = vunpack.c.l.b16 %v343
    %v1261 = vunpack.c.h.b16 %v343
    %v1262 = vunpack.c.l.b16 %v344
    %v1263 = vunpack.c.h.b16 %v344
    %v1264 = vunpack.c.l.b16 %v345
    %v1265 = vunpack.c.h.b16 %v345
    %v1266 = vunpack.c.l.b16 %v346
    %v1267 = vunpack.c.h.b16 %v346
    %v1268 = vunpack.c.l.b16 %v347
    %v1269 = vunpack.c.h.b16 %v347
    %v1270 = vunpack.c.l.b16 %v348
    %v1271 = vunpack.c.h.b16 %v348
    %v1272 = vunpack.c.l.b16 %v349
    %v1273 = vunpack.c.h.b16 %v349
    %v1274 = vunpack.c.l.b16 %v350
    %v1275 = vunpack.c.h.b16 %v350
    %v1276 = vunpack.c.l.b16 %v351
    %v1277 = vunpack.c.h.b16 %v351
    %v1278 = vunpack.c.l.b16 %v352
    %v1279 = vunpack.c.h.b16 %v352
    %v1280 = vunpack.c.l.b16 %v353
    %v1281 = vunpack.c.h.b16 %v353
    %v1282 = vunpack.c.l.b16 %v354
    %v1283 = vunpack.c.h.b16 %v354
    %v1284 = vunpack.c.l.b16 %v355
    %v1285 = vunpack.c.h.b16 %v355
    %v1286 = vunpack.c.l.b16 %v356
    %v1287 = vunpack.c.h.b16 %v356
    %v1288 = vunpack.c.l.b16 %v357
    %v1289 = vunpack.c.h.b16 %v357
    %v1290 = vunpack.c.l.b16 %v358
    %v1291 = vunpack.c.h.b16 %v358
    %v1292 = vunpack.c.l.b16 %v359
    %v1293 = vunpack.c.h.b16 %v359
    %v1294 = vunpack.c.l.b16 %v360
    %v1295 = vunpack.c.h.b16 %v360
    %v1296 = vunpack.c.l.b16 %v361
    %v1297 = vunpack.c.h.b16 %v361
    %v1298 = vunpack.c.l.b16 %v362
    %v1299 = vunpack.c.h.b16 %v362
    %v1300 = vunpack.c.l.b16 %v363
    %v1301 = vunpack.c.h.b16 %v363
    %v1302 = vunpack.c.l.b16 %v364
    %v1303 = vunpack.c.h.b16 %v364
    %v1304 = vunpack.c.l.b16 %v365
    %v1305 = vunpack.c.h.b16 %v365
    %v1306 = vunpack.c.l.b16 %v366
    %v1307 = vunpack.c.h.b16 %v366
    %v1308 = vunpack.c.l.b16 %v367
    %v1309 = vunpack.c.h.b16 %v367
    %v1310 = vunpack.c.l.b16 %v368
    %v1311 = vunpack.c.h.b16 %v368
    %v1312 = vunpack.c.l.b16 %v369
    %v1313 = vunpack.c.h.b16 %v369
    %v1314 = vunpack.c.l.b16 %v370
    %v1315 = vunpack.c.h.b16 %v370
    %v1316 = vunpack.c.l.b16 %v371
    %v1317 = vunpack.c.h.b16 %v371
    %v1318 = vunpack.c.l.b16 %v372
    %v1319 = vunpack.c.h.b16 %v372
    %v1320 = vunpack.c.l.b16 %v373
    %v1321 = vunpack.c.h.b16 %v373
    %v1322 = vunpack.c.l.b16 %v374
    %v1323 = vunpack.c.h.b16 %v374
    %v1324 = vunpack.c.l.b16 %v375
    %v1325 = vunpack.c.h.b16 %v375
    %v1326 = vunpack.c.l.b16 %v376
    %v1327 = vunpack.c.h.b16 %v376
    %v1328 = vunpack.c.l.b16 %v377
    %v1329 = vunpack.c.h.b16 %v377
    %v1330 = vunpack.c.l.b16 %v378
    %v1331 = vunpack.c.h.b16 %v378
    %v1332 = vunpack.c.l.b16 %v379
    %v1333 = vunpack.c.h.b16 %v379
    %v1334 = vunpack.c.l.b16 %v380
    %v1335 = vunpack.c.h.b16 %v380
    %v1336 = vunpack.c.l.b16 %v381
    %v1337 = vunpack.c.h.b16 %v381
    %v1338 = vunpack.c.l.b16 %v382
    %v1339 = vunpack.c.h.b16 %v382
    %v1340 = vunpack.c.l.b16 %v383
    %v1341 = vunpack.c.h.b16 %v383
    %v1342 = vunpack.c.l.b16 %v384
    %v1343 = vunpack.c.h.b16 %v384
    %v1344 = vunpack.c.l.b16 %v385
    %v1345 = vunpack.c.h.b16 %v385
    %v1346 = vunpack.c.l.b16 %v386
    %v1347 = vunpack.c.h.b16 %v386
    %v1348 = vunpack.c.l.b16 %v387
    %v1349 = vunpack.c.h.b16 %v387
    %v1350 = vunpack.c.l.b16 %v388
    %v1351 = vunpack.c.h.b16 %v388
    %v1352 = vunpack.c.l.b16 %v389
    %v1353 = vunpack.c.h.b16 %v389
    %v1354 = vunpack.c.l.b16 %v390
    %v1355 = vunpack.c.h.b16 %v390
    %v1356 = vunpack.c.l.b16 %v391
    %v1357 = vunpack.c.h.b16 %v391
    %v1358 = vunpack.c.l.b16 %v392
    %v1359 = vunpack.c.h.b16 %v392
    %v1360 = vunpack.c.l.b16 %v393
    %v1361 = vunpack.c.h.b16 %v393
    %v1362 = vunpack.c.l.b16 %v394
    %v1363 = vunpack.c.h.b16 %v394
    %v1364 = vunpack.c.l.b16 %v395
    %v1365 = vunpack.c.h.b16 %v395
    %v1366 = vunpack.c.l.b16 %v396
    %v1367 = vunpack.c.h.b16 %v396
    %v1368 = vunpack.c.l.b16 %v397
    %v1369 = vunpack.c.h.b16 %v397
    %v1370 = vunpack.c.l.b16 %v398
    %v1371 = vunpack.c.h.b16 %v398
    %v1372 = vunpack.c.l.b16 %v399
    %v1373 = vunpack.c.h.b16 %v399
    %v1374 = vunpack.c.l.b16 %v400
    %v1375 = vunpack.c.h.b16 %v400
    %v1376 = vunpack.c.l.b16 %v401
    %v1377 = vunpack.c.h.b16 %v401
    %v1378 = vunpack.c.l.b16 %v402
    %v1379 = vunpack.c.h.b16 %v402
    %v1380 = vunpack.c.l.b16 %v403
    %v1381 = vunpack.c.h.b16 %v403
    %v1382 = vunpack.c.l.b16 %v404
    %v1383 = vunpack.c.h.b16 %v404
    %v1384 = vunpack.c.l.b16 %v405
    %v1385 = vunpack.c.h.b16 %v405
    %v1386 = vunpack.c.l.b16 %v406
    %v1387 = vunpack.c.h.b16 %v406
    %v1388 = vunpack.c.l.b16 %v407
    %v1389 = vunpack.c.h.b16 %v407
    %v1390 = vunpack.c.l.b16 %v408
    %v1391 = vunpack.c.h.b16 %v408
    %v1392 = vunpack.c.l.b16 %v409
    %v1393 = vunpack.c.h.b16 %v409
    %v1394 = vunpack.c.l.b16 %v410
    %v1395 = vunpack.c.h.b16 %v410
    %v1396 = vunpack.c.l.b16 %v411
    %v1397 = vunpack.c.h.b16 %v411
    %v1398 = vunpack.c.l.b16 %v412
    %v1399 = vunpack.c.h.b16 %v412
    %v1400 = vunpack.c.l.b16 %v413
    %v1401 = vunpack.c.h.b16 %v413
    %v1402 = vunpack.c.l.b16 %v414
    %v1403 = vunpack.c.h.b16 %v414
    %v1404 = vunpack.c.l.b16 %v415
    %v1405 = vunpack.c.h.b16 %v415
    %v1406 = vunpack.c.l.b16 %v416
    %v1407 = vunpack.c.h.b16 %v416
    %v1408 = vunpack.c.l.b16 %v417
    %v1409 = vunpack.c.h.b16 %v417
    %v1410 = vunpack.c.l.b16 %v418
    %v1411 = vunpack.c.h.b16 %v418
    %v1412 = vunpack.c.l.b16 %v419
    %v1413 = vunpack.c.h.b16 %v419
    %v1414 = vunpack.c.l.b16 %v420
    %v1415 = vunpack.c.h.b16 %v420
    %v1416 = vunpack.c.l.b16 %v421
    %v1417 = vunpack.c.h.b16 %v421
    %v1418 = vunpack.c.l.b16 %v422
    %v1419 = vunpack.c.h.b16 %v422
    %v1420 = vunpack.c.l.b16 %v423
    %v1421 = vunpack.c.h.b16 %v423
    %v1422 = vunpack.c.l.b16 %v424
    %v1423 = vunpack.c.h.b16 %v424
    %v1424 = vunpack.c.l.b16 %v425
    %v1425 = vunpack.c.h.b16 %v425
    %v1426 = vunpack.c.l.b16 %v426
    %v1427 = vunpack.c.h.b16 %v426
    %v1428 = vunpack.c.l.b16 %v427
    %v1429 = vunpack.c.h.b16 %v427
    %v1430 = vunpack.c.l.b16 %v428
    %v1431 = vunpack.c.h.b16 %v428
    %v1432 = vunpack.c.l.b16 %v429
    %v1433 = vunpack.c.h.b16 %v429
    %v1434 = vunpack.c.l.b16 %v430
    %v1435 = vunpack.c.h.b16 %v430
    %v1436 = vunpack.c.l.b16 %v431
    %v1437 = vunpack.c.h.b16 %v431
    %v1438 = vunpack.c.l.b16 %v432
    %v1439 = vunpack.c.h.b16 %v432
    %v1440 = vunpack.c.l.b16 %v433
    %v1441 = vunpack.c.h.b16 %v433
    %v1442 = vunpack.c.l.b16 %v434
    %v1443 = vunpack.c.h.b16 %v434
    %v1444 = vunpack.c.l.b16 %v435
    %v1445 = vunpack.c.h.b16 %v435
    %v1446 = vunpack.c.l.b16 %v436
    %v1447 = vunpack.c.h.b16 %v436
    %v1448 = vunpack.c.l.b16 %v437
    %v1449 = vunpack.c.h.b16 %v437
    %v1450 = vunpack.c.l.b16 %v438
    %v1451 = vunpack.c.h.b16 %v438
    %v1452 = vunpack.c.l.b16 %v439
    %v1453 = vunpack.c.h.b16 %v439
    %v1454 = vunpack.c.l.b16 %v440
    %v1455 = vunpack.c.h.b16 %v440
    %v1456 = vunpack.c.l.b16 %v441
    %v1457 = vunpack.c.h.b16 %v441
    %v1458 = vunpack.c.l.b16 %v442
    %v1459 = vunpack.c.h.b16 %v442
    %v1460 = vunpack.c.l.b16 %v443
    %v1461 = vunpack.c.h.b16 %v443
    %v1462 = vunpack.c.l.b16 %v444
    %v1463 = vunpack.c.h.b16 %v444
    %v1464 = vunpack.c.l.b16 %v445
    %v1465 = vunpack.c.h.b16 %v445
    %v1466 = vunpack.c.l.b16 %v446
    %v1467 = vunpack.c.h.b16 %v446
    %v1468 = vunpack.c.l.b16 %v447
    %v1469 = vunpack.c.h.b16 %v447
    %v1470 = vunpack.c.l.b16 %v448
    %v1471 = vunpack.c.h.b16 %v448
    %v1472 = vunpack.c.l.b16 %v449
    %v1473 = vunpack.c.h.b16 %v449
    %v1474 = vunpack.c.l.b16 %v450
    %v1475 = vunpack.c.h.b16 %v450
    %v1476 = vunpack.c.l.b16 %v451
    %v1477 = vunpack.c.h.b16 %v451
    %v1478 = vunpack.c.l.b16 %v452
    %v1479 = vunpack.c.h.b16 %v452
    %v1480 = vunpack.c.l.b16 %v453
    %v1481 = vunpack.c.h.b16 %v453
    %v1482 = vunpack.c.l.b16 %v454
    %v1483 = vunpack.c.h.b16 %v454
    %v1484 = vunpack.c.l.b16 %v455
    %v1485 = vunpack.c.h.b16 %v455
    %v1486 = vunpack.c.l.b16 %v456
    %v1487 = vunpack.c.h.b16 %v456
    %v1488 = vunpack.c.l.b16 %v457
    %v1489 = vunpack.c.h.b16 %v457
    %v1490 = vunpack.c.l.b16 %v458
    %v1491 = vunpack.c.h.b16 %v458
    %v1492 = vunpack.c.l.b16 %v459
    %v1493 = vunpack.c.h.b16 %v459
    %v1494 = vunpack.c.l.b16 %v460
    %v1495 = vunpack.c.h.b16 %v460
    %v1496 = vunpack.c.l.b16 %v461
    %v1497 = vunpack.c.h.b16 %v461
    %v1498 = vunpack.c.l.b16 %v462
    %v1499 = vunpack.c.h.b16 %v462
    %v1500 = vunpack.c.l.b16 %v463
    %v1501 = vunpack.c.h.b16 %v463
    %v1502 = vunpack.c.l.b16 %v464
    %v1503 = vunpack.c.h.b16 %v464
    %v1504 = vunpack.c.l.b16 %v465
    %v1505 = vunpack.c.h.b16 %v465
    %v1506 = vunpack.c.l.b16 %v466
    %v1507 = vunpack.c.h.b16 %v466
    %v1508 = vunpack.c.l.b16 %v467
    %v1509 = vunpack.c.h.b16 %v467
    %v1510 = vunpack.c.l.b16 %v468
    %v1511 = vunpack.c.h.b16 %v468
    %v1512 = vunpack.c.l.b16 %v469
    %v1513 = vunpack.c.h.b16 %v469
    %v1514 = vunpack.c.l.b16 %v470
    %v1515 = vunpack.c.h.b16 %v470
    %v1516 = vunpack.c.l.b16 %v471
    %v1517 = vunpack.c.h.b16 %v471
    %v1518 = vunpack.c.l.b16 %v472
    %v1519 = vunpack.c.h.b16 %v472
    %v1520 = vunpack.c.l.b16 %v473
    %v1521 = vunpack.c.h.b16 %v473
    %v1522 = vunpack.c.l.b16 %v474
    %v1523 = vunpack.c.h.b16 %v474
    %v1524 = vunpack.c.l.b16 %v475
    %v1525 = vunpack.c.h.b16 %v475
    %v1526 = vunpack.c.l.b16 %v476
    %v1527 = vunpack.c.h.b16 %v476
    %v1528 = vunpack.c.l.b16 %v477
    %v1529 = vunpack.c.h.b16 %v477
    %v1530 = vunpack.c.l.b16 %v478
    %v1531 = vunpack.c.h.b16 %v478
    %v1532 = vunpack.c.l.b16 %v479
    %v1533 = vunpack.c.h.b16 %v479
    %v1534 = vunpack.c.l.b16 %v480
    %v1535 = vunpack.c.h.b16 %v480
    %v1536 = vunpack.c.l.b16 %v481
    %v1537 = vunpack.c.h.b16 %v481
    %v1538 = vunpack.c.l.b16 %v482
    %v1539 = vunpack.c.h.b16 %v482
    %v1540 = vunpack.c.l.b16 %v483
    %v1541 = vunpack.c.h.b16 %v483
    %v1542 = vunpack.c.l.b16 %v484
    %v1543 = vunpack.c.h.b16 %v484
    %v1544 = vunpack.c.l.b16 %v485
    %v1545 = vunpack.c.h.b16 %v485
    %v1546 = vunpack.c.l.b16 %v486
    %v1547 = vunpack.c.h.b16 %v486
    %v1548 = vunpack.c.l.b16 %v487
    %v1549 = vunpack.c.h.b16 %v487
    %v1550 = vunpack.c.l.b16 %v488
    %v1551 = vunpack.c.h.b16 %v488
    %v1552 = vunpack.c.l.b16 %v489
    %v1553 = vunpack.c.h.b16 %v489
    %v1554 = vunpack.c.l.b16 %v490
    %v1555 = vunpack.c.h.b16 %v490
    %v1556 = vunpack.c.l.b16 %v491
    %v1557 = vunpack.c.h.b16 %v491
    %v1558 = vunpack.c.l.b16 %v492
    %v1559 = vunpack.c.h.b16 %v492
    %v1560 = vunpack.c.l.b16 %v493
    %v1561 = vunpack.c.h.b16 %v493
    %v1562 = vunpack.c.l.b16 %v494
    %v1563 = vunpack.c.h.b16 %v494
    %v1564 = vunpack.c.l.b16 %v495
    %v1565 = vunpack.c.h.b16 %v495
    %v1566 = vunpack.c.l.b16 %v496
    %v1567 = vunpack.c.h.b16 %v496
    %v1568 = vunpack.c.l.b16 %v497
    %v1569 = vunpack.c.h.b16 %v497
    %v1570 = vunpack.c.l.b16 %v498
    %v1571 = vunpack.c.h.b16 %v498
    %v1572 = vunpack.c.l.b16 %v499
    %v1573 = vunpack.c.h.b16 %v499
    %v1574 = vunpack.c.l.b16 %v500
    %v1575 = vunpack.c.h.b16 %v500
    %v1576 = vunpack.c.l.b16 %v501
    %v1577 = vunpack.c.h.b16 %v501
    %v1578 = vunpack.c.l.b16 %v502
    %v1579 = vunpack.c.h.b16 %v502
    %v1580 = vunpack.c.l.b16 %v503
    %v1581 = vunpack.c.h.b16 %v503
    %v1582 = vunpack.c.l.b16 %v504
    %v1583 = vunpack.c.h.b16 %v504
    %v1584 = vunpack.c.l.b16 %v505
    %v1585 = vunpack.c.h.b16 %v505
    %v1586 = vunpack.c.l.b16 %v506
    %v1587 = vunpack.c.h.b16 %v506
    %v1588 = vunpack.c.l.b16 %v507
    %v1589 = vunpack.c.h.b16 %v507
    %v1590 = vunpack.c.l.b16 %v508
    %v1591 = vunpack.c.h.b16 %v508
    %v1592 = vunpack.c.l.b16 %v509
    %v1593 = vunpack.c.h.b16 %v509
    %v1594 = vunpack.c.l.b16 %v510
    %v1595 = vunpack.c.h.b16 %v510
    %v1596 = vunpack.c.l.b16 %v511
    %v1597 = vunpack.c.h.b16 %v511
    %v1598 = vunpack.c.l.b16 %v512
    %v1599 = vunpack.c.h.b16 %v512
    %v1600 = vunpack.c.l.b16 %v513
    %v1601 = vunpack.c.h.b16 %v513
    %v1602 = vunpack.c.l.b16 %v514
    %v1603 = vunpack.c.h.b16 %v514
    %v1604 = vunpack.c.l.b16 %v515
    %v1605 = vunpack.c.h.b16 %v515
    %v1606 = vunpack.c.l.b16 %v516
    %v1607 = vunpack.c.h.b16 %v516
    %v1608 = vunpack.c.l.b16 %v517
    %v1609 = vunpack.c.h.b16 %v517
    %v1610 = vunpack.c.l.b16 %v518
    %v1611 = vunpack.c.h.b16 %v518
    %v1612 = vunpack.c.l.b16 %v519
    %v1613 = vunpack.c.h.b16 %v519
    %v1614 = vunpack.c.l.b16 %v520
    %v1615 = vunpack.c.h.b16 %v520
    %v1616 = vunpack.c.l.b16 %v521
    %v1617 = vunpack.c.h.b16 %v521
    %v1618 = vunpack.c.l.b16 %v522
    %v1619 = vunpack.c.h.b16 %v522
    %v1620 = vunpack.c.l.b16 %v523
    %v1621 = vunpack.c.h.b16 %v523
    %v1622 = vunpack.c.l.b16 %v524
    %v1623 = vunpack.c.h.b16 %v524
    %v1624 = vunpack.c.l.b16 %v525
    %v1625 = vunpack.c.h.b16 %v525
    %v1626 = vunpack.c.l.b16 %v526
    %v1627 = vunpack.c.h.b16 %v526
    %v1628 = vunpack.c.l.b16 %v527
    %v1629 = vunpack.c.h.b16 %v527
    %v1630 = vunpack.c.l.b16 %v528
    %v1631 = vunpack.c.h.b16 %v528
    %v1632 = vunpack.c.l.b16 %v529
    %v1633 = vunpack.c.h.b16 %v529
    %v1634 = vunpack.c.l.b16 %v530
    %v1635 = vunpack.c.h.b16 %v530
    %v1636 = vunpack.c.l.b16 %v531
    %v1637 = vunpack.c.h.b16 %v531
    %v1638 = vunpack.c.l.b16 %v532
    %v1639 = vunpack.c.h.b16 %v532
    %v1640 = vunpack.c.l.b16 %v533
    %v1641 = vunpack.c.h.b16 %v533
    %v1642 = vunpack.c.l.b16 %v534
    %v1643 = vunpack.c.h.b16 %v534
    %v1644 = vunpack.c.l.b16 %v535
    %v1645 = vunpack.c.h.b16 %v535
    %v1646 = vunpack.c.l.b16 %v536
    %v1647 = vunpack.c.h.b16 %v536
    %v1648 = vunpack.c.l.b16 %v537
    %v1649 = vunpack.c.h.b16 %v537
    %v1650 = vunpack.c.l.b16 %v538
    %v1651 = vunpack.c.h.b16 %v538
    %v1652 = vunpack.c.l.b16 %v539
    %v1653 = vunpack.c.h.b16 %v539
    %v1654 = vunpack.c.l.b16 %v540
    %v1655 = vunpack.c.h.b16 %v540
    %v1656 = vunpack.c.l.b16 %v541
    %v1657 = vunpack.c.h.b16 %v541
    %v1658 = vunpack.c.l.b16 %v542
    %v1659 = vunpack.c.h.b16 %v542
    %v1660 = vunpack.c.l.b16 %v543
    %v1661 = vunpack.c.h.b16 %v543
    %v1662 = vunpack.c.l.b16 %v544
    %v1663 = vunpack.c.h.b16 %v544
    %v1664 = vunpack.c.l.b16 %v545
    %v1665 = vunpack.c.h.b16 %v545
    %v1666 = vunpack.c.l.b16 %v546
    %v1667 = vunpack.c.h.b16 %v546
    %v1668 = vunpack.c.l.b16 %v547
    %v1669 = vunpack.c.h.b16 %v547
    %v1670 = vunpack.c.l.b16 %v548
    %v1671 = vunpack.c.h.b16 %v548
    %v1672 = vunpack.c.l.b16 %v549
    %v1673 = vunpack.c.h.b16 %v549
    %v1674 = vunpack.c.l.b16 %v550
    %v1675 = vunpack.c.h.b16 %v550
    %v1676 = vunpack.c.l.b16 %v551
    %v1677 = vunpack.c.h.b16 %v551
    %v1678 = vunpack.c.l.b16 %v552
    %v1679 = vunpack.c.h.b16 %v552
    %v1680 = vunpack.c.l.b16 %v553
    %v1681 = vunpack.c.h.b16 %v553
    %v1682 = vunpack.c.l.b16 %v554
    %v1683 = vunpack.c.h.b16 %v554
    %v1684 = vunpack.c.l.b16 %v555
    %v1685 = vunpack.c.h.b16 %v555
    %v1686 = vunpack.c.l.b16 %v556
    %v1687 = vunpack.c.h.b16 %v556
    %v1688 = vunpack.c.l.b16 %v557
    %v1689 = vunpack.c.h.b16 %v557
    %v1690 = vunpack.c.l.b16 %v558
    %v1691 = vunpack.c.h.b16 %v558
    %v1692 = vunpack.c.l.b16 %v559
    %v1693 = vunpack.c.h.b16 %v559
    %v1694 = vunpack.c.l.b16 %v560
    %v1695 = vunpack.c.h.b16 %v560
    %v1696 = vunpack.c.l.b16 %v561
    %v1697 = vunpack.c.h.b16 %v561
    %v1698 = vunpack.c.l.b16 %v562
    %v1699 = vunpack.c.h.b16 %v562
    %v1700 = vunpack.c.l.b16 %v563
    %v1701 = vunpack.c.h.b16 %v563
    %v1702 = vunpack.c.l.b16 %v564
    %v1703 = vunpack.c.h.b16 %v564
    %v1704 = vunpack.c.l.b16 %v565
    %v1705 = vunpack.c.h.b16 %v565
    %v1706 = vunpack.c.l.b16 %v566
    %v1707 = vunpack.c.h.b16 %v566
    %v1708 = vunpack.c.l.b16 %v567
    %v1709 = vunpack.c.h.b16 %v567
    %v1710 = vunpack.c.l.b16 %v568
    %v1711 = vunpack.c.h.b16 %v568
    %v1712 = vunpack.c.l.b16 %v569
    %v1713 = vunpack.c.h.b16 %v569
    %v1714 = vunpack.c.l.b16 %v570
    %v1715 = vunpack.c.h.b16 %v570
    %v1716 = vunpack.c.l.b16 %v571
    %v1717 = vunpack.c.h.b16 %v571
    %v1718 = vunpack.c.l.b16 %v572
    %v1719 = vunpack.c.h.b16 %v572
    %v1720 = vunpack.c.l.b16 %v573
    %v1721 = vunpack.c.h.b16 %v573
    %v1722 = vunpack.c.l.b16 %v574
    %v1723 = vunpack.c.h.b16 %v574
    %v1724 = vunpack.c.l.b16 %v575
    %v1725 = vunpack.c.h.b16 %v575
    %v1726 = vunpack.c.l.b16 %v576
    %v1727 = vunpack.c.h.b16 %v576
    %v1728 = vunpack.c.l.b16 %v577
    %v1729 = vunpack.c.h.b16 %v577
    %v1730 = vunpack.c.l.b16 %v578
    %v1731 = vunpack.c.h.b16 %v578
    %v1732 = vunpack.c.l.b16 %v579
    %v1733 = vunpack.c.h.b16 %v579
    %v1734 = vunpack.c.l.b16 %v580
    %v1735 = vunpack.c.h.b16 %v580
    %v1736 = vunpack.c.l.b16 %v581
    %v1737 = vunpack.c.h.b16 %v581
    %v1738 = vunpack.c.l.b16 %v582
    %v1739 = vunpack.c.h.b16 %v582
    %v1740 = vunpack.c.l.b16 %v583
    %v1741 = vunpack.c.h.b16 %v583
    %v1742 = vunpack.c.l.b16 %v584
    %v1743 = vunpack.c.h.b16 %v584
    %v1744 = vunpack.c.l.b16 %v585
    %v1745 = vunpack.c.h.b16 %v585
    %v1746 = vunpack.c.l.b16 %v586
    %v1747 = vunpack.c.h.b16 %v586
    %v1748 = vunpack.c.l.b16 %v587
    %v1749 = vunpack.c.h.b16 %v587
    %v1750 = vunpack.c.l.b16 %v588
    %v1751 = vunpack.c.h.b16 %v588
    %v1752 = vunpack.c.l.b16 %v589
    %v1753 = vunpack.c.h.b16 %v589
    %v1754 = vunpack.c.l.b16 %v590
    %v1755 = vunpack.c.h.b16 %v590
    %v1756 = vunpack.c.l.b16 %v591
    %v1757 = vunpack.c.h.b16 %v591
    %v1758 = vunpack.c.l.b16 %v592
    %v1759 = vunpack.c.h.b16 %v592
    %v1760 = vunpack.c.l.b16 %v593
    %v1761 = vunpack.c.h.b16 %v593
    %v1762 = vunpack.c.l.b16 %v594
    %v1763 = vunpack.c.h.b16 %v594
    %v1764 = vunpack.c.l.b16 %v595
    %v1765 = vunpack.c.h.b16 %v595
    %v1766 = vunpack.c.l.b16 %v596
    %v1767 = vunpack.c.h.b16 %v596
    %v1768 = vunpack.c.l.b16 %v597
    %v1769 = vunpack.c.h.b16 %v597
    %v1770 = vunpack.c.l.b16 %v598
    %v1771 = vunpack.c.h.b16 %v598
    %v1772 = vunpack.c.l.b16 %v599
    %v1773 = vunpack.c.h.b16 %v599
    %v1774 = vunpack.c.l.b16 %v600
    %v1775 = vunpack.c.h.b16 %v600
    %v1776 = vunpack.c.l.b16 %v601
    %v1777 = vunpack.c.h.b16 %v601
    %v1778 = vunpack.c.l.b16 %v602
    %v1779 = vunpack.c.h.b16 %v602
    %v1780 = vunpack.c.l.b16 %v603
    %v1781 = vunpack.c.h.b16 %v603
    %v1782 = vunpack.c.l.b16 %v604
    %v1783 = vunpack.c.h.b16 %v604
    %v1784 = vunpack.c.l.b16 %v605
    %v1785 = vunpack.c.h.b16 %v605
    %v1786 = vunpack.c.l.b16 %v606
    %v1787 = vunpack.c.h.b16 %v606
    %v1788 = vunpack.c.l.b16 %v607
    %v1789 = vunpack.c.h.b16 %v607
    %v1790 = vunpack.c.l.b16 %v608
    %v1791 = vunpack.c.h.b16 %v608
    %v1792 = vunpack.c.l.b16 %v609
    %v1793 = vunpack.c.h.b16 %v609
    %v1794 = vunpack.c.l.b16 %v610
    %v1795 = vunpack.c.h.b16 %v610
    %v1796 = vunpack.c.l.b16 %v611
    %v1797 = vunpack.c.h.b16 %v611
    %v1798 = vunpack.c.l.b16 %v612
    %v1799 = vunpack.c.h.b16 %v612
    %v1800 = vunpack.c.l.b16 %v613
    %v1801 = vunpack.c.h.b16 %v613
    %v1802 = vunpack.c.l.b16 %v614
    %v1803 = vunpack.c.h.b16 %v614
    %v1804 = vunpack.c.l.b16 %v615
    %v1805 = vunpack.c.h.b16 %v615
    %v1806 = vunpack.c.l.b16 %v616
    %v1807 = vunpack.c.h.b16 %v616
    %v1808 = vunpack.c.l.b16 %v617
    %v1809 = vunpack.c.h.b16 %v617
    %v1810 = vunpack.c.l.b16 %v618
    %v1811 = vunpack.c.h.b16 %v618
    %v1812 = vunpack.c.l.b16 %v619
    %v1813 = vunpack.c.h.b16 %v619
    %v1814 = vunpack.c.l.b16 %v620
    %v1815 = vunpack.c.h.b16 %v620
    %v1816 = vunpack.c.l.b16 %v621
    %v1817 = vunpack.c.h.b16 %v621
    %v1818 = vunpack.c.l.b16 %v622
    %v1819 = vunpack.c.h.b16 %v622
    %v1820 = vunpack.c.l.b16 %v623
    %v1821 = vunpack.c.h.b16 %v623
    %v1822 = vunpack.c.l.b16 %v624
    %v1823 = vunpack.c.h.b16 %v624
    %v1824 = vunpack.c.l.b16 %v625
    %v1825 = vunpack.c.h.b16 %v625
    %v1826 = vunpack.c.l.b16 %v626
    %v1827 = vunpack.c.h.b16 %v626
    %v1828 = vunpack.c.l.b16 %v627
    %v1829 = vunpack.c.h.b16 %v627
    %v1830 = vunpack.c.l.b16 %v628
    %v1831 = vunpack.c.h.b16 %v628
    %v1832 = vunpack.c.l.b16 %v629
    %v1833 = vunpack.c.h.b16 %v629
    %v1834 = vunpack.c.l.b16 %v630
    %v1835 = vunpack.c.h.b16 %v630
    %v1836 = vunpack.c.l.b16 %v631
    %v1837 = vunpack.c.h.b16 %v631
    %v1838 = vunpack.c.l.b16 %v632
    %v1839 = vunpack.c.h.b16 %v632
    %v1840 = vunpack.c.l.b16 %v633
    %v1841 = vunpack.c.h.b16 %v633
    %v1842 = vunpack.c.l.b16 %v634
    %v1843 = vunpack.c.h.b16 %v634
    %v1844 = vunpack.c.l.b16 %v635
    %v1845 = vunpack.c.h.b16 %v635
    %v1846 = vunpack.c.l.b16 %v636
    %v1847 = vunpack.c.h.b16 %v636
    %v1848 = vunpack.c.l.b16 %v637
    %v1849 = vunpack.c.h.b16 %v637
    %v1850 = vunpack.c.l.b16 %v638
    %v1851 = vunpack.c.h.b16 %v638
    %v1852 = vunpack.c.l.b16 %v639
    %v1853 = vunpack.c.h.b16 %v639
    %v1854 = vunpack.c.l.b16 %v640
    %v1855 = vunpack.c.h.b16 %v640
    %v1856 = vpack.c.b16 %v1096, %v1088
    %v1857 = vpack.c.b16 %v1097, %v1089
    %v1858 = vpack.c.b16 %v1098, %v1090
    %v1859 = vpack.c.b16 %v1099, %v1091
    %v1860 = vpack.c.b16 %v1100, %v1092
    %v1861 = vpack.c.b16 %v1101, %v1093
    %v1862 = vpack.c.b16 %v1102, %v1094
    %v1863 = vpack.c.b16 %v1103, %v1095
    %v1864 = vpack.c.b16 %v1112, %v1104
    %v1865 = vpack.c.b16 %v1113, %v1105
    %v1866 = vpack.c.b16 %v1114, %v1106
    %v1867 = vpack.c.b16 %v1115, %v1107
    %v1868 = vpack.c.b16 %v1116, %v1108
    %v1869 = vpack.c.b16 %v1117, %v1109
    %v1870 = vpack.c.b16 %v1118, %v1110
    %v1871 = vpack.c.b16 %v1119, %v1111
    %v1872 = vpack.c.b16 %v1128, %v1120
    %v1873 = vpack.c.b16 %v1129, %v1121
    %v1874 = vpack.c.b16 %v1130, %v1122
    %v1875 = vpack.c.b16 %v1131, %v1123
    %v1876 = vpack.c.b16 %v1132, %v1124
    %v1877 = vpack.c.b16 %v1133, %v1125
    %v1878 = vpack.c.b16 %v1134, %v1126
    %v1879 = vpack.c.b16 %v1135, %v1127
    %v1880 = vpack.c.b16 %v1144, %v1136
    %v1881 = vpack.c.b16 %v1145, %v1137
    %v1882 = vpack.c.b16 %v1146, %v1138
    %v1883 = vpack.c.b16 %v1147, %v1139
    %v1884 = vpack.c.b16 %v1148, %v1140
    %v1885 = vpack.c.b16 %v1149, %v1141
    %v1886 = vpack.c.b16 %v1150, %v1142
    %v1887 = vpack.c.b16 %v1151, %v1143
    %v1888 = vpack.c.b16 %v1160, %v1152
    %v1889 = vpack.c.b16 %v1161, %v1153
    %v1890 = vpack.c.b16 %v1162, %v1154
    %v1891 = vpack.c.b16 %v1163, %v1155
    %v1892 = vpack.c.b16 %v1164, %v1156
    %v1893 = vpack.c.b16 %v1165, %v1157
    %v1894 = vpack.c.b16 %v1166, %v1158
    %v1895 = vpack.c.b16 %v1167, %v1159
    %v1896 = vpack.c.b16 %v1176, %v1168
    %v1897 = vpack.c.b16 %v1177, %v1169
    %v1898 = vpack.c.b16 %v1178, %v1170
    %v1899 = vpack.c.b16 %v1179, %v1171
    %v1900 = vpack.c.b16 %v1180, %v1172
    %v1901 = vpack.c.b16 %v1181, %v1173
    %v1902 = vpack.c.b16 %v1182, %v1174
    %v1903 = vpack.c.b16 %v1183, %v1175
    %v1904 = vpack.c.b16 %v1192, %v1184
    %v1905 = vpack.c.b16 %v1193, %v1185
    %v1906 = vpack.c.b16 %v1194, %v1186
    %v1907 = vpack.c.b16 %v1195, %v1187
    %v1908 = vpack.c.b16 %v1196, %v1188
    %v1909 = vpack.c.b16 %v1197, %v1189
    %v1910 = vpack.c.b16 %v1198, %v1190
    %v1911 = vpack.c.b16 %v1199, %v1191
    %v1912 = vpack.c.b16 %v1208, %v1200
    %v1913 = vpack.c.b16 %v1209, %v1201
    %v1914 = vpack.c.b16 %v1210, %v1202
    %v1915 = vpack.c.b16 %v1211, %v1203
    %v1916 = vpack.c.b16 %v1212, %v1204
    %v1917 = vpack.c.b16 %v1213, %v1205
    %v1918 = vpack.c.b16 %v1214, %v1206
    %v1919 = vpack.c.b16 %v1215, %v1207
    %v1920 = vpack.c.b16 %v1224, %v1216
    %v1921 = vpack.c.b16 %v1225, %v1217
    %v1922 = vpack.c.b16 %v1226, %v1218
    %v1923 = vpack.c.b16 %v1227, %v1219
    %v1924 = vpack.c.b16 %v1228, %v1220
    %v1925 = vpack.c.b16 %v1229, %v1221
    %v1926 = vpack.c.b16 %v1230, %v1222
    %v1927 = vpack.c.b16 %v1231, %v1223
    %v1928 = vpack.c.b16 %v1240, %v1232
    %v1929 = vpack.c.b16 %v1241, %v1233
    %v1930 = vpack.c.b16 %v1242, %v1234
    %v1931 = vpack.c.b16 %v1243, %v1235
    %v1932 = vpack.c.b16 %v1244, %v1236
    %v1933 = vpack.c.b16 %v1245, %v1237
    %v1934 = vpack.c.b16 %v1246, %v1238
    %v1935 = vpack.c.b16 %v1247, %v1239
    %v1936 = vpack.c.b16 %v1256, %v1248
    %v1937 = vpack.c.b16 %v1257, %v1249
    %v1938 = vpack.c.b16 %v1258, %v1250
    %v1939 = vpack.c.b16 %v1259, %v1251
    %v1940 = vpack.c.b16 %v1260, %v1252
    %v1941 = vpack.c.b16 %v1261, %v1253
    %v1942 = vpack.c.b16 %v1262, %v1254
    %v1943 = vpack.c.b16 %v1263, %v1255
    %v1944 = vpack.c.b16 %v1272, %v1264
    %v1945 = vpack.c.b16 %v1273, %v1265
    %v1946 = vpack.c.b16 %v1274, %v1266
    %v1947 = vpack.c.b16 %v1275, %v1267
    %v1948 = vpack.c.b16 %v1276, %v1268
    %v1949 = vpack.c.b16 %v1277, %v1269
    %v1950 = vpack.c.b16 %v1278, %v1270
    %v1951 = vpack.c.b16 %v1279, %v1271
    %v1952 = vpack.c.b16 %v1288, %v1280
    %v1953 = vpack.c.b16 %v1289, %v1281
    %v1954 = vpack.c.b16 %v1290, %v1282
    %v1955 = vpack.c.b16 %v1291, %v1283
    %v1956 = vpack.c.b16 %v1292, %v1284
    %v1957 = vpack.c.b16 %v1293, %v1285
    %v1958 = vpack.c.b16 %v1294, %v1286
    %v1959 = vpack.c.b16 %v1295, %v1287
    %v1960 = vpack.c.b16 %v1304, %v1296
    %v1961 = vpack.c.b16 %v1305, %v1297
    %v1962 = vpack.c.b16 %v1306, %v1298
    %v1963 = vpack.c.b16 %v1307, %v1299
    %v1964 = vpack.c.b16 %v1308, %v1300
    %v1965 = vpack.c.b16 %v1309, %v1301
    %v1966 = vpack.c.b16 %v1310, %v1302
    %v1967 = vpack.c.b16 %v1311, %v1303
    %v1968 = vpack.c.b16 %v1320, %v1312
    %v1969 = vpack.c.b16 %v1321, %v1313
    %v1970 = vpack.c.b16 %v1322, %v1314
    %v1971 = vpack.c.b16 %v1323, %v1315
    %v1972 = vpack.c.b16 %v1324, %v1316
    %v1973 = vpack.c.b16 %v1325, %v1317
    %v1974 = vpack.c.b16 %v1326, %v1318
    %v1975 = vpack.c.b16 %v1327, %v1319
    %v1976 = vpack.c.b16 %v1336, %v1328
    %v1977 = vpack.c.b16 %v1337, %v1329
    %v1978 = vpack.c.b16 %v1338, %v1330
    %v1979 = vpack.c.b16 %v1339, %v1331
    %v1980 = vpack.c.b16 %v1340, %v1332
    %v1981 = vpack.c.b16 %v1341, %v1333
    %v1982 = vpack.c.b16 %v1342, %v1334
    %v1983 = vpack.c.b16 %v1343, %v1335
    %v1984 = vpack.c.b16 %v1352, %v1344
    %v1985 = vpack.c.b16 %v1353, %v1345
    %v1986 = vpack.c.b16 %v1354, %v1346
    %v1987 = vpack.c.b16 %v1355, %v1347
    %v1988 = vpack.c.b16 %v1356, %v1348
    %v1989 = vpack.c.b16 %v1357, %v1349
    %v1990 = vpack.c.b16 %v1358, %v1350
    %v1991 = vpack.c.b16 %v1359, %v1351
    %v1992 = vpack.c.b16 %v1368, %v1360
    %v1993 = vpack.c.b16 %v1369, %v1361
    %v1994 = vpack.c.b16 %v1370, %v1362
    %v1995 = vpack.c.b16 %v1371, %v1363
    %v1996 = vpack.c.b16 %v1372, %v1364
    %v1997 = vpack.c.b16 %v1373, %v1365
    %v1998 = vpack.c.b16 %v1374, %v1366
    %v1999 = vpack.c.b16 %v1375, %v1367
    %v2000 = vpack.c.b16 %v1384, %v1376
    %v2001 = vpack.c.b16 %v1385, %v1377
    %v2002 = vpack.c.b16 %v1386, %v1378
    %v2003 = vpack.c.b16 %v1387, %v1379
    %v2004 = vpack.c.b16 %v1388, %v1380
    %v2005 = vpack.c.b16 %v1389, %v1381
    %v2006 = vpack.c.b16 %v1390, %v1382
    %v2007 = vpack.c.b16 %v1391, %v1383
    %v2008 = vpack.c.b16 %v1400, %v1392
    %v2009 = vpack.c.b16 %v1401, %v1393
    %v2010 = vpack.c.b16 %v1402, %v1394
    %v2011 = vpack.c.b16 %v1403, %v1395
    %v2012 = vpack.c.b16 %v1404, %v1396
    %v2013 = vpack.c.b16 %v1405, %v1397
    %v2014 = vpack.c.b16 %v1406, %v1398
    %v2015 = vpack.c.b16 %v1407, %v1399
    %v2016 = vpack.c.b16 %v1416, %v1408
    %v2017 = vpack.c.b16 %v1417, %v1409
    %v2018 = vpack.c.b16 %v1418, %v1410
    %v2019 = vpack.c.b16 %v1419, %v1411
    %v2020 = vpack.c.b16 %v1420, %v1412
    %v2021 = vpack.c.b16 %v1421, %v1413
    %v2022 = vpack.c.b16 %v1422, %v1414
    %v2023 = vpack.c.b16 %v1423, %v1415
    %v2024 = vpack.c.b16 %v1432, %v1424
    %v2025 = vpack.c.b16 %v1433, %v1425
    %v2026 = vpack.c.b16 %v1434, %v1426
    %v2027 = vpack.c.b16 %v1435, %v1427
    %v2028 = vpack.c.b16 %v1436, %v1428
    %v2029 = vpack.c.b16 %v1437, %v1429
    %v2030 = vpack.c.b16 %v1438, %v1430
    %v2031 = vpack.c.b16 %v1439, %v1431
    %v2032 = vpack.c.b16 %v1448, %v1440
    %v2033 = vpack.c.b16 %v1449, %v1441
    %v2034 = vpack.c.b16 %v1450, %v1442
    %v2035 = vpack.c.b16 %v1451, %v1443
    %v2036 = vpack.c.b16 %v1452, %v1444
    %v2037 = vpack.c.b16 %v1453, %v1445
    %v2038 = vpack.c.b16 %v1454, %v1446
    %v2039 = vpack.c.b16 %v1455, %v1447
    %v2040 = vpack.c.b16 %v1464, %v1456
    %v2041 = vpack.c.b16 %v1465, %v1457
    %v2042 = vpack.c.b16 %v1466, %v1458
    %v2043 = vpack.c.b16 %v1467, %v1459
    %v2044 = vpack.c.b16 %v1468, %v1460
    %v2045 = vpack.c.b16 %v1469, %v1461
    %v2046 = vpack.c.b16 %v1470, %v1462
    %v2047 = vpack.c.b16 %v1471, %v1463
    %v2048 = vpack.c.b16 %v1480, %v1472
    %v2049 = vpack.c.b16 %v1481, %v1473
    %v2050 = vpack.c.b16 %v1482, %v1474
    %v2051 = vpack.c.b16 %v1483, %v1475
    %v2052 = vpack.c.b16 %v1484, %v1476
    %v2053 = vpack.c.b16 %v1485, %v1477
    %v2054 = vpack.c.b16 %v1486, %v1478
    %v2055 = vpack.c.b16 %v1487, %v1479
    %v2056 = vpack.c.b16 %v1496, %v1488
    %v2057 = vpack.c.b16 %v1497, %v1489
    %v2058 = vpack.c.b16 %v1498, %v1490
    %v2059 = vpack.c.b16 %v1499, %v1491
    %v2060 = vpack.c.b16 %v1500, %v1492
    %v2061 = vpack.c.b16 %v1501, %v1493
    %v2062 = vpack.c.b16 %v1502, %v1494
    %v2063 = vpack.c.b16 %v1503, %v1495
    %v2064 = vpack.c.b16 %v1512, %v1504
    %v2065 = vpack.c.b16 %v1513, %v1505
    %v2066 = vpack.c.b16 %v1514, %v1506
    %v2067 = vpack.c.b16 %v1515, %v1507
    %v2068 = vpack.c.b16 %v1516, %v1508
    %v2069 = vpack.c.b16 %v1517, %v1509
    %v2070 = vpack.c.b16 %v1518, %v1510
    %v2071 = vpack.c.b16 %v1519, %v1511
    %v2072 = vpack.c.b16 %v1528, %v1520
    %v2073 = vpack.c.b16 %v1529, %v1521
    %v2074 = vpack.c.b16 %v1530, %v1522
    %v2075 = vpack.c.b16 %v1531, %v1523
    %v2076 = vpack.c.b16 %v1532, %v1524
    %v2077 = vpack.c.b16 %v1533, %v1525
    %v2078 = vpack.c.b16 %v1534, %v1526
    %v2079 = vpack.c.b16 %v1535, %v1527
    %v2080 = vpack.c.b16 %v1544, %v1536
    %v2081 = vpack.c.b16 %v1545, %v1537
    %v2082 = vpack.c.b16 %v1546, %v1538
    %v2083 = vpack.c.b16 %v1547, %v1539
    %v2084 = vpack.c.b16 %v1548, %v1540
    %v2085 = vpack.c.b16 %v1549, %v1541
    %v2086 = vpack.c.b16 %v1550, %v1542
    %v2087 = vpack.c.b16 %v1551, %v1543
    %v2088 = vpack.c.b16 %v1560, %v1552
    %v2089 = vpack.c.b16 %v1561, %v1553
    %v2090 = vpack.c.b16 %v1562, %v1554
    %v2091 = vpack.c.b16 %v1563, %v1555
    %v2092 = vpack.c.b16 %v1564, %v1556
    %v2093 = vpack.c.b16 %v1565, %v1557
    %v2094 = vpack.c.b16 %v1566, %v1558
    %v2095 = vpack.c.b16 %v1567, %v1559
    %v2096 = vpack.c.b16 %v1576, %v1568
    %v2097 = vpack.c.b16 %v1577, %v1569
    %v2098 = vpack.c.b16 %v1578, %v1570
    %v2099 = vpack.c.b16 %v1579, %v1571
    %v2100 = vpack.c.b16 %v1580, %v1572
    %v2101 = vpack.c.b16 %v1581, %v1573
    %v2102 = vpack.c.b16 %v1582, %v1574
    %v2103 = vpack.c.b16 %v1583, %v1575
    %v2104 = vpack.c.b16 %v1592, %v1584
    %v2105 = vpack.c.b16 %v1593, %v1585
    %v2106 = vpack.c.b16 %v1594, %v1586
    %v2107 = vpack.c.b16 %v1595, %v1587
    %v2108 = vpack.c.b16 %v1596, %v1588
    %v2109 = vpack.c.b16 %v1597, %v1589
    %v2110 = vpack.c.b16 %v1598, %v1590
    %v2111 = vpack.c.b16 %v1599, %v1591
    %v2112 = vpack.c.b16 %v1608, %v1600
    %v2113 = vpack.c.b16 %v1609, %v1601
    %v2114 = vpack.c.b16 %v1610, %v1602
    %v2115 = vpack.c.b16 %v1611, %v1603
    %v2116 = vpack.c.b16 %v1612, %v1604
    %v2117 = vpack.c.b16 %v1613, %v1605
    %v2118 = vpack.c.b16 %v1614, %v1606
    %v2119 = vpack.c.b16 %v1615, %v1607
    %v2120 = vpack.c.b16 %v1624, %v1616
    %v2121 = vpack.c.b16 %v1625, %v1617
    %v2122 = vpack.c.b16 %v1626, %v1618
    %v2123 = vpack.c.b16 %v1627, %v1619
    %v2124 = vpack.c.b16 %v1628, %v1620
    %v2125 = vpack.c.b16 %v1629, %v1621
    %v2126 = vpack.c.b16 %v1630, %v1622
    %v2127 = vpack.c.b16 %v1631, %v1623
    %v2128 = vpack.c.b16 %v1640, %v1632
    %v2129 = vpack.c.b16 %v1641, %v1633
    %v2130 = vpack.c.b16 %v1642, %v1634
    %v2131 = vpack.c.b16 %v1643, %v1635
    %v2132 = vpack.c.b16 %v1644, %v1636
    %v2133 = vpack.c.b16 %v1645, %v1637
    %v2134 = vpack.c.b16 %v1646, %v1638
    %v2135 = vpack.c.b16 %v1647, %v1639
    %v2136 = vpack.c.b16 %v1656, %v1648
    %v2137 = vpack.c.b16 %v1657, %v1649
    %v2138 = vpack.c.b16 %v1658, %v1650
    %v2139 = vpack.c.b16 %v1659, %v1651
    %v2140 = vpack.c.b16 %v1660, %v1652
    %v2141 = vpack.c.b16 %v1661, %v1653
    %v2142 = vpack.c.b16 %v1662, %v1654
    %v2143 = vpack.c.b16 %v1663, %v1655
    %v2144 = vpack.c.b16 %v1672, %v1664
    %v2145 = vpack.c.b16 %v1673, %v1665
    %v2146 = vpack.c.b16 %v1674, %v1666
    %v2147 = vpack.c.b16 %v1675, %v1667
    %v2148 = vpack.c.b16 %v1676, %v1668
    %v2149 = vpack.c.b16 %v1677, %v1669
    %v2150 = vpack.c.b16 %v1678, %v1670
    %v2151 = vpack.c.b16 %v1679, %v1671
    %v2152 = vpack.c.b16 %v1688, %v1680
    %v2153 = vpack.c.b16 %v1689, %v1681
    %v2154 = vpack.c.b16 %v1690, %v1682
    %v2155 = vpack.c.b16 %v1691, %v1683
    %v2156 = vpack.c.b16 %v1692, %v1684
    %v2157 = vpack.c.b16 %v1693, %v1685
    %v2158 = vpack.c.b16 %v1694, %v1686
    %v2159 = vpack.c.b16 %v1695, %v1687
    %v2160 = vpack.c.b16 %v1704, %v1696
    %v2161 = vpack.c.b16 %v1705, %v1697
    %v2162 = vpack.c.b16 %v1706, %v1698
    %v2163 = vpack.c.b16 %v1707, %v1699
    %v2164 = vpack.c.b16 %v1708, %v1700
    %v2165 = vpack.c.b16 %v1709, %v1701
    %v2166 = vpack.c.b16 %v1710, %v1702
    %v2167 = vpack.c.b16 %v1711, %v1703
    %v2168 = vpack.c.b16 %v1720, %v1712
    %v2169 = vpack.c.b16 %v1721, %v1713
    %v2170 = vpack.c.b16 %v1722, %v1714
    %v2171 = vpack.c.b16 %v1723, %v1715
    %v2172 = vpack.c.b16 %v1724, %v1716
    %v2173 = vpack.c.b16 %v1725, %v1717
    %v2174 = vpack.c.b16 %v1726, %v1718
    %v2175 = vpack.c.b16 %v1727, %v1719
    %v2176 = vpack.c.b16 %v1736, %v1728
    %v2177 = vpack.c.b16 %v1737, %v1729
    %v2178 = vpack.c.b16 %v1738, %v1730
    %v2179 = vpack.c.b16 %v1739, %v1731
    %v2180 = vpack.c.b16 %v1740, %v1732
    %v2181 = vpack.c.b16 %v1741, %v1733
    %v2182 = vpack.c.b16 %v1742, %v1734
    %v2183 = vpack.c.b16 %v1743, %v1735
    %v2184 = vpack.c.b16 %v1752, %v1744
    %v2185 = vpack.c.b16 %v1753, %v1745
    %v2186 = vpack.c.b16 %v1754, %v1746
    %v2187 = vpack.c.b16 %v1755, %v1747
    %v2188 = vpack.c.b16 %v1756, %v1748
    %v2189 = vpack.c.b16 %v1757, %v1749
    %v2190 = vpack.c.b16 %v1758, %v1750
    %v2191 = vpack.c.b16 %v1759, %v1751
    %v2192 = vpack.c.b16 %v1768, %v1760
    %v2193 = vpack.c.b16 %v1769, %v1761
    %v2194 = vpack.c.b16 %v1770, %v1762
    %v2195 = vpack.c.b16 %v1771, %v1763
    %v2196 = vpack.c.b16 %v1772, %v1764
    %v2197 = vpack.c.b16 %v1773, %v1765
    %v2198 = vpack.c.b16 %v1774, %v1766
    %v2199 = vpack.c.b16 %v1775, %v1767
    %v2200 = vpack.c.b16 %v1784, %v1776
    %v2201 = vpack.c.b16 %v1785, %v1777
    %v2202 = vpack.c.b16 %v1786, %v1778
    %v2203 = vpack.c.b16 %v1787, %v1779
    %v2204 = vpack.c.b16 %v1788, %v1780
    %v2205 = vpack.c.b16 %v1789, %v1781
    %v2206 = vpack.c.b16 %v1790, %v1782
    %v2207 = vpack.c.b16 %v1791, %v1783
    %v2208 = vpack.c.b16 %v1800, %v1792
    %v2209 = vpack.c.b16 %v1801, %v1793
    %v2210 = vpack.c.b16 %v1802, %v1794
    %v2211 = vpack.c.b16 %v1803, %v1795
    %v2212 = vpack.c.b16 %v1804, %v1796
    %v2213 = vpack.c.b16 %v1805, %v1797
    %v2214 = vpack.c.b16 %v1806, %v1798
    %v2215 = vpack.c.b16 %v1807, %v1799
    %v2216 = vpack.c.b16 %v1816, %v1808
    %v2217 = vpack.c.b16 %v1817, %v1809
    %v2218 = vpack.c.b16 %v1818, %v1810
    %v2219 = vpack.c.b16 %v1819, %v1811
    %v2220 = vpack.c.b16 %v1820, %v1812
    %v2221 = vpack.c.b16 %v1821, %v1813
    %v2222 = vpack.c.b16 %v1822, %v1814
    %v2223 = vpack.c.b16 %v1823, %v1815
    %v2224 = vpack.c.b16 %v1832, %v1824
    %v2225 = vpack.c.b16 %v1833, %v1825
    %v2226 = vpack.c.b16 %v1834, %v1826
    %v2227 = vpack.c.b16 %v1835, %v1827
    %v2228 = vpack.c.b16 %v1836, %v1828
    %v2229 = vpack.c.b16 %v1837, %v1829
    %v2230 = vpack.c.b16 %v1838, %v1830
    %v2231 = vpack.c.b16 %v1839, %v1831
    %v2232 = vpack.c.b16 %v1848, %v1840
    %v2233 = vpack.c.b16 %v1849, %v1841
    %v2234 = vpack.c.b16 %v1850, %v1842
    %v2235 = vpack.c.b16 %v1851, %v1843
    %v2236 = vpack.c.b16 %v1852, %v1844
    %v2237 = vpack.c.b16 %v1853, %v1845
    %v2238 = vpack.c.b16 %v1854, %v1846
    %v2239 = vpack.c.b16 %v1855, %v1847
    %2624 = vmatprep.subr.bf16.mxu0 %v1913
    %2625 = vmatpush1.bf16.msra.mxu0 %v1912
    %2626 = vmatprep.subr.bf16.mxu0 %v1905
    %2627 = vmatpush1.bf16.msra.mxu0 %v1904
    %2628 = vmatprep.subr.bf16.mxu0 %v1897
    %2629 = vmatpush1.bf16.msra.mxu0 %v1896
    %2630 = vmatprep.subr.bf16.mxu0 %v1889
    %2631 = vmatpush1.bf16.msra.mxu0 %v1888
    %2632 = vmatprep.subr.bf16.mxu0 %v1881
    %2633 = vmatpush1.bf16.msra.mxu0 %v1880
    %2634 = vmatprep.subr.bf16.mxu0 %v1873
    %2635 = vmatpush1.bf16.msra.mxu0 %v1872
    %2636 = vmatprep.subr.bf16.mxu0 %v1865
    %2637 = vmatpush1.bf16.msra.mxu0 %v1864
    %2638 = vmatprep.subr.bf16.mxu0 %v1857
    %2639 = vmatpush1.bf16.msra.mxu0 %v1856
    %2640 = vmatprep.subr.bf16.mxu0 %v1977
    %2641 = vmatpush2.bf16.msra.mxu0 %v1976
    %2642 = vmatprep.subr.bf16.mxu0 %v1969
    %2643 = vmatpush2.bf16.msra.mxu0 %v1968
    %2644 = vmatprep.subr.bf16.mxu0 %v1961
    %2645 = vmatpush2.bf16.msra.mxu0 %v1960
    %2646 = vmatprep.subr.bf16.mxu0 %v1953
    %2647 = vmatpush2.bf16.msra.mxu0 %v1952
    %2648 = vmatprep.subr.bf16.mxu0 %v1945
    %2649 = vmatpush2.bf16.msra.mxu0 %v1944
    %2650 = vmatprep.subr.bf16.mxu0 %v1937
    %2651 = vmatpush2.bf16.msra.mxu0 %v1936
    %2652 = vmatprep.subr.bf16.mxu0 %v1929
    %2653 = vmatpush2.bf16.msra.mxu0 %v1928
    %2654 = vmatprep.subr.bf16.mxu0 %v1921
    %2655 = vmatpush2.bf16.msra.mxu0 %v1920
    %2656 = vmatprep.mubr.bf16.mxu0 %v693
    %2657 = vmatmul.mubr.bf16.gmra.mxu0 %v692
    %v2658 = vpop.f32.mrf.mxu0
    %v2659 = vadd.f32 %v646, %v2658
    %v2660 = vpop.f32.mrf.mxu0
    %v2661 = vadd.f32 %v650, %v2660
    %v2662 = vpop.f32.mrf.mxu0
    %v2663 = vpop.f32.mrf.mxu0
    %2664 = vdwg.mxu0
    %2665 = vmatprep.subr.bf16.mxu0 %v2041
    %2666 = vmatpush1.bf16.msra.mxu0 %v2040
    %2667 = vmatprep.subr.bf16.mxu0 %v2033
    %2668 = vmatpush1.bf16.msra.mxu0 %v2032
    %2669 = vmatprep.subr.bf16.mxu0 %v2025
    %2670 = vmatpush1.bf16.msra.mxu0 %v2024
    %2671 = vmatprep.subr.bf16.mxu0 %v2017
    %2672 = vmatpush1.bf16.msra.mxu0 %v2016
    %2673 = vmatprep.subr.bf16.mxu0 %v2009
    %2674 = vmatpush1.bf16.msra.mxu0 %v2008
    %2675 = vmatprep.subr.bf16.mxu0 %v2001
    %2676 = vmatpush1.bf16.msra.mxu0 %v2000
    %2677 = vmatprep.subr.bf16.mxu0 %v1993
    %2678 = vmatpush1.bf16.msra.mxu0 %v1992
    %2679 = vmatprep.subr.bf16.mxu0 %v1985
    %2680 = vmatpush1.bf16.msra.mxu0 %v1984
    %2681 = vmatprep.subr.bf16.mxu0 %v2105
    %2682 = vmatpush2.bf16.msra.mxu0 %v2104
    %2683 = vmatprep.subr.bf16.mxu0 %v2097
    %2684 = vmatpush2.bf16.msra.mxu0 %v2096
    %2685 = vmatprep.subr.bf16.mxu0 %v2089
    %2686 = vmatpush2.bf16.msra.mxu0 %v2088
    %2687 = vmatprep.subr.bf16.mxu0 %v2081
    %2688 = vmatpush2.bf16.msra.mxu0 %v2080
    %2689 = vmatprep.subr.bf16.mxu0 %v2073
    %2690 = vmatpush2.bf16.msra.mxu0 %v2072
    %2691 = vmatprep.subr.bf16.mxu0 %v2065
    %2692 = vmatpush2.bf16.msra.mxu0 %v2064
    %2693 = vmatprep.subr.bf16.mxu0 %v2057
    %2694 = vmatpush2.bf16.msra.mxu0 %v2056
    %2695 = vmatprep.subr.bf16.mxu0 %v2049
    %2696 = vmatpush2.bf16.msra.mxu0 %v2048
    %2697 = vmatprep.mubr.bf16.mxu0 %v695
    %2698 = vmatmul.mubr.bf16.gmra.mxu0 %v694
    %v2699 = vpop.f32.mrf.mxu0
    %v2700 = vadd.f32 %v2659, %v2699
    %v2701 = vpop.f32.mrf.mxu0
    %v2702 = vadd.f32 %v2661, %v2701
    %v2703 = vpop.f32.mrf.mxu0
    %v2704 = vpop.f32.mrf.mxu0
    %2705 = vdwg.mxu0
    %2706 = vmatprep.subr.bf16.mxu0 %v2169
    %2707 = vmatpush1.bf16.msra.mxu0 %v2168
    %2708 = vmatprep.subr.bf16.mxu0 %v2161
    %2709 = vmatpush1.bf16.msra.mxu0 %v2160
    %2710 = vmatprep.subr.bf16.mxu0 %v2153
    %2711 = vmatpush1.bf16.msra.mxu0 %v2152
    %2712 = vmatprep.subr.bf16.mxu0 %v2145
    %2713 = vmatpush1.bf16.msra.mxu0 %v2144
    %2714 = vmatprep.subr.bf16.mxu0 %v2137
    %2715 = vmatpush1.bf16.msra.mxu0 %v2136
    %2716 = vmatprep.subr.bf16.mxu0 %v2129
    %2717 = vmatpush1.bf16.msra.mxu0 %v2128
    %2718 = vmatprep.subr.bf16.mxu0 %v2121
    %2719 = vmatpush1.bf16.msra.mxu0 %v2120
    %2720 = vmatprep.subr.bf16.mxu0 %v2113
    %2721 = vmatpush1.bf16.msra.mxu0 %v2112
    %2722 = vmatprep.subr.bf16.mxu0 %v2233
    %2723 = vmatpush2.bf16.msra.mxu0 %v2232
    %2724 = vmatprep.subr.bf16.mxu0 %v2225
    %2725 = vmatpush2.bf16.msra.mxu0 %v2224
    %2726 = vmatprep.subr.bf16.mxu0 %v2217
    %2727 = vmatpush2.bf16.msra.mxu0 %v2216
    %2728 = vmatprep.subr.bf16.mxu0 %v2209
    %2729 = vmatpush2.bf16.msra.mxu0 %v2208
    %2730 = vmatprep.subr.bf16.mxu0 %v2201
    %2731 = vmatpush2.bf16.msra.mxu0 %v2200
    %2732 = vmatprep.subr.bf16.mxu0 %v2193
    %2733 = vmatpush2.bf16.msra.mxu0 %v2192
    %2734 = vmatprep.subr.bf16.mxu0 %v2185
    %2735 = vmatpush2.bf16.msra.mxu0 %v2184
    %2736 = vmatprep.subr.bf16.mxu0 %v2177
    %2737 = vmatpush2.bf16.msra.mxu0 %v2176
    %2738 = vmatprep.mubr.bf16.mxu0 %v697
    %2739 = vmatmul.mubr.bf16.gmra.mxu0 %v696
    %v2740 = vpop.f32.mrf.mxu0
    %v2741 = vadd.f32 %v2700, %v2740
    %v2742 = vpop.f32.mrf.mxu0
    %v2743 = vadd.f32 %v2702, %v2742
    %v2744 = vpop.f32.mrf.mxu0
    %v2745 = vpop.f32.mrf.mxu0
    %2746 = vdwg.mxu0
    %2747 = vmatprep.subr.bf16.mxu0 %v1915
    %2748 = vmatpush1.bf16.msra.mxu0 %v1914
    %2749 = vmatprep.subr.bf16.mxu0 %v1907
    %2750 = vmatpush1.bf16.msra.mxu0 %v1906
    %2751 = vmatprep.subr.bf16.mxu0 %v1899
    %2752 = vmatpush1.bf16.msra.mxu0 %v1898
    %2753 = vmatprep.subr.bf16.mxu0 %v1891
    %2754 = vmatpush1.bf16.msra.mxu0 %v1890
    %2755 = vmatprep.subr.bf16.mxu0 %v1883
    %2756 = vmatpush1.bf16.msra.mxu0 %v1882
    %2757 = vmatprep.subr.bf16.mxu0 %v1875
    %2758 = vmatpush1.bf16.msra.mxu0 %v1874
    %2759 = vmatprep.subr.bf16.mxu0 %v1867
    %2760 = vmatpush1.bf16.msra.mxu0 %v1866
    %2761 = vmatprep.subr.bf16.mxu0 %v1859
    %2762 = vmatpush1.bf16.msra.mxu0 %v1858
    %2763 = vmatprep.subr.bf16.mxu0 %v1979
    %2764 = vmatpush2.bf16.msra.mxu0 %v1978
    %2765 = vmatprep.subr.bf16.mxu0 %v1971
    %2766 = vmatpush2.bf16.msra.mxu0 %v1970
    %2767 = vmatprep.subr.bf16.mxu0 %v1963
    %2768 = vmatpush2.bf16.msra.mxu0 %v1962
    %2769 = vmatprep.subr.bf16.mxu0 %v1955
    %2770 = vmatpush2.bf16.msra.mxu0 %v1954
    %2771 = vmatprep.subr.bf16.mxu0 %v1947
    %2772 = vmatpush2.bf16.msra.mxu0 %v1946
    %2773 = vmatprep.subr.bf16.mxu0 %v1939
    %2774 = vmatpush2.bf16.msra.mxu0 %v1938
    %2775 = vmatprep.subr.bf16.mxu0 %v1931
    %2776 = vmatpush2.bf16.msra.mxu0 %v1930
    %2777 = vmatprep.subr.bf16.mxu0 %v1923
    %2778 = vmatpush2.bf16.msra.mxu0 %v1922
    %2779 = vmatprep.mubr.bf16.mxu0 %v693
    %2780 = vmatmul.mubr.bf16.gmra.mxu0 %v692
    %v2781 = vpop.f32.mrf.mxu0
    %v2782 = vadd.f32 %v654, %v2781
    %v2783 = vpop.f32.mrf.mxu0
    %v2784 = vadd.f32 %v658, %v2783
    %v2785 = vpop.f32.mrf.mxu0
    %v2786 = vpop.f32.mrf.mxu0
    %2787 = vdwg.mxu0
    %2788 = vmatprep.subr.bf16.mxu0 %v2043
    %2789 = vmatpush1.bf16.msra.mxu0 %v2042
    %2790 = vmatprep.subr.bf16.mxu0 %v2035
    %2791 = vmatpush1.bf16.msra.mxu0 %v2034
    %2792 = vmatprep.subr.bf16.mxu0 %v2027
    %2793 = vmatpush1.bf16.msra.mxu0 %v2026
    %2794 = vmatprep.subr.bf16.mxu0 %v2019
    %2795 = vmatpush1.bf16.msra.mxu0 %v2018
    %2796 = vmatprep.subr.bf16.mxu0 %v2011
    %2797 = vmatpush1.bf16.msra.mxu0 %v2010
    %2798 = vmatprep.subr.bf16.mxu0 %v2003
    %2799 = vmatpush1.bf16.msra.mxu0 %v2002
    %2800 = vmatprep.subr.bf16.mxu0 %v1995
    %2801 = vmatpush1.bf16.msra.mxu0 %v1994
    %2802 = vmatprep.subr.bf16.mxu0 %v1987
    %2803 = vmatpush1.bf16.msra.mxu0 %v1986
    %2804 = vmatprep.subr.bf16.mxu0 %v2107
    %2805 = vmatpush2.bf16.msra.mxu0 %v2106
    %2806 = vmatprep.subr.bf16.mxu0 %v2099
    %2807 = vmatpush2.bf16.msra.mxu0 %v2098
    %2808 = vmatprep.subr.bf16.mxu0 %v2091
    %2809 = vmatpush2.bf16.msra.mxu0 %v2090
    %2810 = vmatprep.subr.bf16.mxu0 %v2083
    %2811 = vmatpush2.bf16.msra.mxu0 %v2082
    %2812 = vmatprep.subr.bf16.mxu0 %v2075
    %2813 = vmatpush2.bf16.msra.mxu0 %v2074
    %2814 = vmatprep.subr.bf16.mxu0 %v2067
    %2815 = vmatpush2.bf16.msra.mxu0 %v2066
    %2816 = vmatprep.subr.bf16.mxu0 %v2059
    %2817 = vmatpush2.bf16.msra.mxu0 %v2058
    %2818 = vmatprep.subr.bf16.mxu0 %v2051
    %2819 = vmatpush2.bf16.msra.mxu0 %v2050
    %2820 = vmatprep.mubr.bf16.mxu0 %v695
    %2821 = vmatmul.mubr.bf16.gmra.mxu0 %v694
    %v2822 = vpop.f32.mrf.mxu0
    %v2823 = vadd.f32 %v2782, %v2822
    %v2824 = vpop.f32.mrf.mxu0
    %v2825 = vadd.f32 %v2784, %v2824
    %v2826 = vpop.f32.mrf.mxu0
    %v2827 = vpop.f32.mrf.mxu0
    %2828 = vdwg.mxu0
    %2829 = vmatprep.subr.bf16.mxu0 %v2171
    %2830 = vmatpush1.bf16.msra.mxu0 %v2170
    %2831 = vmatprep.subr.bf16.mxu0 %v2163
    %2832 = vmatpush1.bf16.msra.mxu0 %v2162
    %2833 = vmatprep.subr.bf16.mxu0 %v2155
    %2834 = vmatpush1.bf16.msra.mxu0 %v2154
    %2835 = vmatprep.subr.bf16.mxu0 %v2147
    %2836 = vmatpush1.bf16.msra.mxu0 %v2146
    %2837 = vmatprep.subr.bf16.mxu0 %v2139
    %2838 = vmatpush1.bf16.msra.mxu0 %v2138
    %2839 = vmatprep.subr.bf16.mxu0 %v2131
    %2840 = vmatpush1.bf16.msra.mxu0 %v2130
    %2841 = vmatprep.subr.bf16.mxu0 %v2123
    %2842 = vmatpush1.bf16.msra.mxu0 %v2122
    %2843 = vmatprep.subr.bf16.mxu0 %v2115
    %2844 = vmatpush1.bf16.msra.mxu0 %v2114
    %2845 = vmatprep.subr.bf16.mxu0 %v2235
    %2846 = vmatpush2.bf16.msra.mxu0 %v2234
    %2847 = vmatprep.subr.bf16.mxu0 %v2227
    %2848 = vmatpush2.bf16.msra.mxu0 %v2226
    %2849 = vmatprep.subr.bf16.mxu0 %v2219
    %2850 = vmatpush2.bf16.msra.mxu0 %v2218
    %2851 = vmatprep.subr.bf16.mxu0 %v2211
    %2852 = vmatpush2.bf16.msra.mxu0 %v2210
    %2853 = vmatprep.subr.bf16.mxu0 %v2203
    %2854 = vmatpush2.bf16.msra.mxu0 %v2202
    %2855 = vmatprep.subr.bf16.mxu0 %v2195
    %2856 = vmatpush2.bf16.msra.mxu0 %v2194
    %2857 = vmatprep.subr.bf16.mxu0 %v2187
    %2858 = vmatpush2.bf16.msra.mxu0 %v2186
    %2859 = vmatprep.subr.bf16.mxu0 %v2179
    %2860 = vmatpush2.bf16.msra.mxu0 %v2178
    %2861 = vmatprep.mubr.bf16.mxu0 %v697
    %2862 = vmatmul.mubr.bf16.gmra.mxu0 %v696
    %v2863 = vpop.f32.mrf.mxu0
    %v2864 = vadd.f32 %v2823, %v2863
    %v2865 = vpop.f32.mrf.mxu0
    %v2866 = vadd.f32 %v2825, %v2865
    %v2867 = vpop.f32.mrf.mxu0
    %v2868 = vpop.f32.mrf.mxu0
    %2869 = vdwg.mxu0
    %2870 = vmatprep.subr.bf16.mxu0 %v1917
    %2871 = vmatpush1.bf16.msra.mxu0 %v1916
    %2872 = vmatprep.subr.bf16.mxu0 %v1909
    %2873 = vmatpush1.bf16.msra.mxu0 %v1908
    %2874 = vmatprep.subr.bf16.mxu0 %v1901
    %2875 = vmatpush1.bf16.msra.mxu0 %v1900
    %2876 = vmatprep.subr.bf16.mxu0 %v1893
    %2877 = vmatpush1.bf16.msra.mxu0 %v1892
    %2878 = vmatprep.subr.bf16.mxu0 %v1885
    %2879 = vmatpush1.bf16.msra.mxu0 %v1884
    %2880 = vmatprep.subr.bf16.mxu0 %v1877
    %2881 = vmatpush1.bf16.msra.mxu0 %v1876
    %2882 = vmatprep.subr.bf16.mxu0 %v1869
    %2883 = vmatpush1.bf16.msra.mxu0 %v1868
    %2884 = vmatprep.subr.bf16.mxu0 %v1861
    %2885 = vmatpush1.bf16.msra.mxu0 %v1860
    %2886 = vmatprep.subr.bf16.mxu0 %v1981
    %2887 = vmatpush2.bf16.msra.mxu0 %v1980
    %2888 = vmatprep.subr.bf16.mxu0 %v1973
    %2889 = vmatpush2.bf16.msra.mxu0 %v1972
    %2890 = vmatprep.subr.bf16.mxu0 %v1965
    %2891 = vmatpush2.bf16.msra.mxu0 %v1964
    %2892 = vmatprep.subr.bf16.mxu0 %v1957
    %2893 = vmatpush2.bf16.msra.mxu0 %v1956
    %2894 = vmatprep.subr.bf16.mxu0 %v1949
    %2895 = vmatpush2.bf16.msra.mxu0 %v1948
    %2896 = vmatprep.subr.bf16.mxu0 %v1941
    %2897 = vmatpush2.bf16.msra.mxu0 %v1940
    %2898 = vmatprep.subr.bf16.mxu0 %v1933
    %2899 = vmatpush2.bf16.msra.mxu0 %v1932
    %2900 = vmatprep.subr.bf16.mxu0 %v1925
    %2901 = vmatpush2.bf16.msra.mxu0 %v1924
    %2902 = vmatprep.mubr.bf16.mxu0 %v693
    %2903 = vmatmul.mubr.bf16.gmra.mxu0 %v692
    %v2904 = vpop.f32.mrf.mxu0
    %v2905 = vadd.f32 %v662, %v2904
    %v2906 = vpop.f32.mrf.mxu0
    %v2907 = vadd.f32 %v666, %v2906
    %v2908 = vpop.f32.mrf.mxu0
    %v2909 = vpop.f32.mrf.mxu0
    %2910 = vdwg.mxu0
    %2911 = vmatprep.subr.bf16.mxu0 %v2045
    %2912 = vmatpush1.bf16.msra.mxu0 %v2044
    %2913 = vmatprep.subr.bf16.mxu0 %v2037
    %2914 = vmatpush1.bf16.msra.mxu0 %v2036
    %2915 = vmatprep.subr.bf16.mxu0 %v2029
    %2916 = vmatpush1.bf16.msra.mxu0 %v2028
    %2917 = vmatprep.subr.bf16.mxu0 %v2021
    %2918 = vmatpush1.bf16.msra.mxu0 %v2020
    %2919 = vmatprep.subr.bf16.mxu0 %v2013
    %2920 = vmatpush1.bf16.msra.mxu0 %v2012
    %2921 = vmatprep.subr.bf16.mxu0 %v2005
    %2922 = vmatpush1.bf16.msra.mxu0 %v2004
    %2923 = vmatprep.subr.bf16.mxu0 %v1997
    %2924 = vmatpush1.bf16.msra.mxu0 %v1996
    %2925 = vmatprep.subr.bf16.mxu0 %v1989
    %2926 = vmatpush1.bf16.msra.mxu0 %v1988
    %2927 = vmatprep.subr.bf16.mxu0 %v2109
    %2928 = vmatpush2.bf16.msra.mxu0 %v2108
    %2929 = vmatprep.subr.bf16.mxu0 %v2101
    %2930 = vmatpush2.bf16.msra.mxu0 %v2100
    %2931 = vmatprep.subr.bf16.mxu0 %v2093
    %2932 = vmatpush2.bf16.msra.mxu0 %v2092
    %2933 = vmatprep.subr.bf16.mxu0 %v2085
    %2934 = vmatpush2.bf16.msra.mxu0 %v2084
    %2935 = vmatprep.subr.bf16.mxu0 %v2077
    %2936 = vmatpush2.bf16.msra.mxu0 %v2076
    %2937 = vmatprep.subr.bf16.mxu0 %v2069
    %2938 = vmatpush2.bf16.msra.mxu0 %v2068
    %2939 = vmatprep.subr.bf16.mxu0 %v2061
    %2940 = vmatpush2.bf16.msra.mxu0 %v2060
    %2941 = vmatprep.subr.bf16.mxu0 %v2053
    %2942 = vmatpush2.bf16.msra.mxu0 %v2052
    %2943 = vmatprep.mubr.bf16.mxu0 %v695
    %2944 = vmatmul.mubr.bf16.gmra.mxu0 %v694
    %v2945 = vpop.f32.mrf.mxu0
    %v2946 = vadd.f32 %v2905, %v2945
    %v2947 = vpop.f32.mrf.mxu0
    %v2948 = vadd.f32 %v2907, %v2947
    %v2949 = vpop.f32.mrf.mxu0
    %v2950 = vpop.f32.mrf.mxu0
    %2951 = vdwg.mxu0
    %2952 = vmatprep.subr.bf16.mxu0 %v2173
    %2953 = vmatpush1.bf16.msra.mxu0 %v2172
    %2954 = vmatprep.subr.bf16.mxu0 %v2165
    %2955 = vmatpush1.bf16.msra.mxu0 %v2164
    %2956 = vmatprep.subr.bf16.mxu0 %v2157
    %2957 = vmatpush1.bf16.msra.mxu0 %v2156
    %2958 = vmatprep.subr.bf16.mxu0 %v2149
    %2959 = vmatpush1.bf16.msra.mxu0 %v2148
    %2960 = vmatprep.subr.bf16.mxu0 %v2141
    %2961 = vmatpush1.bf16.msra.mxu0 %v2140
    %2962 = vmatprep.subr.bf16.mxu0 %v2133
    %2963 = vmatpush1.bf16.msra.mxu0 %v2132
    %2964 = vmatprep.subr.bf16.mxu0 %v2125
    %2965 = vmatpush1.bf16.msra.mxu0 %v2124
    %2966 = vmatprep.subr.bf16.mxu0 %v2117
    %2967 = vmatpush1.bf16.msra.mxu0 %v2116
    %2968 = vmatprep.subr.bf16.mxu0 %v2237
    %2969 = vmatpush2.bf16.msra.mxu0 %v2236
    %2970 = vmatprep.subr.bf16.mxu0 %v2229
    %2971 = vmatpush2.bf16.msra.mxu0 %v2228
    %2972 = vmatprep.subr.bf16.mxu0 %v2221
    %2973 = vmatpush2.bf16.msra.mxu0 %v2220
    %2974 = vmatprep.subr.bf16.mxu0 %v2213
    %2975 = vmatpush2.bf16.msra.mxu0 %v2212
    %2976 = vmatprep.subr.bf16.mxu0 %v2205
    %2977 = vmatpush2.bf16.msra.mxu0 %v2204
    %2978 = vmatprep.subr.bf16.mxu0 %v2197
    %2979 = vmatpush2.bf16.msra.mxu0 %v2196
    %2980 = vmatprep.subr.bf16.mxu0 %v2189
    %2981 = vmatpush2.bf16.msra.mxu0 %v2188
    %2982 = vmatprep.subr.bf16.mxu0 %v2181
    %2983 = vmatpush2.bf16.msra.mxu0 %v2180
    %2984 = vmatprep.mubr.bf16.mxu0 %v697
    %2985 = vmatmul.mubr.bf16.gmra.mxu0 %v696
    %v2986 = vpop.f32.mrf.mxu0
    %v2987 = vadd.f32 %v2946, %v2986
    %v2988 = vpop.f32.mrf.mxu0
    %v2989 = vadd.f32 %v2948, %v2988
    %v2990 = vpop.f32.mrf.mxu0
    %v2991 = vpop.f32.mrf.mxu0
    %2992 = vdwg.mxu0
    %2993 = vmatprep.subr.bf16.mxu0 %v1919
    %2994 = vmatpush1.bf16.msra.mxu0 %v1918
    %2995 = vmatprep.subr.bf16.mxu0 %v1911
    %2996 = vmatpush1.bf16.msra.mxu0 %v1910
    %2997 = vmatprep.subr.bf16.mxu0 %v1903
    %2998 = vmatpush1.bf16.msra.mxu0 %v1902
    %2999 = vmatprep.subr.bf16.mxu0 %v1895
    %3000 = vmatpush1.bf16.msra.mxu0 %v1894
    %3001 = vmatprep.subr.bf16.mxu0 %v1887
    %3002 = vmatpush1.bf16.msra.mxu0 %v1886
    %3003 = vmatprep.subr.bf16.mxu0 %v1879
    %3004 = vmatpush1.bf16.msra.mxu0 %v1878
    %3005 = vmatprep.subr.bf16.mxu0 %v1871
    %3006 = vmatpush1.bf16.msra.mxu0 %v1870
    %3007 = vmatprep.subr.bf16.mxu0 %v1863
    %3008 = vmatpush1.bf16.msra.mxu0 %v1862
    %3009 = vmatprep.subr.bf16.mxu0 %v1983
    %3010 = vmatpush2.bf16.msra.mxu0 %v1982
    %3011 = vmatprep.subr.bf16.mxu0 %v1975
    %3012 = vmatpush2.bf16.msra.mxu0 %v1974
    %3013 = vmatprep.subr.bf16.mxu0 %v1967
    %3014 = vmatpush2.bf16.msra.mxu0 %v1966
    %3015 = vmatprep.subr.bf16.mxu0 %v1959
    %3016 = vmatpush2.bf16.msra.mxu0 %v1958
    %3017 = vmatprep.subr.bf16.mxu0 %v1951
    %3018 = vmatpush2.bf16.msra.mxu0 %v1950
    %3019 = vmatprep.subr.bf16.mxu0 %v1943
    %3020 = vmatpush2.bf16.msra.mxu0 %v1942
    %3021 = vmatprep.subr.bf16.mxu0 %v1935
    %3022 = vmatpush2.bf16.msra.mxu0 %v1934
    %3023 = vmatprep.subr.bf16.mxu0 %v1927
    %3024 = vmatpush2.bf16.msra.mxu0 %v1926
    %3025 = vmatprep.mubr.bf16.mxu0 %v693
    %3026 = vmatmul.mubr.bf16.gmra.mxu0 %v692
    %v3027 = vpop.f32.mrf.mxu0
    %v3028 = vadd.f32 %v670, %v3027
    %v3029 = vpop.f32.mrf.mxu0
    %v3030 = vadd.f32 %v674, %v3029
    %v3031 = vpop.f32.mrf.mxu0
    %v3032 = vpop.f32.mrf.mxu0
    %3033 = vdwg.mxu0
    %3034 = vmatprep.subr.bf16.mxu0 %v2047
    %3035 = vmatpush1.bf16.msra.mxu0 %v2046
    %3036 = vmatprep.subr.bf16.mxu0 %v2039
    %3037 = vmatpush1.bf16.msra.mxu0 %v2038
    %3038 = vmatprep.subr.bf16.mxu0 %v2031
    %3039 = vmatpush1.bf16.msra.mxu0 %v2030
    %3040 = vmatprep.subr.bf16.mxu0 %v2023
    %3041 = vmatpush1.bf16.msra.mxu0 %v2022
    %3042 = vmatprep.subr.bf16.mxu0 %v2015
    %3043 = vmatpush1.bf16.msra.mxu0 %v2014
    %3044 = vmatprep.subr.bf16.mxu0 %v2007
    %3045 = vmatpush1.bf16.msra.mxu0 %v2006
    %3046 = vmatprep.subr.bf16.mxu0 %v1999
    %3047 = vmatpush1.bf16.msra.mxu0 %v1998
    %3048 = vmatprep.subr.bf16.mxu0 %v1991
    %3049 = vmatpush1.bf16.msra.mxu0 %v1990
    %3050 = vmatprep.subr.bf16.mxu0 %v2111
    %3051 = vmatpush2.bf16.msra.mxu0 %v2110
    %3052 = vmatprep.subr.bf16.mxu0 %v2103
    %3053 = vmatpush2.bf16.msra.mxu0 %v2102
    %3054 = vmatprep.subr.bf16.mxu0 %v2095
    %3055 = vmatpush2.bf16.msra.mxu0 %v2094
    %3056 = vmatprep.subr.bf16.mxu0 %v2087
    %3057 = vmatpush2.bf16.msra.mxu0 %v2086
    %3058 = vmatprep.subr.bf16.mxu0 %v2079
    %3059 = vmatpush2.bf16.msra.mxu0 %v2078
    %3060 = vmatprep.subr.bf16.mxu0 %v2071
    %3061 = vmatpush2.bf16.msra.mxu0 %v2070
    %3062 = vmatprep.subr.bf16.mxu0 %v2063
    %3063 = vmatpush2.bf16.msra.mxu0 %v2062
    %3064 = vmatprep.subr.bf16.mxu0 %v2055
    %3065 = vmatpush2.bf16.msra.mxu0 %v2054
    %3066 = vmatprep.mubr.bf16.mxu0 %v695
    %3067 = vmatmul.mubr.bf16.gmra.mxu0 %v694
    %v3068 = vpop.f32.mrf.mxu0
    %v3069 = vadd.f32 %v3028, %v3068
    %v3070 = vpop.f32.mrf.mxu0
    %v3071 = vadd.f32 %v3030, %v3070
    %v3072 = vpop.f32.mrf.mxu0
    %v3073 = vpop.f32.mrf.mxu0
    %3074 = vdwg.mxu0
    %3075 = vmatprep.subr.bf16.mxu0 %v2175
    %3076 = vmatpush1.bf16.msra.mxu0 %v2174
    %3077 = vmatprep.subr.bf16.mxu0 %v2167
    %3078 = vmatpush1.bf16.msra.mxu0 %v2166
    %3079 = vmatprep.subr.bf16.mxu0 %v2159
    %3080 = vmatpush1.bf16.msra.mxu0 %v2158
    %3081 = vmatprep.subr.bf16.mxu0 %v2151
    %3082 = vmatpush1.bf16.msra.mxu0 %v2150
    %3083 = vmatprep.subr.bf16.mxu0 %v2143
    %3084 = vmatpush1.bf16.msra.mxu0 %v2142
    %3085 = vmatprep.subr.bf16.mxu0 %v2135
    %3086 = vmatpush1.bf16.msra.mxu0 %v2134
    %3087 = vmatprep.subr.bf16.mxu0 %v2127
    %3088 = vmatpush1.bf16.msra.mxu0 %v2126
    %3089 = vmatprep.subr.bf16.mxu0 %v2119
    %3090 = vmatpush1.bf16.msra.mxu0 %v2118
    %3091 = vmatprep.subr.bf16.mxu0 %v2239
    %3092 = vmatpush2.bf16.msra.mxu0 %v2238
    %3093 = vmatprep.subr.bf16.mxu0 %v2231
    %3094 = vmatpush2.bf16.msra.mxu0 %v2230
    %3095 = vmatprep.subr.bf16.mxu0 %v2223
    %3096 = vmatpush2.bf16.msra.mxu0 %v2222
    %3097 = vmatprep.subr.bf16.mxu0 %v2215
    %3098 = vmatpush2.bf16.msra.mxu0 %v2214
    %3099 = vmatprep.subr.bf16.mxu0 %v2207
    %3100 = vmatpush2.bf16.msra.mxu0 %v2206
    %3101 = vmatprep.subr.bf16.mxu0 %v2199
    %3102 = vmatpush2.bf16.msra.mxu0 %v2198
    %3103 = vmatprep.subr.bf16.mxu0 %v2191
    %3104 = vmatpush2.bf16.msra.mxu0 %v2190
    %3105 = vmatprep.subr.bf16.mxu0 %v2183
    %3106 = vmatpush2.bf16.msra.mxu0 %v2182
    %3107 = vmatprep.mubr.bf16.mxu0 %v697
    %3108 = vmatmul.mubr.bf16.gmra.mxu0 %v696
    %v3109 = vpop.f32.mrf.mxu0
    %v3110 = vadd.f32 %v3069, %v3109
    %v3111 = vpop.f32.mrf.mxu0
    %v3112 = vadd.f32 %v3071, %v3111
    %v3113 = vpop.f32.mrf.mxu0
    %v3114 = vpop.f32.mrf.mxu0
    %3115 = vdwg.mxu0
    %v3116 = vpack.c.bf16 %v249, %v249
    %v3117 = vld [vmem:[#allocation9] sm:$0xf]
    %v3118 = vld [vmem:[#allocation9 + $0x4] sm:$0xf]
    %v3119 = vld [vmem:[#allocation9 + $0x8] sm:$0xf]
    %v3120 = vld [vmem:[#allocation9 + $0xc] sm:$0xf]
    %v3121 = vld [vmem:[#allocation9 + $0x10] sm:$0xf]
    %v3122 = vld [vmem:[#allocation9 + $0x14] sm:$0xf]
    %v3123 = vld [vmem:[#allocation9 + $0x18] sm:$0xf]
    %v3124 = vld [vmem:[#allocation9 + $0x1c] sm:$0xf]
    %v3125 = vld [vmem:[#allocation9 + $0x20] sm:$0xf]
    %v3126 = vld [vmem:[#allocation9 + $0x24] sm:$0xf]
    %v3127 = vld [vmem:[#allocation9 + $0x28] sm:$0xf]
    %v3128 = vld [vmem:[#allocation9 + $0x2c] sm:$0xf]
    %v3129 = vld [vmem:[#allocation9 + $0x30] sm:$0xf]
    %v3130 = vld [vmem:[#allocation9 + $0x34] sm:$0xf]
    %v3131 = vld [vmem:[#allocation9 + $0x38] sm:$0xf]
    %v3132 = vld [vmem:[#allocation9 + $0x3c] sm:$0xf]
    %v3133 = vld [vmem:[#allocation10] sm:$0x1]
    %v3135 = vlaneseq
    %v3136 = vshrl.u32 %v3135, 7
    %v3137 = vsub.s32 0, %v3136
    %v3138 = vrot.slane %v3133, %v3137
    %v3156 = vunpack.c.l.b16 %v3117
    %v3157 = vunpack.c.l.b16 %v3118
    %v3158 = vunpack.c.l.b16 %v3119
    %v3159 = vunpack.c.l.b16 %v3120
    %v3160 = vunpack.c.l.b16 %v3121
    %v3161 = vunpack.c.l.b16 %v3122
    %v3162 = vunpack.c.l.b16 %v3123
    %v3163 = vunpack.c.l.b16 %v3124
    %v3164 = vunpack.c.l.b16 %v3125
    %v3165 = vunpack.c.l.b16 %v3126
    %v3166 = vunpack.c.l.b16 %v3127
    %v3167 = vunpack.c.l.b16 %v3128
    %v3168 = vunpack.c.l.b16 %v3129
    %v3169 = vunpack.c.l.b16 %v3130
    %v3170 = vunpack.c.l.b16 %v3131
    %v3171 = vunpack.c.l.b16 %v3132
    %v3172 = vpack.c.b16 %v3157, %v3156
    %v3173 = vpack.c.b16 %v3159, %v3158
    %v3174 = vpack.c.b16 %v3161, %v3160
    %v3175 = vpack.c.b16 %v3163, %v3162
    %v3176 = vpack.c.b16 %v3165, %v3164
    %v3177 = vpack.c.b16 %v3167, %v3166
    %v3178 = vpack.c.b16 %v3169, %v3168
    %v3179 = vpack.c.b16 %v3171, %v3170
    %3188 = vmatprep.subr.bf16.mxu0 0
    %3189 = vmatpush1.bf16.msra.mxu0 %v3179
    %3190 = vmatprep.subr.bf16.mxu0 0
    %3191 = vmatpush1.bf16.msra.mxu0 %v3178
    %3192 = vmatprep.subr.bf16.mxu0 0
    %3193 = vmatpush1.bf16.msra.mxu0 %v3177
    %3194 = vmatprep.subr.bf16.mxu0 0
    %3195 = vmatpush1.bf16.msra.mxu0 %v3176
    %3196 = vmatprep.subr.bf16.mxu0 0
    %3197 = vmatpush1.bf16.msra.mxu0 %v3175
    %3198 = vmatprep.subr.bf16.mxu0 0
    %3199 = vmatpush1.bf16.msra.mxu0 %v3174
    %3200 = vmatprep.subr.bf16.mxu0 0
    %3201 = vmatpush1.bf16.msra.mxu0 %v3173
    %3202 = vmatprep.subr.bf16.mxu0 0
    %3203 = vmatpush1.bf16.msra.mxu0 %v3172
    %3204 = vmatprep.subr.bf16.mxu0 0
    %3205 = vmatpush2.bf16.msra.mxu0 0
    %3206 = vmatprep.subr.bf16.mxu0 0
    %3207 = vmatpush2.bf16.msra.mxu0 0
    %3208 = vmatprep.subr.bf16.mxu0 0
    %3209 = vmatpush2.bf16.msra.mxu0 0
    %3210 = vmatprep.subr.bf16.mxu0 0
    %3211 = vmatpush2.bf16.msra.mxu0 0
    %3212 = vmatprep.subr.bf16.mxu0 0
    %3213 = vmatpush2.bf16.msra.mxu0 0
    %3214 = vmatprep.subr.bf16.mxu0 0
    %3215 = vmatpush2.bf16.msra.mxu0 0
    %3216 = vmatprep.subr.bf16.mxu0 0
    %3217 = vmatpush2.bf16.msra.mxu0 0
    %3218 = vmatprep.subr.bf16.mxu0 0
    %3219 = vmatpush2.bf16.msra.mxu0 0
    %3220 = vmatprep.mubr.bf16.mxu0 0
    %3221 = vmatmul.mubr.bf16.gmra.mxu0 %v3116
    %v3222 = vpop.f32.mrf.mxu0
    %v3223 = vadd.f32 %v3138, %v3222
    %v3224 = vpop.f32.mrf.mxu0
    %v3225 = vpop.f32.mrf.mxu0
    %v3226 = vpop.f32.mrf.mxu0
    %3227 = vdwg.mxu0
    %v3228 = vmax.f32 %v3223, 0.0
    %v3229 = vpack.c.bf16 %v2741, %v2741
    %v3230 = vpack.c.bf16 %v2743, %v2743
    %v3231 = vpack.c.bf16 %v2864, %v2864
    %v3232 = vpack.c.bf16 %v2866, %v2866
    %v3233 = vpack.c.bf16 %v2987, %v2987
    %v3234 = vpack.c.bf16 %v2989, %v2989
    %v3235 = vpack.c.bf16 %v3110, %v3110
    %v3236 = vpack.c.bf16 %v3112, %v3112
    %v3237 = vld [vmem:[#allocation12] sm:$0xf]
    %v3238 = vld [vmem:[#allocation12 + $0x4] sm:$0xf]
    %v3239 = vld [vmem:[#allocation12 + $0x8] sm:$0xf]
    %v3240 = vld [vmem:[#allocation12 + $0xc] sm:$0xf]
    %v3241 = vld [vmem:[#allocation12 + $0x10] sm:$0xf]
    %v3242 = vld [vmem:[#allocation12 + $0x14] sm:$0xf]
    %v3243 = vld [vmem:[#allocation12 + $0x18] sm:$0xf]
    %v3244 = vld [vmem:[#allocation12 + $0x1c] sm:$0xf]
    %v3245 = vld [vmem:[#allocation12 + $0x20] sm:$0xf]
    %v3246 = vld [vmem:[#allocation12 + $0x24] sm:$0xf]
    %v3247 = vld [vmem:[#allocation12 + $0x28] sm:$0xf]
    %v3248 = vld [vmem:[#allocation12 + $0x2c] sm:$0xf]
    %v3249 = vld [vmem:[#allocation12 + $0x30] sm:$0xf]
    %v3250 = vld [vmem:[#allocation12 + $0x34] sm:$0xf]
    %v3251 = vld [vmem:[#allocation12 + $0x38] sm:$0xf]
    %v3252 = vld [vmem:[#allocation12 + $0x3c] sm:$0xf]
    %v3253 = vld [vmem:[#allocation12 + $0x40] sm:$0xf]
    %v3254 = vld [vmem:[#allocation12 + $0x44] sm:$0xf]
    %v3255 = vld [vmem:[#allocation12 + $0x48] sm:$0xf]
    %v3256 = vld [vmem:[#allocation12 + $0x4c] sm:$0xf]
    %v3257 = vld [vmem:[#allocation12 + $0x50] sm:$0xf]
    %v3258 = vld [vmem:[#allocation12 + $0x54] sm:$0xf]
    %v3259 = vld [vmem:[#allocation12 + $0x58] sm:$0xf]
    %v3260 = vld [vmem:[#allocation12 + $0x5c] sm:$0xf]
    %v3261 = vld [vmem:[#allocation12 + $0x60] sm:$0xf]
    %v3262 = vld [vmem:[#allocation12 + $0x64] sm:$0xf]
    %v3263 = vld [vmem:[#allocation12 + $0x68] sm:$0xf]
    %v3264 = vld [vmem:[#allocation12 + $0x6c] sm:$0xf]
    %v3265 = vld [vmem:[#allocation12 + $0x70] sm:$0xf]
    %v3266 = vld [vmem:[#allocation12 + $0x74] sm:$0xf]
    %v3267 = vld [vmem:[#allocation12 + $0x78] sm:$0xf]
    %v3268 = vld [vmem:[#allocation12 + $0x7c] sm:$0xf]
    %v3269 = vld [vmem:[#allocation12 + $0x80] sm:$0xf]
    %v3270 = vld [vmem:[#allocation12 + $0x84] sm:$0xf]
    %v3271 = vld [vmem:[#allocation12 + $0x88] sm:$0xf]
    %v3272 = vld [vmem:[#allocation12 + $0x8c] sm:$0xf]
    %v3273 = vld [vmem:[#allocation12 + $0x90] sm:$0xf]
    %v3274 = vld [vmem:[#allocation12 + $0x94] sm:$0xf]
    %v3275 = vld [vmem:[#allocation12 + $0x98] sm:$0xf]
    %v3276 = vld [vmem:[#allocation12 + $0x9c] sm:$0xf]
    %v3277 = vld [vmem:[#allocation12 + $0xa0] sm:$0xf]
    %v3278 = vld [vmem:[#allocation12 + $0xa4] sm:$0xf]
    %v3279 = vld [vmem:[#allocation12 + $0xa8] sm:$0xf]
    %v3280 = vld [vmem:[#allocation12 + $0xac] sm:$0xf]
    %v3281 = vld [vmem:[#allocation12 + $0xb0] sm:$0xf]
    %v3282 = vld [vmem:[#allocation12 + $0xb4] sm:$0xf]
    %v3283 = vld [vmem:[#allocation12 + $0xb8] sm:$0xf]
    %v3284 = vld [vmem:[#allocation12 + $0xbc] sm:$0xf]
    %v3285 = vld [vmem:[#allocation12 + $0xc0] sm:$0xf]
    %v3286 = vld [vmem:[#allocation12 + $0xc4] sm:$0xf]
    %v3287 = vld [vmem:[#allocation12 + $0xc8] sm:$0xf]
    %v3288 = vld [vmem:[#allocation12 + $0xcc] sm:$0xf]
    %v3289 = vld [vmem:[#allocation12 + $0xd0] sm:$0xf]
    %v3290 = vld [vmem:[#allocation12 + $0xd4] sm:$0xf]
    %v3291 = vld [vmem:[#allocation12 + $0xd8] sm:$0xf]
    %v3292 = vld [vmem:[#allocation12 + $0xdc] sm:$0xf]
    %v3293 = vld [vmem:[#allocation12 + $0xe0] sm:$0xf]
    %v3294 = vld [vmem:[#allocation12 + $0xe4] sm:$0xf]
    %v3295 = vld [vmem:[#allocation12 + $0xe8] sm:$0xf]
    %v3296 = vld [vmem:[#allocation12 + $0xec] sm:$0xf]
    %v3297 = vld [vmem:[#allocation12 + $0xf0] sm:$0xf]
    %v3298 = vld [vmem:[#allocation12 + $0xf4] sm:$0xf]
    %v3299 = vld [vmem:[#allocation12 + $0xf8] sm:$0xf]
    %v3300 = vld [vmem:[#allocation12 + $0xfc] sm:$0xf]
    %v3301 = vld [vmem:[#allocation12 + $0x100] sm:$0xf]
    %v3302 = vld [vmem:[#allocation12 + $0x104] sm:$0xf]
    %v3303 = vld [vmem:[#allocation12 + $0x108] sm:$0xf]
    %v3304 = vld [vmem:[#allocation12 + $0x10c] sm:$0xf]
    %v3305 = vld [vmem:[#allocation12 + $0x110] sm:$0xf]
    %v3306 = vld [vmem:[#allocation12 + $0x114] sm:$0xf]
    %v3307 = vld [vmem:[#allocation12 + $0x118] sm:$0xf]
    %v3308 = vld [vmem:[#allocation12 + $0x11c] sm:$0xf]
    %v3309 = vld [vmem:[#allocation12 + $0x120] sm:$0xf]
    %v3310 = vld [vmem:[#allocation12 + $0x124] sm:$0xf]
    %v3311 = vld [vmem:[#allocation12 + $0x128] sm:$0xf]
    %v3312 = vld [vmem:[#allocation12 + $0x12c] sm:$0xf]
    %v3313 = vld [vmem:[#allocation12 + $0x130] sm:$0xf]
    %v3314 = vld [vmem:[#allocation12 + $0x134] sm:$0xf]
    %v3315 = vld [vmem:[#allocation12 + $0x138] sm:$0xf]
    %v3316 = vld [vmem:[#allocation12 + $0x13c] sm:$0xf]
    %v3317 = vld [vmem:[#allocation12 + $0x140] sm:$0xf]
    %v3318 = vld [vmem:[#allocation12 + $0x144] sm:$0xf]
    %v3319 = vld [vmem:[#allocation12 + $0x148] sm:$0xf]
    %v3320 = vld [vmem:[#allocation12 + $0x14c] sm:$0xf]
    %v3321 = vld [vmem:[#allocation12 + $0x150] sm:$0xf]
    %v3322 = vld [vmem:[#allocation12 + $0x154] sm:$0xf]
    %v3323 = vld [vmem:[#allocation12 + $0x158] sm:$0xf]
    %v3324 = vld [vmem:[#allocation12 + $0x15c] sm:$0xf]
    %v3325 = vld [vmem:[#allocation12 + $0x160] sm:$0xf]
    %v3326 = vld [vmem:[#allocation12 + $0x164] sm:$0xf]
    %v3327 = vld [vmem:[#allocation12 + $0x168] sm:$0xf]
    %v3328 = vld [vmem:[#allocation12 + $0x16c] sm:$0xf]
    %v3329 = vld [vmem:[#allocation12 + $0x170] sm:$0xf]
    %v3330 = vld [vmem:[#allocation12 + $0x174] sm:$0xf]
    %v3331 = vld [vmem:[#allocation12 + $0x178] sm:$0xf]
    %v3332 = vld [vmem:[#allocation12 + $0x17c] sm:$0xf]
    %v3333 = vld [vmem:[#allocation12 + $0x180] sm:$0xf]
    %v3334 = vld [vmem:[#allocation12 + $0x184] sm:$0xf]
    %v3335 = vld [vmem:[#allocation12 + $0x188] sm:$0xf]
    %v3336 = vld [vmem:[#allocation12 + $0x18c] sm:$0xf]
    %v3337 = vld [vmem:[#allocation12 + $0x190] sm:$0xf]
    %v3338 = vld [vmem:[#allocation12 + $0x194] sm:$0xf]
    %v3339 = vld [vmem:[#allocation12 + $0x198] sm:$0xf]
    %v3340 = vld [vmem:[#allocation12 + $0x19c] sm:$0xf]
    %v3341 = vld [vmem:[#allocation12 + $0x1a0] sm:$0xf]
    %v3342 = vld [vmem:[#allocation12 + $0x1a4] sm:$0xf]
    %v3343 = vld [vmem:[#allocation12 + $0x1a8] sm:$0xf]
    %v3344 = vld [vmem:[#allocation12 + $0x1ac] sm:$0xf]
    %v3345 = vld [vmem:[#allocation12 + $0x1b0] sm:$0xf]
    %v3346 = vld [vmem:[#allocation12 + $0x1b4] sm:$0xf]
    %v3347 = vld [vmem:[#allocation12 + $0x1b8] sm:$0xf]
    %v3348 = vld [vmem:[#allocation12 + $0x1bc] sm:$0xf]
    %v3349 = vld [vmem:[#allocation12 + $0x1c0] sm:$0xf]
    %v3350 = vld [vmem:[#allocation12 + $0x1c4] sm:$0xf]
    %v3351 = vld [vmem:[#allocation12 + $0x1c8] sm:$0xf]
    %v3352 = vld [vmem:[#allocation12 + $0x1cc] sm:$0xf]
    %v3353 = vld [vmem:[#allocation12 + $0x1d0] sm:$0xf]
    %v3354 = vld [vmem:[#allocation12 + $0x1d4] sm:$0xf]
    %v3355 = vld [vmem:[#allocation12 + $0x1d8] sm:$0xf]
    %v3356 = vld [vmem:[#allocation12 + $0x1dc] sm:$0xf]
    %v3357 = vld [vmem:[#allocation12 + $0x1e0] sm:$0xf]
    %v3358 = vld [vmem:[#allocation12 + $0x1e4] sm:$0xf]
    %v3359 = vld [vmem:[#allocation12 + $0x1e8] sm:$0xf]
    %v3360 = vld [vmem:[#allocation12 + $0x1ec] sm:$0xf]
    %v3361 = vld [vmem:[#allocation12 + $0x1f0] sm:$0xf]
    %v3362 = vld [vmem:[#allocation12 + $0x1f4] sm:$0xf]
    %v3363 = vld [vmem:[#allocation12 + $0x1f8] sm:$0xf]
    %v3364 = vld [vmem:[#allocation12 + $0x1fc] sm:$0xf]
    %v3365 = vld [vmem:[#allocation13] sm:$0x1]
    %v3367 = vlaneseq
    %v3368 = vshrl.u32 %v3367, 7
    %v3369 = vsub.s32 0, %v3368
    %v3370 = vrot.slane %v3365, %v3369
    %v3500 = vunpack.c.l.b16 %v3237
    %v3501 = vunpack.c.l.b16 %v3238
    %v3502 = vunpack.c.l.b16 %v3239
    %v3503 = vunpack.c.l.b16 %v3240
    %v3504 = vunpack.c.l.b16 %v3241
    %v3505 = vunpack.c.l.b16 %v3242
    %v3506 = vunpack.c.l.b16 %v3243
    %v3507 = vunpack.c.l.b16 %v3244
    %v3508 = vunpack.c.l.b16 %v3245
    %v3509 = vunpack.c.l.b16 %v3246
    %v3510 = vunpack.c.l.b16 %v3247
    %v3511 = vunpack.c.l.b16 %v3248
    %v3512 = vunpack.c.l.b16 %v3249
    %v3513 = vunpack.c.l.b16 %v3250
    %v3514 = vunpack.c.l.b16 %v3251
    %v3515 = vunpack.c.l.b16 %v3252
    %v3516 = vunpack.c.l.b16 %v3253
    %v3517 = vunpack.c.l.b16 %v3254
    %v3518 = vunpack.c.l.b16 %v3255
    %v3519 = vunpack.c.l.b16 %v3256
    %v3520 = vunpack.c.l.b16 %v3257
    %v3521 = vunpack.c.l.b16 %v3258
    %v3522 = vunpack.c.l.b16 %v3259
    %v3523 = vunpack.c.l.b16 %v3260
    %v3524 = vunpack.c.l.b16 %v3261
    %v3525 = vunpack.c.l.b16 %v3262
    %v3526 = vunpack.c.l.b16 %v3263
    %v3527 = vunpack.c.l.b16 %v3264
    %v3528 = vunpack.c.l.b16 %v3265
    %v3529 = vunpack.c.l.b16 %v3266
    %v3530 = vunpack.c.l.b16 %v3267
    %v3531 = vunpack.c.l.b16 %v3268
    %v3532 = vunpack.c.l.b16 %v3269
    %v3533 = vunpack.c.l.b16 %v3270
    %v3534 = vunpack.c.l.b16 %v3271
    %v3535 = vunpack.c.l.b16 %v3272
    %v3536 = vunpack.c.l.b16 %v3273
    %v3537 = vunpack.c.l.b16 %v3274
    %v3538 = vunpack.c.l.b16 %v3275
    %v3539 = vunpack.c.l.b16 %v3276
    %v3540 = vunpack.c.l.b16 %v3277
    %v3541 = vunpack.c.l.b16 %v3278
    %v3542 = vunpack.c.l.b16 %v3279
    %v3543 = vunpack.c.l.b16 %v3280
    %v3544 = vunpack.c.l.b16 %v3281
    %v3545 = vunpack.c.l.b16 %v3282
    %v3546 = vunpack.c.l.b16 %v3283
    %v3547 = vunpack.c.l.b16 %v3284
    %v3548 = vunpack.c.l.b16 %v3285
    %v3549 = vunpack.c.l.b16 %v3286
    %v3550 = vunpack.c.l.b16 %v3287
    %v3551 = vunpack.c.l.b16 %v3288
    %v3552 = vunpack.c.l.b16 %v3289
    %v3553 = vunpack.c.l.b16 %v3290
    %v3554 = vunpack.c.l.b16 %v3291
    %v3555 = vunpack.c.l.b16 %v3292
    %v3556 = vunpack.c.l.b16 %v3293
    %v3557 = vunpack.c.l.b16 %v3294
    %v3558 = vunpack.c.l.b16 %v3295
    %v3559 = vunpack.c.l.b16 %v3296
    %v3560 = vunpack.c.l.b16 %v3297
    %v3561 = vunpack.c.l.b16 %v3298
    %v3562 = vunpack.c.l.b16 %v3299
    %v3563 = vunpack.c.l.b16 %v3300
    %v3564 = vunpack.c.l.b16 %v3301
    %v3565 = vunpack.c.l.b16 %v3302
    %v3566 = vunpack.c.l.b16 %v3303
    %v3567 = vunpack.c.l.b16 %v3304
    %v3568 = vunpack.c.l.b16 %v3305
    %v3569 = vunpack.c.l.b16 %v3306
    %v3570 = vunpack.c.l.b16 %v3307
    %v3571 = vunpack.c.l.b16 %v3308
    %v3572 = vunpack.c.l.b16 %v3309
    %v3573 = vunpack.c.l.b16 %v3310
    %v3574 = vunpack.c.l.b16 %v3311
    %v3575 = vunpack.c.l.b16 %v3312
    %v3576 = vunpack.c.l.b16 %v3313
    %v3577 = vunpack.c.l.b16 %v3314
    %v3578 = vunpack.c.l.b16 %v3315
    %v3579 = vunpack.c.l.b16 %v3316
    %v3580 = vunpack.c.l.b16 %v3317
    %v3581 = vunpack.c.l.b16 %v3318
    %v3582 = vunpack.c.l.b16 %v3319
    %v3583 = vunpack.c.l.b16 %v3320
    %v3584 = vunpack.c.l.b16 %v3321
    %v3585 = vunpack.c.l.b16 %v3322
    %v3586 = vunpack.c.l.b16 %v3323
    %v3587 = vunpack.c.l.b16 %v3324
    %v3588 = vunpack.c.l.b16 %v3325
    %v3589 = vunpack.c.l.b16 %v3326
    %v3590 = vunpack.c.l.b16 %v3327
    %v3591 = vunpack.c.l.b16 %v3328
    %v3592 = vunpack.c.l.b16 %v3329
    %v3593 = vunpack.c.l.b16 %v3330
    %v3594 = vunpack.c.l.b16 %v3331
    %v3595 = vunpack.c.l.b16 %v3332
    %v3596 = vunpack.c.l.b16 %v3333
    %v3597 = vunpack.c.l.b16 %v3334
    %v3598 = vunpack.c.l.b16 %v3335
    %v3599 = vunpack.c.l.b16 %v3336
    %v3600 = vunpack.c.l.b16 %v3337
    %v3601 = vunpack.c.l.b16 %v3338
    %v3602 = vunpack.c.l.b16 %v3339
    %v3603 = vunpack.c.l.b16 %v3340
    %v3604 = vunpack.c.l.b16 %v3341
    %v3605 = vunpack.c.l.b16 %v3342
    %v3606 = vunpack.c.l.b16 %v3343
    %v3607 = vunpack.c.l.b16 %v3344
    %v3608 = vunpack.c.l.b16 %v3345
    %v3609 = vunpack.c.l.b16 %v3346
    %v3610 = vunpack.c.l.b16 %v3347
    %v3611 = vunpack.c.l.b16 %v3348
    %v3612 = vunpack.c.l.b16 %v3349
    %v3613 = vunpack.c.l.b16 %v3350
    %v3614 = vunpack.c.l.b16 %v3351
    %v3615 = vunpack.c.l.b16 %v3352
    %v3616 = vunpack.c.l.b16 %v3353
    %v3617 = vunpack.c.l.b16 %v3354
    %v3618 = vunpack.c.l.b16 %v3355
    %v3619 = vunpack.c.l.b16 %v3356
    %v3620 = vunpack.c.l.b16 %v3357
    %v3621 = vunpack.c.l.b16 %v3358
    %v3622 = vunpack.c.l.b16 %v3359
    %v3623 = vunpack.c.l.b16 %v3360
    %v3624 = vunpack.c.l.b16 %v3361
    %v3625 = vunpack.c.l.b16 %v3362
    %v3626 = vunpack.c.l.b16 %v3363
    %v3627 = vunpack.c.l.b16 %v3364
    %v3628 = vpack.c.b16 %v3501, %v3500
    %v3629 = vpack.c.b16 %v3503, %v3502
    %v3630 = vpack.c.b16 %v3505, %v3504
    %v3631 = vpack.c.b16 %v3507, %v3506
    %v3632 = vpack.c.b16 %v3509, %v3508
    %v3633 = vpack.c.b16 %v3511, %v3510
    %v3634 = vpack.c.b16 %v3513, %v3512
    %v3635 = vpack.c.b16 %v3515, %v3514
    %v3636 = vpack.c.b16 %v3517, %v3516
    %v3637 = vpack.c.b16 %v3519, %v3518
    %v3638 = vpack.c.b16 %v3521, %v3520
    %v3639 = vpack.c.b16 %v3523, %v3522
    %v3640 = vpack.c.b16 %v3525, %v3524
    %v3641 = vpack.c.b16 %v3527, %v3526
    %v3642 = vpack.c.b16 %v3529, %v3528
    %v3643 = vpack.c.b16 %v3531, %v3530
    %v3644 = vpack.c.b16 %v3533, %v3532
    %v3645 = vpack.c.b16 %v3535, %v3534
    %v3646 = vpack.c.b16 %v3537, %v3536
    %v3647 = vpack.c.b16 %v3539, %v3538
    %v3648 = vpack.c.b16 %v3541, %v3540
    %v3649 = vpack.c.b16 %v3543, %v3542
    %v3650 = vpack.c.b16 %v3545, %v3544
    %v3651 = vpack.c.b16 %v3547, %v3546
    %v3652 = vpack.c.b16 %v3549, %v3548
    %v3653 = vpack.c.b16 %v3551, %v3550
    %v3654 = vpack.c.b16 %v3553, %v3552
    %v3655 = vpack.c.b16 %v3555, %v3554
    %v3656 = vpack.c.b16 %v3557, %v3556
    %v3657 = vpack.c.b16 %v3559, %v3558
    %v3658 = vpack.c.b16 %v3561, %v3560
    %v3659 = vpack.c.b16 %v3563, %v3562
    %v3660 = vpack.c.b16 %v3565, %v3564
    %v3661 = vpack.c.b16 %v3567, %v3566
    %v3662 = vpack.c.b16 %v3569, %v3568
    %v3663 = vpack.c.b16 %v3571, %v3570
    %v3664 = vpack.c.b16 %v3573, %v3572
    %v3665 = vpack.c.b16 %v3575, %v3574
    %v3666 = vpack.c.b16 %v3577, %v3576
    %v3667 = vpack.c.b16 %v3579, %v3578
    %v3668 = vpack.c.b16 %v3581, %v3580
    %v3669 = vpack.c.b16 %v3583, %v3582
    %v3670 = vpack.c.b16 %v3585, %v3584
    %v3671 = vpack.c.b16 %v3587, %v3586
    %v3672 = vpack.c.b16 %v3589, %v3588
    %v3673 = vpack.c.b16 %v3591, %v3590
    %v3674 = vpack.c.b16 %v3593, %v3592
    %v3675 = vpack.c.b16 %v3595, %v3594
    %v3676 = vpack.c.b16 %v3597, %v3596
    %v3677 = vpack.c.b16 %v3599, %v3598
    %v3678 = vpack.c.b16 %v3601, %v3600
    %v3679 = vpack.c.b16 %v3603, %v3602
    %v3680 = vpack.c.b16 %v3605, %v3604
    %v3681 = vpack.c.b16 %v3607, %v3606
    %v3682 = vpack.c.b16 %v3609, %v3608
    %v3683 = vpack.c.b16 %v3611, %v3610
    %v3684 = vpack.c.b16 %v3613, %v3612
    %v3685 = vpack.c.b16 %v3615, %v3614
    %v3686 = vpack.c.b16 %v3617, %v3616
    %v3687 = vpack.c.b16 %v3619, %v3618
    %v3688 = vpack.c.b16 %v3621, %v3620
    %v3689 = vpack.c.b16 %v3623, %v3622
    %v3690 = vpack.c.b16 %v3625, %v3624
    %v3691 = vpack.c.b16 %v3627, %v3626
    %3756 = vmatprep.subr.bf16.mxu0 0
    %3757 = vmatpush1.bf16.msra.mxu0 %v3635
    %3758 = vmatprep.subr.bf16.mxu0 0
    %3759 = vmatpush1.bf16.msra.mxu0 %v3634
    %3760 = vmatprep.subr.bf16.mxu0 0
    %3761 = vmatpush1.bf16.msra.mxu0 %v3633
    %3762 = vmatprep.subr.bf16.mxu0 0
    %3763 = vmatpush1.bf16.msra.mxu0 %v3632
    %3764 = vmatprep.subr.bf16.mxu0 0
    %3765 = vmatpush1.bf16.msra.mxu0 %v3631
    %3766 = vmatprep.subr.bf16.mxu0 0
    %3767 = vmatpush1.bf16.msra.mxu0 %v3630
    %3768 = vmatprep.subr.bf16.mxu0 0
    %3769 = vmatpush1.bf16.msra.mxu0 %v3629
    %3770 = vmatprep.subr.bf16.mxu0 0
    %3771 = vmatpush1.bf16.msra.mxu0 %v3628
    %3772 = vmatprep.subr.bf16.mxu0 0
    %3773 = vmatpush2.bf16.msra.mxu0 %v3643
    %3774 = vmatprep.subr.bf16.mxu0 0
    %3775 = vmatpush2.bf16.msra.mxu0 %v3642
    %3776 = vmatprep.subr.bf16.mxu0 0
    %3777 = vmatpush2.bf16.msra.mxu0 %v3641
    %3778 = vmatprep.subr.bf16.mxu0 0
    %3779 = vmatpush2.bf16.msra.mxu0 %v3640
    %3780 = vmatprep.subr.bf16.mxu0 0
    %3781 = vmatpush2.bf16.msra.mxu0 %v3639
    %3782 = vmatprep.subr.bf16.mxu0 0
    %3783 = vmatpush2.bf16.msra.mxu0 %v3638
    %3784 = vmatprep.subr.bf16.mxu0 0
    %3785 = vmatpush2.bf16.msra.mxu0 %v3637
    %3786 = vmatprep.subr.bf16.mxu0 0
    %3787 = vmatpush2.bf16.msra.mxu0 %v3636
    %3788 = vmatprep.mubr.bf16.mxu0 %v3230
    %3789 = vmatmul.mubr.bf16.gmra.mxu0 %v3229
    %v3790 = vpop.f32.mrf.mxu0
    %v3791 = vadd.f32 %v3370, %v3790
    %v3792 = vpop.f32.mrf.mxu0
    %v3793 = vpop.f32.mrf.mxu0
    %v3794 = vpop.f32.mrf.mxu0
    %3795 = vdwg.mxu0
    %3796 = vmatprep.subr.bf16.mxu0 0
    %3797 = vmatpush1.bf16.msra.mxu0 %v3651
    %3798 = vmatprep.subr.bf16.mxu0 0
    %3799 = vmatpush1.bf16.msra.mxu0 %v3650
    %3800 = vmatprep.subr.bf16.mxu0 0
    %3801 = vmatpush1.bf16.msra.mxu0 %v3649
    %3802 = vmatprep.subr.bf16.mxu0 0
    %3803 = vmatpush1.bf16.msra.mxu0 %v3648
    %3804 = vmatprep.subr.bf16.mxu0 0
    %3805 = vmatpush1.bf16.msra.mxu0 %v3647
    %3806 = vmatprep.subr.bf16.mxu0 0
    %3807 = vmatpush1.bf16.msra.mxu0 %v3646
    %3808 = vmatprep.subr.bf16.mxu0 0
    %3809 = vmatpush1.bf16.msra.mxu0 %v3645
    %3810 = vmatprep.subr.bf16.mxu0 0
    %3811 = vmatpush1.bf16.msra.mxu0 %v3644
    %3812 = vmatprep.subr.bf16.mxu0 0
    %3813 = vmatpush2.bf16.msra.mxu0 %v3659
    %3814 = vmatprep.subr.bf16.mxu0 0
    %3815 = vmatpush2.bf16.msra.mxu0 %v3658
    %3816 = vmatprep.subr.bf16.mxu0 0
    %3817 = vmatpush2.bf16.msra.mxu0 %v3657
    %3818 = vmatprep.subr.bf16.mxu0 0
    %3819 = vmatpush2.bf16.msra.mxu0 %v3656
    %3820 = vmatprep.subr.bf16.mxu0 0
    %3821 = vmatpush2.bf16.msra.mxu0 %v3655
    %3822 = vmatprep.subr.bf16.mxu0 0
    %3823 = vmatpush2.bf16.msra.mxu0 %v3654
    %3824 = vmatprep.subr.bf16.mxu0 0
    %3825 = vmatpush2.bf16.msra.mxu0 %v3653
    %3826 = vmatprep.subr.bf16.mxu0 0
    %3827 = vmatpush2.bf16.msra.mxu0 %v3652
    %3828 = vmatprep.mubr.bf16.mxu0 %v3232
    %3829 = vmatmul.mubr.bf16.gmra.mxu0 %v3231
    %v3830 = vpop.f32.mrf.mxu0
    %v3831 = vadd.f32 %v3791, %v3830
    %v3832 = vpop.f32.mrf.mxu0
    %v3833 = vpop.f32.mrf.mxu0
    %v3834 = vpop.f32.mrf.mxu0
    %3835 = vdwg.mxu0
    %3836 = vmatprep.subr.bf16.mxu0 0
    %3837 = vmatpush1.bf16.msra.mxu0 %v3667
    %3838 = vmatprep.subr.bf16.mxu0 0
    %3839 = vmatpush1.bf16.msra.mxu0 %v3666
    %3840 = vmatprep.subr.bf16.mxu0 0
    %3841 = vmatpush1.bf16.msra.mxu0 %v3665
    %3842 = vmatprep.subr.bf16.mxu0 0
    %3843 = vmatpush1.bf16.msra.mxu0 %v3664
    %3844 = vmatprep.subr.bf16.mxu0 0
    %3845 = vmatpush1.bf16.msra.mxu0 %v3663
    %3846 = vmatprep.subr.bf16.mxu0 0
    %3847 = vmatpush1.bf16.msra.mxu0 %v3662
    %3848 = vmatprep.subr.bf16.mxu0 0
    %3849 = vmatpush1.bf16.msra.mxu0 %v3661
    %3850 = vmatprep.subr.bf16.mxu0 0
    %3851 = vmatpush1.bf16.msra.mxu0 %v3660
    %3852 = vmatprep.subr.bf16.mxu0 0
    %3853 = vmatpush2.bf16.msra.mxu0 %v3675
    %3854 = vmatprep.subr.bf16.mxu0 0
    %3855 = vmatpush2.bf16.msra.mxu0 %v3674
    %3856 = vmatprep.subr.bf16.mxu0 0
    %3857 = vmatpush2.bf16.msra.mxu0 %v3673
    %3858 = vmatprep.subr.bf16.mxu0 0
    %3859 = vmatpush2.bf16.msra.mxu0 %v3672
    %3860 = vmatprep.subr.bf16.mxu0 0
    %3861 = vmatpush2.bf16.msra.mxu0 %v3671
    %3862 = vmatprep.subr.bf16.mxu0 0
    %3863 = vmatpush2.bf16.msra.mxu0 %v3670
    %3864 = vmatprep.subr.bf16.mxu0 0
    %3865 = vmatpush2.bf16.msra.mxu0 %v3669
    %3866 = vmatprep.subr.bf16.mxu0 0
    %3867 = vmatpush2.bf16.msra.mxu0 %v3668
    %3868 = vmatprep.mubr.bf16.mxu0 %v3234
    %3869 = vmatmul.mubr.bf16.gmra.mxu0 %v3233
    %v3870 = vpop.f32.mrf.mxu0
    %v3871 = vadd.f32 %v3831, %v3870
    %v3872 = vpop.f32.mrf.mxu0
    %v3873 = vpop.f32.mrf.mxu0
    %v3874 = vpop.f32.mrf.mxu0
    %3875 = vdwg.mxu0
    %3876 = vmatprep.subr.bf16.mxu0 0
    %3877 = vmatpush1.bf16.msra.mxu0 %v3683
    %3878 = vmatprep.subr.bf16.mxu0 0
    %3879 = vmatpush1.bf16.msra.mxu0 %v3682
    %3880 = vmatprep.subr.bf16.mxu0 0
    %3881 = vmatpush1.bf16.msra.mxu0 %v3681
    %3882 = vmatprep.subr.bf16.mxu0 0
    %3883 = vmatpush1.bf16.msra.mxu0 %v3680
    %3884 = vmatprep.subr.bf16.mxu0 0
    %3885 = vmatpush1.bf16.msra.mxu0 %v3679
    %3886 = vmatprep.subr.bf16.mxu0 0
    %3887 = vmatpush1.bf16.msra.mxu0 %v3678
    %3888 = vmatprep.subr.bf16.mxu0 0
    %3889 = vmatpush1.bf16.msra.mxu0 %v3677
    %3890 = vmatprep.subr.bf16.mxu0 0
    %3891 = vmatpush1.bf16.msra.mxu0 %v3676
    %3892 = vmatprep.subr.bf16.mxu0 0
    %3893 = vmatpush2.bf16.msra.mxu0 %v3691
    %3894 = vmatprep.subr.bf16.mxu0 0
    %3895 = vmatpush2.bf16.msra.mxu0 %v3690
    %3896 = vmatprep.subr.bf16.mxu0 0
    %3897 = vmatpush2.bf16.msra.mxu0 %v3689
    %3898 = vmatprep.subr.bf16.mxu0 0
    %3899 = vmatpush2.bf16.msra.mxu0 %v3688
    %3900 = vmatprep.subr.bf16.mxu0 0
    %3901 = vmatpush2.bf16.msra.mxu0 %v3687
    %3902 = vmatprep.subr.bf16.mxu0 0
    %3903 = vmatpush2.bf16.msra.mxu0 %v3686
    %3904 = vmatprep.subr.bf16.mxu0 0
    %3905 = vmatpush2.bf16.msra.mxu0 %v3685
    %3906 = vmatprep.subr.bf16.mxu0 0
    %3907 = vmatpush2.bf16.msra.mxu0 %v3684
    %3908 = vmatprep.mubr.bf16.mxu0 %v3236
    %3909 = vmatmul.mubr.bf16.gmra.mxu0 %v3235
    %v3910 = vpop.f32.mrf.mxu0
    %v3911 = vadd.f32 %v3871, %v3910
    %v3912 = vpop.f32.mrf.mxu0
    %v3913 = vpop.f32.mrf.mxu0
    %v3914 = vpop.f32.mrf.mxu0
    %3915 = vdwg.mxu0
    %v3916 = vmax.f32 %v3911, 0.0
    %v3917 = vadd.f32 %v3228, %v3916
    %v3918 = vpack.c.bf16 %v3917, %v3917
    %v3919 = vld [vmem:[#allocation15] sm:$0xff]
    %v3920 = vld [vmem:[#allocation15 + $0x8] sm:$0xff]
    %v3921 = vld [vmem:[#allocation15 + $0x10] sm:$0xff]
    %v3922 = vld [vmem:[#allocation15 + $0x18] sm:$0xff]
    %v3923 = vld [vmem:[#allocation15 + $0x20] sm:$0xff]
    %v3924 = vld [vmem:[#allocation15 + $0x28] sm:$0xff]
    %v3925 = vld [vmem:[#allocation15 + $0x30] sm:$0xff]
    %v3926 = vld [vmem:[#allocation15 + $0x38] sm:$0xff]
    %v3927 = vld [vmem:[#allocation15 + $0x40] sm:$0xff]
    %v3928 = vld [vmem:[#allocation15 + $0x48] sm:$0xff]
    %v3929 = vld [vmem:[#allocation15 + $0x50] sm:$0xff]
    %v3930 = vld [vmem:[#allocation15 + $0x58] sm:$0xff]
    %v3931 = vld [vmem:[#allocation15 + $0x60] sm:$0xff]
    %v3932 = vld [vmem:[#allocation15 + $0x68] sm:$0xff]
    %v3933 = vld [vmem:[#allocation15 + $0x70] sm:$0xff]
    %v3934 = vld [vmem:[#allocation15 + $0x78] sm:$0xff]
    %v3935 = vld [vmem:[#allocation16] sm:$0x3]
    %v3937 = vlaneseq
    %v3938 = vshrl.u32 %v3937, 7
    %v3939 = vsub.s32 0, %v3938
    %v3940 = vrot.slane %v3935, %v3939
    %v3941 = vlaneseq
    %v3942 = vshrl.u32 %v3941, 7
    %v3943 = vsub.s32 1, %v3942
    %v3944 = vrot.slane %v3935, %v3943
    %v3963 = vunpack.c.l.b16 %v3919
    %v3964 = vunpack.c.h.b16 %v3919
    %v3965 = vunpack.c.l.b16 %v3920
    %v3966 = vunpack.c.h.b16 %v3920
    %v3967 = vunpack.c.l.b16 %v3921
    %v3968 = vunpack.c.h.b16 %v3921
    %v3969 = vunpack.c.l.b16 %v3922
    %v3970 = vunpack.c.h.b16 %v3922
    %v3971 = vunpack.c.l.b16 %v3923
    %v3972 = vunpack.c.h.b16 %v3923
    %v3973 = vunpack.c.l.b16 %v3924
    %v3974 = vunpack.c.h.b16 %v3924
    %v3975 = vunpack.c.l.b16 %v3925
    %v3976 = vunpack.c.h.b16 %v3925
    %v3977 = vunpack.c.l.b16 %v3926
    %v3978 = vunpack.c.h.b16 %v3926
    %v3979 = vunpack.c.l.b16 %v3927
    %v3980 = vunpack.c.h.b16 %v3927
    %v3981 = vunpack.c.l.b16 %v3928
    %v3982 = vunpack.c.h.b16 %v3928
    %v3983 = vunpack.c.l.b16 %v3929
    %v3984 = vunpack.c.h.b16 %v3929
    %v3985 = vunpack.c.l.b16 %v3930
    %v3986 = vunpack.c.h.b16 %v3930
    %v3987 = vunpack.c.l.b16 %v3931
    %v3988 = vunpack.c.h.b16 %v3931
    %v3989 = vunpack.c.l.b16 %v3932
    %v3990 = vunpack.c.h.b16 %v3932
    %v3991 = vunpack.c.l.b16 %v3933
    %v3992 = vunpack.c.h.b16 %v3933
    %v3993 = vunpack.c.l.b16 %v3934
    %v3994 = vunpack.c.h.b16 %v3934
    %v3995 = vpack.c.b16 %v3965, %v3963
    %v3996 = vpack.c.b16 %v3966, %v3964
    %v3997 = vpack.c.b16 %v3969, %v3967
    %v3998 = vpack.c.b16 %v3970, %v3968
    %v3999 = vpack.c.b16 %v3973, %v3971
    %v4000 = vpack.c.b16 %v3974, %v3972
    %v4001 = vpack.c.b16 %v3977, %v3975
    %v4002 = vpack.c.b16 %v3978, %v3976
    %v4003 = vpack.c.b16 %v3981, %v3979
    %v4004 = vpack.c.b16 %v3982, %v3980
    %v4005 = vpack.c.b16 %v3985, %v3983
    %v4006 = vpack.c.b16 %v3986, %v3984
    %v4007 = vpack.c.b16 %v3989, %v3987
    %v4008 = vpack.c.b16 %v3990, %v3988
    %v4009 = vpack.c.b16 %v3993, %v3991
    %v4010 = vpack.c.b16 %v3994, %v3992
    %4027 = vmatprep.subr.bf16.mxu0 %v4010
    %4028 = vmatpush1.bf16.msra.mxu0 %v4009
    %4029 = vmatprep.subr.bf16.mxu0 %v4008
    %4030 = vmatpush1.bf16.msra.mxu0 %v4007
    %4031 = vmatprep.subr.bf16.mxu0 %v4006
    %4032 = vmatpush1.bf16.msra.mxu0 %v4005
    %4033 = vmatprep.subr.bf16.mxu0 %v4004
    %4034 = vmatpush1.bf16.msra.mxu0 %v4003
    %4035 = vmatprep.subr.bf16.mxu0 %v4002
    %4036 = vmatpush1.bf16.msra.mxu0 %v4001
    %4037 = vmatprep.subr.bf16.mxu0 %v4000
    %4038 = vmatpush1.bf16.msra.mxu0 %v3999
    %4039 = vmatprep.subr.bf16.mxu0 %v3998
    %4040 = vmatpush1.bf16.msra.mxu0 %v3997
    %4041 = vmatprep.subr.bf16.mxu0 %v3996
    %4042 = vmatpush1.bf16.msra.mxu0 %v3995
    %4043 = vmatprep.subr.bf16.mxu0 0
    %4044 = vmatpush2.bf16.msra.mxu0 0
    %4045 = vmatprep.subr.bf16.mxu0 0
    %4046 = vmatpush2.bf16.msra.mxu0 0
    %4047 = vmatprep.subr.bf16.mxu0 0
    %4048 = vmatpush2.bf16.msra.mxu0 0
    %4049 = vmatprep.subr.bf16.mxu0 0
    %4050 = vmatpush2.bf16.msra.mxu0 0
    %4051 = vmatprep.subr.bf16.mxu0 0
    %4052 = vmatpush2.bf16.msra.mxu0 0
    %4053 = vmatprep.subr.bf16.mxu0 0
    %4054 = vmatpush2.bf16.msra.mxu0 0
    %4055 = vmatprep.subr.bf16.mxu0 0
    %4056 = vmatpush2.bf16.msra.mxu0 0
    %4057 = vmatprep.subr.bf16.mxu0 0
    %4058 = vmatpush2.bf16.msra.mxu0 0
    %4059 = vmatprep.mubr.bf16.mxu0 0
    %4060 = vmatmul.mubr.bf16.gmra.mxu0 %v3918
    %v4061 = vpop.f32.mrf.mxu0
    %v4062 = vadd.f32 %v3940, %v4061
    %v4063 = vpop.f32.mrf.mxu0
    %v4064 = vadd.f32 %v3944, %v4063
    %v4065 = vpop.f32.mrf.mxu0
    %v4066 = vpop.f32.mrf.mxu0
    %4067 = vdwg.mxu0
    %v4068 = vmax.f32 %v4062, 0.0
    %v4069 = vmax.f32 %v4064, 0.0
    %v4070 = vpack.c.bf16 %v4068, %v4068
    %v4071 = vpack.c.bf16 %v4069, %v4069
    %v4072 = vld [vmem:[#allocation18] sm:$0xf]
    %v4073 = vld [vmem:[#allocation18 + $0x4] sm:$0xf]
    %v4074 = vld [vmem:[#allocation18 + $0x8] sm:$0xf]
    %v4075 = vld [vmem:[#allocation18 + $0xc] sm:$0xf]
    %v4076 = vld [vmem:[#allocation18 + $0x10] sm:$0xf]
    %v4077 = vld [vmem:[#allocation18 + $0x14] sm:$0xf]
    %v4078 = vld [vmem:[#allocation18 + $0x18] sm:$0xf]
    %v4079 = vld [vmem:[#allocation18 + $0x1c] sm:$0xf]
    %v4080 = vld [vmem:[#allocation18 + $0x20] sm:$0xf]
    %v4081 = vld [vmem:[#allocation18 + $0x24] sm:$0xf]
    %v4082 = vld [vmem:[#allocation18 + $0x28] sm:$0xf]
    %v4083 = vld [vmem:[#allocation18 + $0x2c] sm:$0xf]
    %v4084 = vld [vmem:[#allocation18 + $0x30] sm:$0xf]
    %v4085 = vld [vmem:[#allocation18 + $0x34] sm:$0xf]
    %v4086 = vld [vmem:[#allocation18 + $0x38] sm:$0xf]
    %v4087 = vld [vmem:[#allocation18 + $0x3c] sm:$0xf]
    %v4088 = vld [vmem:[#allocation18 + $0x40] sm:$0xf]
    %v4089 = vld [vmem:[#allocation18 + $0x44] sm:$0xf]
    %v4090 = vld [vmem:[#allocation18 + $0x48] sm:$0xf]
    %v4091 = vld [vmem:[#allocation18 + $0x4c] sm:$0xf]
    %v4092 = vld [vmem:[#allocation18 + $0x50] sm:$0xf]
    %v4093 = vld [vmem:[#allocation18 + $0x54] sm:$0xf]
    %v4094 = vld [vmem:[#allocation18 + $0x58] sm:$0xf]
    %v4095 = vld [vmem:[#allocation18 + $0x5c] sm:$0xf]
    %v4096 = vld [vmem:[#allocation18 + $0x60] sm:$0xf]
    %v4097 = vld [vmem:[#allocation18 + $0x64] sm:$0xf]
    %v4098 = vld [vmem:[#allocation18 + $0x68] sm:$0xf]
    %v4099 = vld [vmem:[#allocation18 + $0x6c] sm:$0xf]
    %v4100 = vld [vmem:[#allocation18 + $0x70] sm:$0xf]
    %v4101 = vld [vmem:[#allocation18 + $0x74] sm:$0xf]
    %v4102 = vld [vmem:[#allocation18 + $0x78] sm:$0xf]
    %v4103 = vld [vmem:[#allocation18 + $0x7c] sm:$0xf]
    %v4104 = vld [vmem:[#allocation19] sm:$0x1]
    %v4106 = vlaneseq
    %v4107 = vshrl.u32 %v4106, 7
    %v4108 = vsub.s32 0, %v4107
    %v4109 = vrot.slane %v4104, %v4108
    %v4143 = vunpack.c.l.b16 %v4072
    %v4144 = vunpack.c.l.b16 %v4073
    %v4145 = vunpack.c.l.b16 %v4074
    %v4146 = vunpack.c.l.b16 %v4075
    %v4147 = vunpack.c.l.b16 %v4076
    %v4148 = vunpack.c.l.b16 %v4077
    %v4149 = vunpack.c.l.b16 %v4078
    %v4150 = vunpack.c.l.b16 %v4079
    %v4151 = vunpack.c.l.b16 %v4080
    %v4152 = vunpack.c.l.b16 %v4081
    %v4153 = vunpack.c.l.b16 %v4082
    %v4154 = vunpack.c.l.b16 %v4083
    %v4155 = vunpack.c.l.b16 %v4084
    %v4156 = vunpack.c.l.b16 %v4085
    %v4157 = vunpack.c.l.b16 %v4086
    %v4158 = vunpack.c.l.b16 %v4087
    %v4159 = vunpack.c.l.b16 %v4088
    %v4160 = vunpack.c.l.b16 %v4089
    %v4161 = vunpack.c.l.b16 %v4090
    %v4162 = vunpack.c.l.b16 %v4091
    %v4163 = vunpack.c.l.b16 %v4092
    %v4164 = vunpack.c.l.b16 %v4093
    %v4165 = vunpack.c.l.b16 %v4094
    %v4166 = vunpack.c.l.b16 %v4095
    %v4167 = vunpack.c.l.b16 %v4096
    %v4168 = vunpack.c.l.b16 %v4097
    %v4169 = vunpack.c.l.b16 %v4098
    %v4170 = vunpack.c.l.b16 %v4099
    %v4171 = vunpack.c.l.b16 %v4100
    %v4172 = vunpack.c.l.b16 %v4101
    %v4173 = vunpack.c.l.b16 %v4102
    %v4174 = vunpack.c.l.b16 %v4103
    %v4175 = vpack.c.b16 %v4144, %v4143
    %v4176 = vpack.c.b16 %v4146, %v4145
    %v4177 = vpack.c.b16 %v4148, %v4147
    %v4178 = vpack.c.b16 %v4150, %v4149
    %v4179 = vpack.c.b16 %v4152, %v4151
    %v4180 = vpack.c.b16 %v4154, %v4153
    %v4181 = vpack.c.b16 %v4156, %v4155
    %v4182 = vpack.c.b16 %v4158, %v4157
    %v4183 = vpack.c.b16 %v4160, %v4159
    %v4184 = vpack.c.b16 %v4162, %v4161
    %v4185 = vpack.c.b16 %v4164, %v4163
    %v4186 = vpack.c.b16 %v4166, %v4165
    %v4187 = vpack.c.b16 %v4168, %v4167
    %v4188 = vpack.c.b16 %v4170, %v4169
    %v4189 = vpack.c.b16 %v4172, %v4171
    %v4190 = vpack.c.b16 %v4174, %v4173
    %4207 = vmatprep.subr.bf16.mxu0 0
    %4208 = vmatpush1.bf16.msra.mxu0 %v4182
    %4209 = vmatprep.subr.bf16.mxu0 0
    %4210 = vmatpush1.bf16.msra.mxu0 %v4181
    %4211 = vmatprep.subr.bf16.mxu0 0
    %4212 = vmatpush1.bf16.msra.mxu0 %v4180
    %4213 = vmatprep.subr.bf16.mxu0 0
    %4214 = vmatpush1.bf16.msra.mxu0 %v4179
    %4215 = vmatprep.subr.bf16.mxu0 0
    %4216 = vmatpush1.bf16.msra.mxu0 %v4178
    %4217 = vmatprep.subr.bf16.mxu0 0
    %4218 = vmatpush1.bf16.msra.mxu0 %v4177
    %4219 = vmatprep.subr.bf16.mxu0 0
    %4220 = vmatpush1.bf16.msra.mxu0 %v4176
    %4221 = vmatprep.subr.bf16.mxu0 0
    %4222 = vmatpush1.bf16.msra.mxu0 %v4175
    %4223 = vmatprep.subr.bf16.mxu0 0
    %4224 = vmatpush2.bf16.msra.mxu0 %v4190
    %4225 = vmatprep.subr.bf16.mxu0 0
    %4226 = vmatpush2.bf16.msra.mxu0 %v4189
    %4227 = vmatprep.subr.bf16.mxu0 0
    %4228 = vmatpush2.bf16.msra.mxu0 %v4188
    %4229 = vmatprep.subr.bf16.mxu0 0
    %4230 = vmatpush2.bf16.msra.mxu0 %v4187
    %4231 = vmatprep.subr.bf16.mxu0 0
    %4232 = vmatpush2.bf16.msra.mxu0 %v4186
    %4233 = vmatprep.subr.bf16.mxu0 0
    %4234 = vmatpush2.bf16.msra.mxu0 %v4185
    %4235 = vmatprep.subr.bf16.mxu0 0
    %4236 = vmatpush2.bf16.msra.mxu0 %v4184
    %4237 = vmatprep.subr.bf16.mxu0 0
    %4238 = vmatpush2.bf16.msra.mxu0 %v4183
    %4239 = vmatprep.mubr.bf16.mxu0 %v4071
    %4240 = vmatmul.mubr.bf16.gmra.mxu0 %v4070
    %v4241 = vpop.f32.mrf.mxu0
    %v4242 = vadd.f32 %v4109, %v4241
    %v4243 = vpop.f32.mrf.mxu0
    %v4244 = vpop.f32.mrf.mxu0
    %v4245 = vpop.f32.mrf.mxu0
    %4246 = vdwg.mxu0
    %4247 = vst [vmem:[%s14] sm:$0xff] %v4242
    // Predicated region
    $region106: #{fused_forward.1} parent=1 // pred_check
      _
    $region107: #{fused_forward.1} parent=1 // pred_check_branch
      %4249 = sbr.rel (0) target = $region109
    $region108: #{fused_forward.1} parent=1 // pred_region
      _
    $region109: #{fused_forward.1} parent=1 // pred_fallthru
      _
    // Predicated region
    $region110: #{fused_forward.1} parent=1 // pred_check
      _
    $region111: #{fused_forward.1} parent=1 // pred_check_branch
      %4251 = sbr.rel (0) target = $region113
    $region112: #{fused_forward.1} parent=1 // pred_region
      _
    $region113: #{fused_forward.1} parent=1 // pred_fallthru
      _
    %4252 = vsyncpa [#allocation3], 1
    %4253 = vsyncpa [#allocation5], 1
    %4254 = vsyncpa [#allocation8], 1
    %4255 = vsyncpa [#allocation11], 1
    %4256 = vsyncpa [#allocation14], 1
    %4257 = vsyncpa [#allocation17], 1
    %4258 = vsyncpa [#allocation20], 1

</llo_original>
